<compile_context>
chip_gen: v7x
topology: tpu7x:2x2x1
jax: 0.10.0
libtpu: 0.0.40
codegen_flags: <defaults>
</compile_context>

<pallas_src>
import functools

import jax
import jax.numpy as jnp
from jax import lax
from jax.experimental import pallas as pl
from jax.experimental.pallas import tpu as pltpu


def _layernorm(x, gamma, beta, eps=1e-5):
    mu = jnp.mean(x, axis=-1, keepdims=True)
    var = jnp.mean((x - mu) ** 2, axis=-1, keepdims=True)
    return (x - mu) * lax.rsqrt(var + eps) * gamma + beta


def _choose_tile(n, target, align):
    """Largest t <= target with t % align == 0 and n % t == 0; falls back to n."""
    t = (min(target, n) // align) * align
    while t >= align:
        if n % t == 0:
            return int(t)
        t -= align
    return int(n)


def _vmem_limit_bytes():
    cap = 64 * 1024 * 1024  # conservative fallback (v7x physical per-TC VMEM)
    try:
        info = pltpu.get_tpu_info()
        cap = int(getattr(info, "vmem_capacity_bytes", cap))
    except Exception:
        pass
    return min((cap * 3) // 4, 96 * 1024 * 1024)


def _hint(idx, tile):
    return pl.multiple_of(idx * tile, 8) if tile % 8 == 0 else idx * tile


# ----------------------------------------------------------------------------
# Pair-embedding kernel: relpos + tf_z_i + tf_z_j, tiled over (i, j)
# ----------------------------------------------------------------------------
def _pair_kernel(relpos_k,
                 ri_col_ref, ri_row_ref, tf_ref,
                 wz_ref, bz_ref, table_ref,
                 pair_ref, tfz_scratch):
    i = pl.program_id(1)
    j = pl.program_id(2)
    ti, tj, cz = pair_ref.shape[1], pair_ref.shape[2], pair_ref.shape[3]
    no_bins = table_ref.shape[0]

    # Fused tf -> [c_z | c_z] projection, computed once per batch element.
    @pl.when((i == 0) & (j == 0))
    def _():
        proj = jnp.dot(tf_ref[0], wz_ref[...],
                       preferred_element_type=jnp.float32)        # [N, 2*c_z] f32
        tfz_scratch[...] = proj + bz_ref[...]

    tf_emb_i = tfz_scratch[pl.ds(_hint(i, ti), ti), 0:cz]          # [TI, c_z]
    tf_emb_j = tfz_scratch[pl.ds(_hint(j, tj), tj), cz:2 * cz]     # [TJ, c_z]

    # relpos (Algorithm 4) for this (TI, TJ) tile, nearest-bin in int32.
    ri_i = ri_col_ref[0]                                           # [TI, 1]
    ri_j = ri_row_ref[0]                                           # [1, TJ]
    d = ri_i - ri_j                                                # [TI, TJ]
    k = float(relpos_k)
    bin_idx = jnp.clip(jnp.ceil(d - 0.5), -k, k).astype(jnp.int32) + int(relpos_k)
    iota = lax.broadcasted_iota(jnp.int32, (ti, tj, no_bins), 2)
    one_hot = (iota == bin_idx[..., None]).astype(table_ref.dtype)  # [TI, TJ, B] in matmul dtype

    # 2-D MXU matmul against (w_relpos + b_relpos) table; bias folded in.
    relpos_emb = jnp.dot(one_hot.reshape(ti * tj, no_bins), table_ref[...],
                         preferred_element_type=jnp.float32).reshape(ti, tj, cz)

    pair = relpos_emb + tf_emb_i[:, None, :] + tf_emb_j[None, :, :]
    pair_ref[0] = pair.astype(pair_ref.dtype)


# ----------------------------------------------------------------------------
# MSA-embedding kernel: linear_msa_m + LN1 (+ per-batch linear_tf_m + LN2), TC clusters/step
# ----------------------------------------------------------------------------
def _msa_kernel(tf_ref, msa_ref,
                wtm_ref, btm_ref, wmm_ref, bmm_ref,
                g1_ref, be1_ref, g2_ref, be2_ref,
                out_ref, tfm_scratch):
    @pl.when(pl.program_id(1) == 0)
    def _():
        tfm = jnp.dot(tf_ref[0], wtm_ref[...],
                      preferred_element_type=jnp.float32) + btm_ref[...]
        tfm_scratch[...] = _layernorm(tfm, g2_ref[...], be2_ref[...])

    tc, n, md = msa_ref.shape[1], msa_ref.shape[2], msa_ref.shape[3]
    cm = out_ref.shape[3]

    m = jnp.dot(msa_ref[0].reshape(tc * n, md), wmm_ref[...],
                preferred_element_type=jnp.float32) + bmm_ref[...]   # [TC*N, c_m] f32
    m = _layernorm(m, g1_ref[...], be1_ref[...])
    m = m.reshape(tc, n, cm) + tfm_scratch[...][None]
    out_ref[0] = m.astype(out_ref.dtype)


# ----------------------------------------------------------------------------
# Wrapper
# ----------------------------------------------------------------------------
def input_embedder_forward(params, tf, ri, msa, relpos_k, *,
                           compute_dtype=jnp.float32,
                           out_dtype=jnp.float32,
                           tile_i=None, tile_j=None, tile_c=None):
    B, N, tf_dim = tf.shape
    _, C, _, msa_dim = msa.shape
    c_z = params["w_tf_z_i"].shape[1]
    c_m = params["w_tf_m"].shape[1]
    no_bins = 2 * relpos_k + 1

    vmem_limit = _vmem_limit_bytes()
    ti_target = 256 if vmem_limit >= 80 * 1024 * 1024 else 128  # v5e/v6e vs v7x tile size
    TI = tile_i if tile_i is not None else _choose_tile(N, ti_target, 8)
    TJ = tile_j if tile_j is not None else _choose_tile(N, 128, 128)  # lane-aligned or == N
    TC = tile_c if tile_c is not None else _choose_tile(C, 16, 1)
    assert N % TI == 0 and N % TJ == 0 and C % TC == 0

    # Packed / precomputed parameters.
    w_tf_z = jnp.concatenate([params["w_tf_z_i"], params["w_tf_z_j"]],
                             axis=1).astype(compute_dtype)              # [tf_dim, 2*c_z]
    b_tf_z = jnp.concatenate([params["b_tf_z_i"], params["b_tf_z_j"]],
                             axis=1).astype(jnp.float32)                # [1, 2*c_z]
    relpos_table = (params["w_relpos"] + params["b_relpos"]).astype(compute_dtype)

    tf_c = tf.astype(compute_dtype)
    msa_c = msa.astype(compute_dtype)
    ri_col = ri.reshape(B, N, 1).astype(jnp.float32)
    ri_row = ri.reshape(B, 1, N).astype(jnp.float32)

    w_tf_m = params["w_tf_m"].astype(compute_dtype)
    w_msa_m = params["w_msa_m"].astype(compute_dtype)
    b_tf_m = params["b_tf_m"].astype(jnp.float32)
    b_msa_m = params["b_msa_m"].astype(jnp.float32)
    ln1_g, ln1_b = params["ln1_g"].astype(jnp.float32), params["ln1_b"].astype(jnp.float32)
    ln2_g, ln2_b = params["ln2_g"].astype(jnp.float32), params["ln2_b"].astype(jnp.float32)

    full = lambda shape: pl.BlockSpec(shape, lambda *_: (0,) * len(shape))
    isz_c = jnp.dtype(compute_dtype).itemsize
    isz_o = jnp.dtype(out_dtype).itemsize

    # ---- pair embedding -----------------------------------------------------
    pair_cost = pl.CostEstimate(
        flops=int(2 * B * N * N * no_bins * c_z
                  + 2 * B * N * tf_dim * 2 * c_z
                  + 2 * B * N * N * c_z),
        transcendentals=0,
        bytes_accessed=int(B * N * N * c_z * isz_o
                           + B * N * tf_dim * isz_c * (N // TI) * (N // TJ)
                           + 2 * B * N * 4),
    )
    pair_emb = pl.pallas_call(
        functools.partial(_pair_kernel, relpos_k),
        out_shape=jax.ShapeDtypeStruct((B, N, N, c_z), out_dtype),
        grid_spec=pltpu.PrefetchScalarGridSpec(
            num_scalar_prefetch=0,
            grid=(B, N // TI, N // TJ),
            in_specs=[
                pl.BlockSpec((1, TI, 1), lambda b, i, j: (b, i, 0)),        # ri (rows)
                pl.BlockSpec((1, 1, TJ), lambda b, i, j: (b, 0, j)),        # ri (cols)
                pl.BlockSpec((1, N, tf_dim), lambda b, i, j: (b, 0, 0)),    # tf
                full((tf_dim, 2 * c_z)),                                    # fused tf_z_i|j W
                full((1, 2 * c_z)),                                         # fused bias
                full((no_bins, c_z)),                                       # relpos table (W+b)
            ],
            out_specs=pl.BlockSpec((1, TI, TJ, c_z), lambda b, i, j: (b, i, j, 0)),
            scratch_shapes=[pltpu.VMEM((N, 2 * c_z), jnp.float32)],
        ),
        compiler_params=pltpu.CompilerParams(
            dimension_semantics=("parallel", "arbitrary", "arbitrary"),
            vmem_limit_bytes=vmem_limit),
        cost_estimate=pair_cost,
    )(ri_col, ri_row, tf_c, w_tf_z, b_tf_z, relpos_table)

    # ---- msa embedding ------------------------------------------------------
    msa_cost = pl.CostEstimate(
        flops=int(2 * B * C * N * msa_dim * c_m
                  + 2 * B * N * tf_dim * c_m
                  + 10 * B * C * N * c_m),
        transcendentals=int(B * (C * N + N)),
        bytes_accessed=int(B * C * N * msa_dim * isz_c
                           + B * C * N * c_m * isz_o
                           + B * N * tf_dim * isz_c * (C // TC)),
    )
    msa_emb = pl.pallas_call(
        _msa_kernel,
        out_shape=jax.ShapeDtypeStruct((B, C, N, c_m), out_dtype),
        grid_spec=pltpu.PrefetchScalarGridSpec(
            num_scalar_prefetch=0,
            grid=(B, C // TC),
            in_specs=[
                pl.BlockSpec((1, N, tf_dim), lambda b, c: (b, 0, 0)),           # tf
                pl.BlockSpec((1, TC, N, msa_dim), lambda b, c: (b, c, 0, 0)),   # msa block
                full((tf_dim, c_m)), full((1, c_m)),                            # linear_tf_m
                full((msa_dim, c_m)), full((1, c_m)),                           # linear_msa_m
                full((1, c_m)), full((1, c_m)),                                 # layernorm1
                full((1, c_m)), full((1, c_m)),                                 # layernorm2
            ],
            out_specs=pl.BlockSpec((1, TC, N, c_m), lambda b, c: (b, c, 0, 0)),
            scratch_shapes=[pltpu.VMEM((N, c_m), jnp.float32)],
        ),
        compiler_params=pltpu.CompilerParams(
            dimension_semantics=("parallel", "arbitrary"),
            vmem_limit_bytes=vmem_limit),
        cost_estimate=msa_cost,
    )(tf_c, msa_c,
      w_tf_m, b_tf_m, w_msa_m, b_msa_m,
      ln1_g, ln1_b, ln2_g, ln2_b)

    return msa_emb, pair_emb


# ----------------------------------------------------------------------------
# Pure-JAX reference (mirrors the PyTorch forward)
# ----------------------------------------------------------------------------
def reference_forward(params, tf, ri, msa, relpos_k):
    def lin(x, w, b):
        return jnp.dot(x, w) + b

    tf_emb_i = lin(tf, params["w_tf_z_i"], params["b_tf_z_i"])
    tf_emb_j = lin(tf, params["w_tf_z_j"], params["b_tf_z_j"])

    ri_f = ri.astype(jnp.float32)
    d = ri_f[..., None] - ri_f[..., None, :]
    boundaries = jnp.arange(-relpos_k, relpos_k + 1, dtype=jnp.float32)
    dd = jnp.abs(d[..., None] - boundaries)
    idx = jnp.argmin(dd, axis=-1)
    one_hot = jax.nn.one_hot(idx, boundaries.shape[0], dtype=jnp.float32)
    pair = lin(one_hot, params["w_relpos"], params["b_relpos"])
    pair = pair + tf_emb_i[..., None, :] + tf_emb_j[..., None, :, :]

    tf_m = _layernorm(lin(tf, params["w_tf_m"], params["b_tf_m"]),
                      params["ln2_g"], params["ln2_b"])
    msa_emb = _layernorm(lin(msa, params["w_msa_m"], params["b_msa_m"]),
                         params["ln1_g"], params["ln1_b"])
    msa_emb = msa_emb + tf_m[..., None, :, :]
    return msa_emb, pair


def init_params(key, tf_dim, msa_dim, c_z, c_m, relpos_k):
    no_bins = 2 * relpos_k + 1
    ks = jax.random.split(key, 10)
    return {
        "w_tf_z_i": 0.1 * jax.random.normal(ks[0], (tf_dim, c_z), jnp.float32),
        "b_tf_z_i": 0.1 * jax.random.normal(ks[1], (1, c_z), jnp.float32),
        "w_tf_z_j": 0.1 * jax.random.normal(ks[2], (tf_dim, c_z), jnp.float32),
        "b_tf_z_j": 0.1 * jax.random.normal(ks[3], (1, c_z), jnp.float32),
        "w_relpos": 0.1 * jax.random.normal(ks[4], (no_bins, c_z), jnp.float32),
        "b_relpos": 0.1 * jax.random.normal(ks[5], (1, c_z), jnp.float32),
        "w_tf_m":   0.1 * jax.random.normal(ks[6], (tf_dim, c_m), jnp.float32),
        "b_tf_m":   0.1 * jax.random.normal(ks[7], (1, c_m), jnp.float32),
        "w_msa_m":  0.1 * jax.random.normal(ks[8], (msa_dim, c_m), jnp.float32),
        "b_msa_m":  0.1 * jax.random.normal(ks[9], (1, c_m), jnp.float32),
        "ln1_g": jnp.ones((1, c_m), jnp.float32),
        "ln1_b": jnp.zeros((1, c_m), jnp.float32),
        "ln2_g": jnp.ones((1, c_m), jnp.float32),
        "ln2_b": jnp.zeros((1, c_m), jnp.float32),
    }


if __name__ == "__main__":
    # Small but realistic channel widths (lane-dense c_z/c_m = 128).
    B, N_res, N_clust = 2, 64, 8
    tf_dim, msa_dim, c_z, c_m, relpos_k = 22, 49, 128, 128, 8

    key = jax.random.PRNGKey(0)
    kp, k1, k2 = jax.random.split(key, 3)

    params = init_params(kp, tf_dim, msa_dim, c_z, c_m, relpos_k)
    tf = jax.random.normal(k1, (B, N_res, tf_dim), jnp.float32)
    msa = jax.random.normal(k2, (B, N_clust, N_res, msa_dim), jnp.float32)
    ri = jnp.broadcast_to(jnp.arange(N_res, dtype=jnp.float32), (B, N_res))

    msa_ref, pair_ref = reference_forward(params, tf, ri, msa, relpos_k)

    # --- f32 compute path (tight tolerance), small tiles to exercise the grid ---
    msa_emb, pair_emb = input_embedder_forward(
        params, tf, ri, msa, relpos_k,
        compute_dtype=jnp.float32, out_dtype=jnp.float32,
        tile_i=32, tile_c=4)
    jax.block_until_ready((msa_emb, pair_emb))
    assert msa_emb.shape == (B, N_clust, N_res, c_m)
    assert pair_emb.shape == (B, N_res, N_res, c_z)
    assert jnp.allclose(msa_emb, msa_ref, atol=1e-3, rtol=1e-3)
    assert jnp.allclose(pair_emb, pair_ref, atol=1e-3, rtol=1e-3)

    # --- bf16 compute / bf16 output path (HBM-writeback-optimized), loose tolerance ---
    msa_b, pair_b = input_embedder_forward(
        params, tf, ri, msa, relpos_k,
        compute_dtype=jnp.bfloat16, out_dtype=jnp.bfloat16,
        tile_i=32, tile_c=4)
    jax.block_until_ready((msa_b, pair_b))
    assert jnp.allclose(msa_b.astype(jnp.float32), msa_ref, atol=5e-2, rtol=5e-2)
    assert jnp.allclose(pair_b.astype(jnp.float32), pair_ref, atol=5e-2, rtol=5e-2)

    print("KERNEL_OK")
</pallas_src>

<mosaic_0001>
module attributes {stable_mosaic.version = 11 : i64} {
  func.func @_pair_kernel(%arg0: i32, %arg1: i32, %arg2: i32, %arg3: memref<1x32x1xf32, #tpu.memory_space<vmem>>, %arg4: memref<1x1x64xf32, #tpu.memory_space<vmem>>, %arg5: memref<1x64x22xf32, #tpu.memory_space<vmem>>, %arg6: memref<22x256xf32, #tpu.memory_space<vmem>>, %arg7: memref<1x256xf32, #tpu.memory_space<vmem>>, %arg8: memref<17x128xf32, #tpu.memory_space<vmem>>, %arg9: memref<1x32x64x128xf32, #tpu.memory_space<vmem>>, %arg10: memref<64x256xf32, #tpu.memory_space<vmem>>) attributes {dimension_semantics = [#tpu.dimension_semantics<parallel>, #tpu.dimension_semantics<arbitrary>, #tpu.dimension_semantics<arbitrary>], iteration_bounds = array<i64: 2, 2, 1>, scalar_prefetch = 0 : i64, scratch_operands = 1 : i64, tpu.core_type = #tpu.core_type<tc>, window_params = [{transform_indices = @transform_0, window_bounds = array<i64: 1, 32, 1>}, {transform_indices = @transform_1, window_bounds = array<i64: 1, 1, 64>}, {transform_indices = @transform_2, window_bounds = array<i64: 1, 64, 22>}, {pipeline_mode = #tpu.pipeline_mode<synchronous>, transform_indices = @transform_3, window_bounds = array<i64: 22, 256>}, {pipeline_mode = #tpu.pipeline_mode<synchronous>, transform_indices = @transform_4, window_bounds = array<i64: 1, 256>}, {pipeline_mode = #tpu.pipeline_mode<synchronous>, transform_indices = @transform_5, window_bounds = array<i64: 17, 128>}, {transform_indices = @transform_6, window_bounds = array<i64: 1, 32, 64, 128>}]} {
    %c0_i32 = arith.constant 0 : i32
    %0 = arith.cmpi eq, %arg1, %c0_i32 : i32
    %c0_i32_0 = arith.constant 0 : i32
    %1 = arith.cmpi eq, %arg2, %c0_i32_0 : i32
    %2 = arith.andi %0, %1 : i1
    %3 = arith.extui %2 : i1 to i32
    %c0_i32_1 = arith.constant 0 : i32
    %4 = arith.cmpi ne, %3, %c0_i32_1 : i32
    scf.if %4 {
      %c0_17 = arith.constant 0 : index
      %c0_18 = arith.constant 0 : index
      %c0_19 = arith.constant 0 : index
      %49 = vector.load %arg5[%c0_17, %c0_18, %c0_19] : memref<1x64x22xf32, #tpu.memory_space<vmem>>, vector<1x64x22xf32>
      %50 = vector.shape_cast %49 : vector<1x64x22xf32> to vector<64x22xf32>
      %c0_20 = arith.constant 0 : index
      %c0_21 = arith.constant 0 : index
      %51 = vector.load %arg6[%c0_20, %c0_21] : memref<22x256xf32, #tpu.memory_space<vmem>>, vector<22x256xf32>
      %cst_22 = arith.constant dense<0.000000e+00> : vector<64x256xf32>
      %52 = tpu.matmul %50, %51, %cst_22 {dimension_numbers = #tpu.dot_dimension_numbers<[1], [0], [0], [1], [0, 0, 1, 1], [], []>} : vector<64x22xf32>, vector<22x256xf32>, vector<64x256xf32> -> vector<64x256xf32>
      %c0_23 = arith.constant 0 : index
      %c0_24 = arith.constant 0 : index
      %53 = vector.load %arg7[%c0_23, %c0_24] : memref<1x256xf32, #tpu.memory_space<vmem>>, vector<1x256xf32>
      %54 = vector.broadcast %53 : vector<1x256xf32> to vector<64x256xf32>
      %55 = arith.addf %52, %54 : vector<64x256xf32>
      %c0_25 = arith.constant 0 : index
      %c0_26 = arith.constant 0 : index
      %56 = vector.load %arg10[%c0_25, %c0_26] : memref<64x256xf32, #tpu.memory_space<vmem>>, vector<64x256xf32>
      tpu.vector_store %arg10[%c0_25, %c0_26], %55 {strides = array<i32>} : memref<64x256xf32, #tpu.memory_space<vmem>>, vector<64x256xf32>,
    } else {
    }
    %c32_i32 = arith.constant 32 : i32
    %5 = arith.muli %arg1, %c32_i32 : i32
    %6 = tpu.assume_multiple %5, 8 : i32
    %7 = arith.index_cast %6 : i32 to index
    %c0 = arith.constant 0 : index
    %8 = vector.load %arg10[%7, %c0] : memref<64x256xf32, #tpu.memory_space<vmem>>, vector<32x128xf32>
    %c64_i32 = arith.constant 64 : i32
    %9 = arith.muli %arg2, %c64_i32 : i32
    %10 = tpu.assume_multiple %9, 8 : i32
    %11 = arith.index_cast %10 : i32 to index
    %c128 = arith.constant 128 : index
    %12 = vector.load %arg10[%11, %c128] : memref<64x256xf32, #tpu.memory_space<vmem>>, vector<64x128xf32>
    %c0_2 = arith.constant 0 : index
    %c0_3 = arith.constant 0 : index
    %c0_4 = arith.constant 0 : index
    %13 = vector.load %arg3[%c0_2, %c0_3, %c0_4] : memref<1x32x1xf32, #tpu.memory_space<vmem>>, vector<1x32x1xf32>
    %14 = vector.shape_cast %13 : vector<1x32x1xf32> to vector<32x1xf32>
    %c0_5 = arith.constant 0 : index
    %c0_6 = arith.constant 0 : index
    %c0_7 = arith.constant 0 : index
    %15 = vector.load %arg4[%c0_5, %c0_6, %c0_7] : memref<1x1x64xf32, #tpu.memory_space<vmem>>, vector<1x1x64xf32>
    %16 = vector.shape_cast %15 : vector<1x1x64xf32> to vector<1x64xf32>
    %17 = vector.broadcast %14 : vector<32x1xf32> to vector<32x64xf32>
    %18 = vector.broadcast %16 : vector<1x64xf32> to vector<32x64xf32>
    %19 = arith.subf %17, %18 : vector<32x64xf32>
    %cst = arith.constant 5.000000e-01 : f32
    %20 = vector.broadcast %cst : f32 to vector<32x64xf32>
    %21 = arith.subf %19, %20 : vector<32x64xf32>
    %22 = math.ceil %21 : vector<32x64xf32>
    %cst_8 = arith.constant -8.000000e+00 : f32
    %cst_9 = arith.constant 8.000000e+00 : f32
    %23 = vector.broadcast %cst_8 : f32 to vector<32x64xf32>
    %24 = arith.maximumf %23, %22 : vector<32x64xf32>
    %25 = vector.broadcast %cst_9 : f32 to vector<32x64xf32>
    %26 = arith.minimumf %25, %24 : vector<32x64xf32>
    %27 = arith.fptosi %26 : vector<32x64xf32> to vector<32x64xi32>
    %c8_i32 = arith.constant 8 : i32
    %28 = vector.broadcast %c8_i32 : i32 to vector<32x64xi32>
    %29 = arith.addi %27, %28 : vector<32x64xi32>
    %30 = tpu.iota {dimensions = array<i32: 2>} : vector<32x64x17xi32>
    %31 = vector.shape_cast %29 : vector<32x64xi32> to vector<32x64x1xi32>
    %32 = vector.broadcast %31 : vector<32x64x1xi32> to vector<32x64x17xi32>
    %33 = arith.cmpi eq, %30, %32 : vector<32x64x17xi32>
    %34 = arith.extui %33 : vector<32x64x17xi1> to vector<32x64x17xi32>
    %35 = arith.sitofp %34 : vector<32x64x17xi32> to vector<32x64x17xf32>
    %36 = vector.shape_cast %35 : vector<32x64x17xf32> to vector<2048x17xf32>
    %c0_10 = arith.constant 0 : index
    %c0_11 = arith.constant 0 : index
    %37 = vector.load %arg8[%c0_10, %c0_11] : memref<17x128xf32, #tpu.memory_space<vmem>>, vector<17x128xf32>
    %cst_12 = arith.constant dense<0.000000e+00> : vector<2048x128xf32>
    %38 = tpu.matmul %36, %37, %cst_12 {dimension_numbers = #tpu.dot_dimension_numbers<[1], [0], [0], [1], [0, 0, 1, 1], [], []>} : vector<2048x17xf32>, vector<17x128xf32>, vector<2048x128xf32> -> vector<2048x128xf32>
    %39 = vector.shape_cast %38 : vector<2048x128xf32> to vector<32x64x128xf32>
    %40 = vector.shape_cast %8 : vector<32x128xf32> to vector<32x1x128xf32>
    %41 = vector.broadcast %40 : vector<32x1x128xf32> to vector<32x64x128xf32>
    %42 = arith.addf %39, %41 : vector<32x64x128xf32>
    %43 = vector.shape_cast %12 : vector<64x128xf32> to vector<1x64x128xf32>
    %44 = vector.broadcast %43 : vector<1x64x128xf32> to vector<32x64x128xf32>
    %45 = arith.addf %42, %44 : vector<32x64x128xf32>
    %c0_13 = arith.constant 0 : index
    %c0_14 = arith.constant 0 : index
    %c0_15 = arith.constant 0 : index
    %c0_16 = arith.constant 0 : index
    %46 = vector.load %arg9[%c0_13, %c0_14, %c0_15, %c0_16] : memref<1x32x64x128xf32, #tpu.memory_space<vmem>>, vector<1x32x64x128xf32>
    %47 = vector.shape_cast %46 : vector<1x32x64x128xf32> to vector<32x64x128xf32>
    %48 = vector.shape_cast %45 : vector<32x64x128xf32> to vector<1x32x64x128xf32>
    tpu.vector_store %arg9[%c0_13, %c0_14, %c0_15, %c0_16], %48 {strides = array<i32>} : memref<1x32x64x128xf32, #tpu.memory_space<vmem>>, vector<1x32x64x128xf32>,
    return
  }
  func.func @transform_0(%arg0: i32, %arg1: i32, %arg2: i32) -> (i32, i32, i32) {
    %c0_i32 = arith.constant 0 : i32
    %c0_i32_0 = arith.constant 0 : i32
    return %arg0, %arg1, %c0_i32 : i32, i32, i32
  }
  func.func @transform_1(%arg0: i32, %arg1: i32, %arg2: i32) -> (i32, i32, i32) {
    %c0_i32 = arith.constant 0 : i32
    %c0_i32_0 = arith.constant 0 : i32
    return %arg0, %c0_i32, %arg2 : i32, i32, i32
  }
  func.func @transform_2(%arg0: i32, %arg1: i32, %arg2: i32) -> (i32, i32, i32) {
    %c0_i32 = arith.constant 0 : i32
    %c0_i32_0 = arith.constant 0 : i32
    %c0_i32_1 = arith.constant 0 : i32
    return %arg0, %c0_i32, %c0_i32_0 : i32, i32, i32
  }
  func.func @transform_3(%arg0: i32, %arg1: i32, %arg2: i32) -> (i32, i32) {
    %c0_i32 = arith.constant 0 : i32
    %c0_i32_0 = arith.constant 0 : i32
    %c0_i32_1 = arith.constant 0 : i32
    return %c0_i32, %c0_i32_0 : i32, i32
  }
  func.func @transform_4(%arg0: i32, %arg1: i32, %arg2: i32) -> (i32, i32) {
    %c0_i32 = arith.constant 0 : i32
    %c0_i32_0 = arith.constant 0 : i32
    %c0_i32_1 = arith.constant 0 : i32
    return %c0_i32, %c0_i32_0 : i32, i32
  }
  func.func @transform_5(%arg0: i32, %arg1: i32, %arg2: i32) -> (i32, i32) {
    %c0_i32 = arith.constant 0 : i32
    %c0_i32_0 = arith.constant 0 : i32
    %c0_i32_1 = arith.constant 0 : i32
    return %c0_i32, %c0_i32_0 : i32, i32
  }
  func.func @transform_6(%arg0: i32, %arg1: i32, %arg2: i32) -> (i32, i32, i32, i32) {
    %c0_i32 = arith.constant 0 : i32
    %c0_i32_0 = arith.constant 0 : i32
    return %arg0, %arg1, %arg2, %c0_i32 : i32, i32, i32, i32
  }
}

</mosaic_0001>

<llo_original>
// kernel: tpu_custom_call.1
$region0: #{tpu_custom_call.1}
  #allocation0 [shape = 'u32[]', space=smem, size = 0x4, offset = 0x4, fixed_abs, tag = 'smem constant byte address 0x4 - core index']
  #allocation1 [shape = 'u32[144,128]{1,0:T(1,128)}', space=vmem, size = 0x12000, scoped, tag = 'internal scratch']
  #allocation2 [shape = 'f32[64,256]{1,0:T(8,128)}', space=vmem, size = 0x10000, scoped, tag = 'scratch operand']
  %s0 = inlined_call_operand.vmem [shape: f32[2,64,1], index: 0, kind: input, shape index: {}]
  %s1 = inlined_call_operand.hbm [shape: f32[2,1,64], index: 1, kind: input, shape index: {}]
  %s2 = inlined_call_operand.vmem [shape: f32[2,64,22], index: 2, kind: input, shape index: {}]
  %s3 = inlined_call_operand.hbm [shape: f32[22,256], index: 3, kind: input, shape index: {}]
  %s4 = inlined_call_operand.hbm [shape: f32[1,256], index: 4, kind: input, shape index: {}]
  %s5 = inlined_call_operand.hbm [shape: f32[17,128], index: 5, kind: input, shape index: {}]
  %s6 = inlined_call_operand.hbm [shape: f32[2,64,64,128], index: 6, kind: output, shape index: {}]
  %s7 = sld [smem:[#allocation0]]
  $region77: #{tpu_custom_call.1} parent=0
    _
  %s9 = ssub.s32 1, %s7
  %s10 = scalar_select 0, %s9, %s7
  $region1: #{tpu_custom_call.1} parent=0
    #allocation3 [shape = 'u8[1024]{0}', space=vmem, size = 0x400, scoped, tag = 'input window, operand 1']
    #allocation4 [shape = 's32[2]{0}', space=sflag, size = 0x8, scoped, tag = 'scoped memory for tpu_custom_call.1']
    #allocation5 [shape = 's32[2]{0}', space=sflag, size = 0x8, scoped, tag = 'scoped memory for tpu_custom_call.1']
    #allocation6 [shape = 'u8[24576]{0}', space=vmem, size = 0x6000, scoped, tag = 'input window, operand 3, single buffered']
    #allocation7 [shape = 's32[1]{0}', space=sflag, size = 0x4, scoped, tag = 'scoped memory for tpu_custom_call.1']
    #allocation8 [shape = 'u8[1024]{0}', space=vmem, size = 0x400, scoped, tag = 'input window, operand 4, single buffered']
    #allocation9 [shape = 'u8[12288]{0}', space=vmem, size = 0x3000, scoped, tag = 'input window, operand 5, single buffered']
    #allocation10 [shape = 's32[1]{0}', space=sflag, size = 0x4, scoped, tag = 'scoped memory for tpu_custom_call.1']
    #allocation11 [shape = 'u8[2097152]{0}', space=vmem, size = 0x200000, scoped, tag = 'output window, operand 0']
    %11 = vsyncpa [#allocation4], 0
    %s12 = scalar_lea.sflag [#allocation4], 1
    %13 = vsyncpa %s12, 0
    %14 = vsyncpa [#allocation7], 0
    %15 = vsyncpa [#allocation10], 0
    %16 = vsyncpa [#allocation5], 0
    %s17 = scalar_lea.sflag [#allocation5], 1
    %18 = vsyncpa %s17, 0
    loop: start=0, step=1, limit=6
    $region2: #{tpu_custom_call.1} parent=1 // loop_pre_header
      _
    $region3: #{tpu_custom_call.1} parent=1 // loop_header
      %s20 = sphi 0, %s24
      %p21 = scmp.ge.s32.totalorder %s20, 6
      %s27 = sphi 0, %s46
      %s28 = sphi 0, %s42
      %s29 = sphi 0, %s38
      %s30 = sphi 0, %s27
      %s31 = sphi 0, %s28
      %s32 = sphi 0, %s29
      %s33 = sphi 0, %s30
      %s34 = sphi 0, %s31
      %s35 = sphi 0, %s32
      %s51 = sphi 0, %s53
      %s54 = sphi 0, %s51
      %s55 = sphi 0, %s54
      %s71 = sphi 0, %s55
      %s79 = sphi 0, %s81
      %s82 = sphi 0, %s79
      %s83 = sphi 0, %s82
      %s99 = sphi 0, %s83
      %s105 = sphi 0, %s107
      %s108 = sphi 0, %s105
      %s109 = sphi 0, %s108
      %s125 = sphi 0, %s109
      %s129 = sphi 0, %s129
      %s131 = sphi 0, %s129
      %s132 = sphi 0, %s131
      %s146 = sphi 0, %s132
      %s150 = sphi 0, %s150
      %s152 = sphi 0, %s150
      %s153 = sphi 0, %s152
      %s167 = sphi 0, %s153
      %s171 = sphi 0, %s171
      %s173 = sphi 0, %s171
      %s174 = sphi 0, %s173
      %s188 = sphi 0, %s174
      %s198 = sphi 0, %s200
      %s201 = sphi 0, %s198
      %s202 = sphi 0, %s201
      %s218 = sphi 0, %s202
    $region4: #{tpu_custom_call.1} parent=1 // loop_header_branch
      %23 = sbr.rel (%p21) target = $region8
    $region5: #{tpu_custom_call.1} parent=1 // loop_body
      %s25 = ssub.s32 %s20, 1
      %s26 = ssub.s32 %s20, 2
      %s36 = sadd.s32 1, %s29
      %p37 = scmp.ge.s32.totalorder %s36, 1
      %s38 = scalar_select %p37, 0, %s36
      %s39 = sadd.s32 1, %s28
      %s40 = scalar_select %p37, %s39, %s28
      %p41 = scmp.ge.s32.totalorder %s40, 2
      %s42 = scalar_select %p41, 0, %s40
      %s43 = sadd.s32 1, %s27
      %s44 = scalar_select %p41, %s43, %s27
      %p45 = scmp.ge.s32.totalorder %s44, 2
      %s46 = scalar_select %p45, 0, %s44
      %s47 = ssub.s32 %s27, %s46
      %s48 = ssub.s32 %s28, %s42
      %s49 = sor.u32 %s47, %s48
      %p50 = scmp.eq.s32.totalorder %s49, 0
      %s52 = sadd.s32 %s51, 1
      %s53 = scalar_select %p50, %s51, %s52
      %p56 = pneg %p50
      %p57 = scmp.eq.s32.totalorder %s20, 3
      %p58 = por %p56, %p57
      %p59 = scmp.ne.s32.totalorder %s51, %s54
      %p60 = scmp.eq.s32.totalorder %s20, 0
      %p61 = por %p59, %p60
      %p62 = scmp.ne.s32.totalorder %s51, %s54
      %p63 = scmp.eq.s32.totalorder %s25, 3
      %p64 = por %p62, %p63
      %p65 = scmp.ne.s32.totalorder %s54, %s55
      %p66 = scmp.eq.s32.totalorder %s25, 0
      %p67 = por %p65, %p66
      %p68 = scmp.ne.s32.totalorder %s54, %s55
      %p69 = scmp.eq.s32.totalorder %s26, 3
      %p70 = por %p68, %p69
      %p72 = scmp.ne.s32.totalorder %s55, %s71
      %p73 = scmp.eq.s32.totalorder %s26, 0
      %p74 = por %p72, %p73
      %s75 = ssub.s32 %s27, %s46
      %s76 = ssub.s32 %s29, %s38
      %s77 = sor.u32 %s75, %s76
      %p78 = scmp.eq.s32.totalorder %s77, 0
      %s80 = sadd.s32 %s79, 1
      %s81 = scalar_select %p78, %s79, %s80
      %p84 = pneg %p78
      %p85 = scmp.eq.s32.totalorder %s20, 3
      %p86 = por %p84, %p85
      %p87 = scmp.ne.s32.totalorder %s79, %s82
      %p88 = scmp.eq.s32.totalorder %s20, 0
      %p89 = por %p87, %p88
      %p90 = scmp.ne.s32.totalorder %s79, %s82
      %p91 = scmp.eq.s32.totalorder %s25, 3
      %p92 = por %p90, %p91
      %p93 = scmp.ne.s32.totalorder %s82, %s83
      %p94 = scmp.eq.s32.totalorder %s25, 0
      %p95 = por %p93, %p94
      %p96 = scmp.ne.s32.totalorder %s82, %s83
      %p97 = scmp.eq.s32.totalorder %s26, 3
      %p98 = por %p96, %p97
      %p100 = scmp.ne.s32.totalorder %s83, %s99
      %p101 = scmp.eq.s32.totalorder %s26, 0
      %p102 = por %p100, %p101
      %s103 = ssub.s32 %s27, %s46
      %p104 = scmp.eq.s32.totalorder %s103, 0
      %s106 = sadd.s32 %s105, 1
      %s107 = scalar_select %p104, %s105, %s106
      %p110 = pneg %p104
      %p111 = scmp.eq.s32.totalorder %s20, 3
      %p112 = por %p110, %p111
      %p113 = scmp.ne.s32.totalorder %s105, %s108
      %p114 = scmp.eq.s32.totalorder %s20, 0
      %p115 = por %p113, %p114
      %p116 = scmp.ne.s32.totalorder %s105, %s108
      %p117 = scmp.eq.s32.totalorder %s25, 3
      %p118 = por %p116, %p117
      %p119 = scmp.ne.s32.totalorder %s108, %s109
      %p120 = scmp.eq.s32.totalorder %s25, 0
      %p121 = por %p119, %p120
      %p122 = scmp.ne.s32.totalorder %s108, %s109
      %p123 = scmp.eq.s32.totalorder %s26, 3
      %p124 = por %p122, %p123
      %p126 = scmp.ne.s32.totalorder %s109, %s125
      %p127 = scmp.eq.s32.totalorder %s26, 0
      %p128 = por %p126, %p127
      %s130 = sadd.s32 %s129, 1
      %p133 = scmp.eq.s32.totalorder %s20, 3
      %p134 = scmp.ne.s32.totalorder %s129, %s131
      %p135 = scmp.eq.s32.totalorder %s20, 0
      %p136 = por %p134, %p135
      %p137 = scmp.ne.s32.totalorder %s129, %s131
      %p138 = scmp.eq.s32.totalorder %s25, 3
      %p139 = por %p137, %p138
      %p140 = scmp.ne.s32.totalorder %s131, %s132
      %p141 = scmp.eq.s32.totalorder %s25, 0
      %p142 = por %p140, %p141
      %p143 = scmp.ne.s32.totalorder %s131, %s132
      %p144 = scmp.eq.s32.totalorder %s26, 3
      %p145 = por %p143, %p144
      %p147 = scmp.ne.s32.totalorder %s132, %s146
      %p148 = scmp.eq.s32.totalorder %s26, 0
      %p149 = por %p147, %p148
      %s151 = sadd.s32 %s150, 1
      %p154 = scmp.eq.s32.totalorder %s20, 3
      %p155 = scmp.ne.s32.totalorder %s150, %s152
      %p156 = scmp.eq.s32.totalorder %s20, 0
      %p157 = por %p155, %p156
      %p158 = scmp.ne.s32.totalorder %s150, %s152
      %p159 = scmp.eq.s32.totalorder %s25, 3
      %p160 = por %p158, %p159
      %p161 = scmp.ne.s32.totalorder %s152, %s153
      %p162 = scmp.eq.s32.totalorder %s25, 0
      %p163 = por %p161, %p162
      %p164 = scmp.ne.s32.totalorder %s152, %s153
      %p165 = scmp.eq.s32.totalorder %s26, 3
      %p166 = por %p164, %p165
      %p168 = scmp.ne.s32.totalorder %s153, %s167
      %p169 = scmp.eq.s32.totalorder %s26, 0
      %p170 = por %p168, %p169
      %s172 = sadd.s32 %s171, 1
      %p175 = scmp.eq.s32.totalorder %s20, 3
      %p176 = scmp.ne.s32.totalorder %s171, %s173
      %p177 = scmp.eq.s32.totalorder %s20, 0
      %p178 = por %p176, %p177
      %p179 = scmp.ne.s32.totalorder %s171, %s173
      %p180 = scmp.eq.s32.totalorder %s25, 3
      %p181 = por %p179, %p180
      %p182 = scmp.ne.s32.totalorder %s173, %s174
      %p183 = scmp.eq.s32.totalorder %s25, 0
      %p184 = por %p182, %p183
      %p185 = scmp.ne.s32.totalorder %s173, %s174
      %p186 = scmp.eq.s32.totalorder %s26, 3
      %p187 = por %p185, %p186
      %p189 = scmp.ne.s32.totalorder %s174, %s188
      %p190 = scmp.eq.s32.totalorder %s26, 0
      %p191 = por %p189, %p190
      %s192 = ssub.s32 %s27, %s46
      %s193 = ssub.s32 %s28, %s42
      %s194 = sor.u32 %s192, %s193
      %s195 = ssub.s32 %s29, %s38
      %s196 = sor.u32 %s194, %s195
      %p197 = scmp.eq.s32.totalorder %s196, 0
      %s199 = sadd.s32 %s198, 1
      %s200 = scalar_select %p197, %s198, %s199
      %p203 = pneg %p197
      %p204 = scmp.eq.s32.totalorder %s20, 3
      %p205 = por %p203, %p204
      %p206 = scmp.ne.s32.totalorder %s198, %s201
      %p207 = scmp.eq.s32.totalorder %s20, 0
      %p208 = por %p206, %p207
      %p209 = scmp.ne.s32.totalorder %s198, %s201
      %p210 = scmp.eq.s32.totalorder %s25, 3
      %p211 = por %p209, %p210
      %p212 = scmp.ne.s32.totalorder %s201, %s202
      %p213 = scmp.eq.s32.totalorder %s25, 0
      %p214 = por %p212, %p213
      %p215 = scmp.ne.s32.totalorder %s201, %s202
      %p216 = scmp.eq.s32.totalorder %s26, 3
      %p217 = por %p215, %p216
      %p219 = scmp.ne.s32.totalorder %s202, %s218
      %p220 = scmp.eq.s32.totalorder %s26, 0
      %p221 = por %p219, %p220
      %p222 = scmp.le.s32.totalorder 1, %s20
      %p223 = scmp.lt.s32.totalorder %s20, 5
      %p224 = pnand %p222, %p223
      %p225 = pneg %p224
      // Predicated region
      $region9: #{tpu_custom_call.1} parent=5 // pred_check
        _
      $region10: #{tpu_custom_call.1} parent=5 // pred_check_branch
        %227 = sbr.rel (%p224) target = $region12
      $region11: #{tpu_custom_call.1} parent=5 // pred_region
        %s228 = ssub.s32 %s20, 1
        // Predicated region
        $region13: #{tpu_custom_call.1} parent=11 // pred_check
          %p229 = pneg %p142
        $region14: #{tpu_custom_call.1} parent=11 // pred_check_branch
          %231 = sbr.rel (%p229) target = $region16
        $region15: #{tpu_custom_call.1} parent=11 // pred_region
          %s233 = ssub.s32 768, 768
          %234 = vsyncadd [#allocation7], %s233
          %s235 = sshll.u32 [#allocation6], 4
          %s236 = int_to_ptr.vmem [resolvable:$true] %s235
          %241 = dma.hbm_to_vmem [thread:$0]  %s3, 768, %s236, [#allocation7], 256, 256, 16
        $region16: #{tpu_custom_call.1} parent=11 // pred_fallthru
          _
        // Predicated region
        $region17: #{tpu_custom_call.1} parent=11 // pred_check
          %p242 = pneg %p163
        $region18: #{tpu_custom_call.1} parent=11 // pred_check_branch
          %244 = sbr.rel (%p242) target = $region20
        $region19: #{tpu_custom_call.1} parent=11 // pred_region
          %s246 = ssub.s32 32, 32
          %247 = vsyncadd [#allocation7], %s246
          %s249 = sshll.u32 [#allocation8], 4
          %s250 = int_to_ptr.vmem [resolvable:$true] %s249
          %252 = dma.hbm_to_vmem [thread:$0]  %s4, 32, %s250, [#allocation7]
        $region20: #{tpu_custom_call.1} parent=11 // pred_fallthru
          _
        // Predicated region
        $region21: #{tpu_custom_call.1} parent=11 // pred_check
          %p253 = pneg %p184
        $region22: #{tpu_custom_call.1} parent=11 // pred_check_branch
          %255 = sbr.rel (%p253) target = $region24
        $region23: #{tpu_custom_call.1} parent=11 // pred_region
          %s257 = ssub.s32 384, 384
          %258 = vsyncadd [#allocation10], %s257
          %s259 = sshll.u32 [#allocation9], 4
          %s260 = int_to_ptr.vmem [resolvable:$true] %s259
          %265 = dma.hbm_to_vmem [thread:$0]  %s5, 384, %s260, [#allocation10], 128, 128, 8
        $region24: #{tpu_custom_call.1} parent=11 // pred_fallthru
          _
      $region12: #{tpu_custom_call.1} parent=5 // pred_fallthru
        _
      %p266 = scmp.lt.s32.totalorder %s20, 4
      // Predicated region
      $region25: #{tpu_custom_call.1} parent=5 // pred_check
        %p267 = pneg %p266
      $region26: #{tpu_custom_call.1} parent=5 // pred_check_branch
        %269 = sbr.rel (%p267) target = $region28
      $region27: #{tpu_custom_call.1} parent=5 // pred_region
        // Predicated region
        $region29: #{tpu_custom_call.1} parent=27 // pred_check
          %p270 = pneg %p61
        $region30: #{tpu_custom_call.1} parent=27 // pred_check_branch
          %272 = sbr.rel (%p270) target = $region32
        $region31: #{tpu_custom_call.1} parent=27 // pred_region
          %s273 = smul.u32 4, %s28
          %p274 = scmp.lt.s32.totalorder %s27, 1
          %s275 = scalar_select %p274, %s27, 1
          %p276 = scmp.lt.s32.totalorder %s273, 7
          %s277 = scalar_select %p276, %s273, 7
          %s278 = smul.addr %s275, 8
          %s279 = sadd.s32 %s277, %s278
          %s280 = smul.addr %s279, 8
          %s281 = scalar_lea.vmem %s0, %s280
          %s282 = smul.u32 4, %s28
        $region32: #{tpu_custom_call.1} parent=27 // pred_fallthru
          _
        // Predicated region
        $region33: #{tpu_custom_call.1} parent=27 // pred_check
          %p283 = pneg %p89
        $region34: #{tpu_custom_call.1} parent=27 // pred_check_branch
          %285 = sbr.rel (%p283) target = $region36
        $region35: #{tpu_custom_call.1} parent=27 // pred_region
          %s286 = sand.u32 %s79, 1
          %s287 = scalar_lea.sflag [#allocation4], %s286
          %s288 = sand.u32 %s79, 1
          %s289 = scalar_lea.vmem [#allocation3], %s288
          %s291 = ssub.s32 16, 16
          %292 = vsyncadd %s287, %s291
          %s293 = sadd.s32 %s29, %s27
          %s294 = smul.addr %s293, 16
          %s295 = scalar_lea.hbm %s1, %s294
          %s297 = sshll.u32 %s289, 4
          %s298 = int_to_ptr.vmem [resolvable:$true] %s297
          %300 = dma.hbm_to_vmem [thread:$0]  %s295, 16, %s298, %s287
        $region36: #{tpu_custom_call.1} parent=27 // pred_fallthru
          _
        // Predicated region
        $region37: #{tpu_custom_call.1} parent=27 // pred_check
          %p301 = pneg %p115
        $region38: #{tpu_custom_call.1} parent=27 // pred_check_branch
          %303 = sbr.rel (%p301) target = $region40
        $region39: #{tpu_custom_call.1} parent=27 // pred_region
          %p304 = scmp.lt.s32.totalorder %s27, 1
          %s305 = scalar_select %p304, %s27, 1
          %s306 = smul.addr %s305, 8
          %s307 = smul.addr %s306, 8
          %s308 = scalar_lea.vmem %s2, %s307
        $region40: #{tpu_custom_call.1} parent=27 // pred_fallthru
          _
      $region28: #{tpu_custom_call.1} parent=5 // pred_fallthru
        _
      %p309 = scmp.le.s32.totalorder 1, %s20
      %p310 = scmp.lt.s32.totalorder %s20, 5
      %p311 = pnand %p309, %p310
      %p312 = pneg %p311
      // Predicated region
      $region41: #{tpu_custom_call.1} parent=5 // pred_check
        _
      $region42: #{tpu_custom_call.1} parent=5 // pred_check_branch
        %314 = sbr.rel (%p311) target = $region44
      $region43: #{tpu_custom_call.1} parent=5 // pred_region
        %s315 = ssub.s32 %s20, 1
        %s316 = sand.u32 %s82, 1
        %s317 = scalar_lea.sflag [#allocation4], %s316
        %s318 = sand.u32 %s82, 1
        %s319 = scalar_lea.vmem [#allocation3], %s318
        // Predicated region
        $region45: #{tpu_custom_call.1} parent=43 // pred_check
          %p320 = pneg %p95
        $region46: #{tpu_custom_call.1} parent=43 // pred_check_branch
          %322 = sbr.rel (%p320) target = $region48
        $region47: #{tpu_custom_call.1} parent=43 // pred_region
          %323 = dma.done %s317, 16
        $region48: #{tpu_custom_call.1} parent=43 // pred_fallthru
          _
        // Predicated region
        $region49: #{tpu_custom_call.1} parent=43 // pred_check
          %p324 = pneg %p142
        $region50: #{tpu_custom_call.1} parent=43 // pred_check_branch
          %326 = sbr.rel (%p324) target = $region52
        $region51: #{tpu_custom_call.1} parent=43 // pred_region
          %327 = dma.done [#allocation7], 768
        $region52: #{tpu_custom_call.1} parent=43 // pred_fallthru
          _
        // Predicated region
        $region53: #{tpu_custom_call.1} parent=43 // pred_check
          %p328 = pneg %p163
        $region54: #{tpu_custom_call.1} parent=43 // pred_check_branch
          %330 = sbr.rel (%p328) target = $region56
        $region55: #{tpu_custom_call.1} parent=43 // pred_region
          %331 = dma.done [#allocation7], 32
        $region56: #{tpu_custom_call.1} parent=43 // pred_fallthru
          _
        // Predicated region
        $region57: #{tpu_custom_call.1} parent=43 // pred_check
          %p332 = pneg %p184
        $region58: #{tpu_custom_call.1} parent=43 // pred_check_branch
          %334 = sbr.rel (%p332) target = $region60
        $region59: #{tpu_custom_call.1} parent=43 // pred_region
          %335 = dma.done [#allocation10], 384
        $region60: #{tpu_custom_call.1} parent=43 // pred_fallthru
          _
        %s336 = smul.u32 4, %s31
        %p337 = scmp.lt.s32.totalorder %s30, 1
        %s338 = scalar_select %p337, %s30, 1
        %p339 = scmp.lt.s32.totalorder %s336, 7
        %s340 = scalar_select %p339, %s336, 7
        %s341 = smul.addr %s338, 8
        %s342 = sadd.s32 %s340, %s341
        %s343 = smul.addr %s342, 8
        %s344 = scalar_lea.vmem %s0, %s343
        %p345 = pneg %p67
        %p346 = pneg %p64
        %s347 = sand.u32 %s82, 1
        %s348 = scalar_lea.sflag [#allocation4], %s347
        %s349 = sand.u32 %s82, 1
        %s350 = scalar_lea.vmem [#allocation3], %s349
        %p351 = pneg %p95
        %p352 = pneg %p92
        %p353 = scmp.lt.s32.totalorder %s30, 1
        %s354 = scalar_select %p353, %s30, 1
        %s355 = smul.addr %s354, 8
        %s356 = smul.addr %s355, 8
        %s357 = scalar_lea.vmem %s2, %s356
        %p358 = pneg %p121
        %p359 = pneg %p118
        %p360 = pneg %p142
        %p361 = pneg %p139
        %p362 = pneg %p163
        %p363 = pneg %p160
        %p364 = pneg %p184
        %p365 = pneg %p181
        %p366 = pneg %p214
        %p367 = pneg %p211
        %s368 = sand.u32 %s201, 1
        %s369 = scalar_lea.sflag [#allocation5], %s368
        %s370 = sand.u32 %s201, 1
        %s371 = smul.addr %s370, 2048
        %s372 = scalar_lea.vmem [#allocation11], %s371
        %s373 = smul.u32 4, %s31
        %p374 = scmp.lt.s32.totalorder %s30, 1
        %s375 = scalar_select %p374, %s30, 1
        %p376 = scmp.lt.s32.totalorder %s373, 7
        %s377 = scalar_select %p376, %s373, 7
        %s378 = smul.addr %s375, 8
        %s379 = sadd.s32 %s377, %s378
        %s380 = smul.addr %s379, 8
        %s381 = scalar_lea.vmem %s0, %s380
        %s382 = smul.u32 4, %s31
        %p383 = scmp.lt.s32.totalorder %s30, 1
        %s384 = scalar_select %p383, %s30, 1
        %s385 = smul.addr %s384, 8
        %s386 = smul.addr %s385, 8
        %s387 = scalar_lea.vmem %s2, %s386
        %s388 = smul.u32 32, %s31
        %s389 = smul.u32 8, %s32
        %p390 = scmp.eq.s32.totalorder %s31, 0
        %p391 = scmp.eq.s32.totalorder %s32, 0
        %p392 = pnand %p390, %p391
        %p393 = pneg %p392
        // Predicated region
        $region61: #{tpu_custom_call.1} parent=43 // pred_check
          _
        $region62: #{tpu_custom_call.1} parent=43 // pred_check_branch
          %395 = sbr.rel (%p392) target = $region64
        $region63: #{tpu_custom_call.1} parent=43 // pred_region
          %v396 = vld [vmem:[%s387] sm:$0xff]
          %v397 = vld [vmem:[%s387 + $0x8] sm:$0xff]
          %v398 = vld [vmem:[%s387 + $0x10] sm:$0xff]
          %v399 = vld [vmem:[%s387 + $0x18] sm:$0xff]
          %v400 = vld [vmem:[%s387 + $0x20] sm:$0xff]
          %v401 = vld [vmem:[%s387 + $0x28] sm:$0xff]
          %v402 = vld [vmem:[%s387 + $0x30] sm:$0xff]
          %v403 = vld [vmem:[%s387 + $0x38] sm:$0xff]
          %v404 = vld [vmem:[#allocation6] sm:$0xff]
          %v405 = vld [vmem:[#allocation6 + $0x8] sm:$0xff]
          %v406 = vld [vmem:[#allocation6 + $0x10] sm:$0xff]
          %v407 = vld [vmem:[#allocation6 + $0x18] sm:$0xff]
          %v408 = vld [vmem:[#allocation6 + $0x20] sm:$0x3f]
          %v409 = vld [vmem:[#allocation6 + $0x28] sm:$0x3f]
          %v410 = vld [vmem:[#allocation8] sm:$0x3]
          %v412 = vlaneseq
          %v413 = vshrl.u32 %v412, 7
          %v414 = vsub.s32 0, %v413
          %v415 = vrot.slane %v410, %v414
          %v416 = vlaneseq
          %v417 = vshrl.u32 %v416, 7
          %v418 = vsub.s32 1, %v417
          %v419 = vrot.slane %v410, %v418
          %vm422 = vcmask 179200
          %v424 = vsel %vm422, %v396, 0
          %v427 = vsel %vm422, %v397, 0
          %v430 = vsel %vm422, %v398, 0
          %v433 = vsel %vm422, %v399, 0
          %v436 = vsel %vm422, %v400, 0
          %v439 = vsel %vm422, %v401, 0
          %v442 = vsel %vm422, %v402, 0
          %v445 = vsel %vm422, %v403, 0
          %vm447 = vcmask 1045504
          %v449 = vsel %vm447, %v408, 0
          %v452 = vsel %vm447, %v409, 0
          %454 = vmatprep.subr.mxu0 %v405
          %455 = vmatpush1.msra.mxu0 %v404
          %456 = vmatprep.subr.mxu0 %v407
          %457 = vmatpush1.msra.mxu0 %v406
          %458 = vmatprep.subr.mxu0 %v452
          %459 = vmatpush1.msra.mxu0 %v449
          %460 = vmatprep.subr.mxu0 0.0
          %461 = vmatpush1.msra.mxu0 0.0
          %462 = vmatprep.subr.mxu0 0.0
          %463 = vmatpush1.msra.mxu0 0.0
          %464 = vmatprep.subr.mxu0 0.0
          %465 = vmatpush1.msra.mxu0 0.0
          %466 = vmatprep.subr.mxu0 0.0
          %467 = vmatpush1.msra.mxu0 0.0
          %468 = vmatprep.subr.mxu0 0.0
          %469 = vmatpush1.msra.mxu0 0.0
          %470 = vmatprep.subr.mxu0 0.0
          %471 = vmatpush1.msra.mxu0 0.0
          %472 = vmatprep.subr.mxu0 0.0
          %473 = vmatpush1.msra.mxu0 0.0
          %474 = vmatprep.subr.mxu0 0.0
          %475 = vmatpush1.msra.mxu0 0.0
          %476 = vmatprep.subr.mxu0 0.0
          %477 = vmatpush1.msra.mxu0 0.0
          %478 = vmatprep.subr.mxu0 0.0
          %479 = vmatpush1.msra.mxu0 0.0
          %480 = vmatprep.subr.mxu0 0.0
          %481 = vmatpush1.msra.mxu0 0.0
          %482 = vmatprep.subr.mxu0 0.0
          %483 = vmatpush1.msra.mxu0 0.0
          %484 = vmatprep.subr.mxu0 0.0
          %485 = vmatpush1.msra.mxu0 0.0
          %486 = vmatprep.subr.mxu0 0.0
          %487 = vmatpush1.msra.mxu0 0.0
          %488 = vmatprep.subr.mxu0 0.0
          %489 = vmatpush1.msra.mxu0 0.0
          %490 = vmatprep.subr.mxu0 0.0
          %491 = vmatpush1.msra.mxu0 0.0
          %492 = vmatprep.subr.mxu0 0.0
          %493 = vmatpush1.msra.mxu0 0.0
          %494 = vmatprep.subr.mxu0 0.0
          %495 = vmatpush1.msra.mxu0 0.0
          %496 = vmatprep.subr.mxu0 0.0
          %497 = vmatpush1.msra.mxu0 0.0
          %498 = vmatprep.subr.mxu0 0.0
          %499 = vmatpush1.msra.mxu0 0.0
          %500 = vmatprep.subr.mxu0 0.0
          %501 = vmatpush1.msra.mxu0 0.0
          %502 = vmatprep.subr.mxu0 0.0
          %503 = vmatpush1.msra.mxu0 0.0
          %504 = vmatprep.subr.mxu0 0.0
          %505 = vmatpush1.msra.mxu0 0.0
          %506 = vmatprep.subr.mxu0 0.0
          %507 = vmatpush1.msra.mxu0 0.0
          %508 = vmatprep.subr.mxu0 0.0
          %509 = vmatpush1.msra.mxu0 0.0
          %510 = vmatprep.subr.mxu0 0.0
          %511 = vmatpush1.msra.mxu0 0.0
          %512 = vmatprep.subr.mxu0 0.0
          %513 = vmatpush1.msra.mxu0 0.0
          %514 = vmatprep.subr.mxu0 0.0
          %515 = vmatpush1.msra.mxu0 0.0
          %516 = vmatprep.subr.mxu0 0.0
          %517 = vmatpush1.msra.mxu0 0.0
          %518 = vmatprep.mubr.f32.mxu0 0.0
          %519 = vmatmul.mubr.f32.gmra.mrb[0].mxu0 %v424
          %v520 = vpop.f32.mrb[0].mxu0
          %v521 = vadd.f32 %v415, %v520
          %v522 = vpop.f32.mrb[0].mxu0
          %v523 = vadd.f32 %v419, %v522
          %524 = vmatprep.mubr.f32.mxu0 0.0
          %525 = vmatmul.mubr.f32.gmra.mrb[0].mxu0 %v427
          %v526 = vpop.f32.mrb[0].mxu0
          %v527 = vadd.f32 %v415, %v526
          %v528 = vpop.f32.mrb[0].mxu0
          %v529 = vadd.f32 %v419, %v528
          %530 = vmatprep.mubr.f32.mxu0 0.0
          %531 = vmatmul.mubr.f32.gmra.mrb[0].mxu0 %v430
          %v532 = vpop.f32.mrb[0].mxu0
          %v533 = vadd.f32 %v415, %v532
          %v534 = vpop.f32.mrb[0].mxu0
          %v535 = vadd.f32 %v419, %v534
          %536 = vmatprep.mubr.f32.mxu0 0.0
          %537 = vmatmul.mubr.f32.gmra.mrb[0].mxu0 %v433
          %v538 = vpop.f32.mrb[0].mxu0
          %v539 = vadd.f32 %v415, %v538
          %v540 = vpop.f32.mrb[0].mxu0
          %v541 = vadd.f32 %v419, %v540
          %542 = vmatprep.mubr.f32.mxu0 0.0
          %543 = vmatmul.mubr.f32.gmra.mrb[0].mxu0 %v436
          %v544 = vpop.f32.mrb[0].mxu0
          %v545 = vadd.f32 %v415, %v544
          %v546 = vpop.f32.mrb[0].mxu0
          %v547 = vadd.f32 %v419, %v546
          %548 = vmatprep.mubr.f32.mxu0 0.0
          %549 = vmatmul.mubr.f32.gmra.mrb[0].mxu0 %v439
          %v550 = vpop.f32.mrb[0].mxu0
          %v551 = vadd.f32 %v415, %v550
          %v552 = vpop.f32.mrb[0].mxu0
          %v553 = vadd.f32 %v419, %v552
          %554 = vmatprep.mubr.f32.mxu0 0.0
          %555 = vmatmul.mubr.f32.gmra.mrb[0].mxu0 %v442
          %v556 = vpop.f32.mrb[0].mxu0
          %v557 = vadd.f32 %v415, %v556
          %v558 = vpop.f32.mrb[0].mxu0
          %v559 = vadd.f32 %v419, %v558
          %560 = vmatprep.mubr.f32.mxu0 0.0
          %561 = vmatmul.mubr.f32.gmra.mrb[0].mxu0 %v445
          %v562 = vpop.f32.mrb[0].mxu0
          %v563 = vadd.f32 %v415, %v562
          %v564 = vpop.f32.mrb[0].mxu0
          %v565 = vadd.f32 %v419, %v564
          %566 = vdwg.mxu0
          %567 = vst [vmem:[#allocation2] sm:$0xff] %v521
          %568 = vst [vmem:[#allocation2 + $0x8] sm:$0xff] %v523
          %569 = vst [vmem:[#allocation2 + $0x10] sm:$0xff] %v527
          %570 = vst [vmem:[#allocation2 + $0x18] sm:$0xff] %v529
          %571 = vst [vmem:[#allocation2 + $0x20] sm:$0xff] %v533
          %572 = vst [vmem:[#allocation2 + $0x28] sm:$0xff] %v535
          %573 = vst [vmem:[#allocation2 + $0x30] sm:$0xff] %v539
          %574 = vst [vmem:[#allocation2 + $0x38] sm:$0xff] %v541
          %575 = vst [vmem:[#allocation2 + $0x40] sm:$0xff] %v545
          %576 = vst [vmem:[#allocation2 + $0x48] sm:$0xff] %v547
          %577 = vst [vmem:[#allocation2 + $0x50] sm:$0xff] %v551
          %578 = vst [vmem:[#allocation2 + $0x58] sm:$0xff] %v553
          %579 = vst [vmem:[#allocation2 + $0x60] sm:$0xff] %v557
          %580 = vst [vmem:[#allocation2 + $0x68] sm:$0xff] %v559
          %581 = vst [vmem:[#allocation2 + $0x70] sm:$0xff] %v563
          %582 = vst [vmem:[#allocation2 + $0x78] sm:$0xff] %v565
        $region64: #{tpu_custom_call.1} parent=43 // pred_fallthru
          _
        %s583 = smul.u32 %s31, 32
        %s584 = sshra.s32 %s583, 3
        %s585 = sand.u32 %s583, 7
        %s586 = smul.u32 %s584, 2
        %s587 = smul.addr %s586, 8
        %s588 = scalar_lea.vmem [#allocation2], %s587
        %v589 = vld [vmem:[%s588] sm:$0xff]
        %v590 = vld [vmem:[%s588 + $0x10] sm:$0xff]
        %v591 = vld [vmem:[%s588 + $0x20] sm:$0xff]
        %v592 = vld [vmem:[%s588 + $0x30] sm:$0xff]
        %s593 = smul.u32 %s32, 64
        %s594 = sshra.s32 %s593, 3
        %s595 = sand.u32 %s593, 7
        %s596 = smul.u32 %s594, 2
        %s597 = smul.addr %s596, 8
        %s598 = scalar_lea.vmem [#allocation2], %s597
        %v599 = vld [vmem:[%s598 + $0x8] sm:$0xff]
        %v600 = vld [vmem:[%s598 + $0x18] sm:$0xff]
        %v601 = vld [vmem:[%s598 + $0x28] sm:$0xff]
        %v602 = vld [vmem:[%s598 + $0x38] sm:$0xff]
        %v603 = vld [vmem:[%s598 + $0x48] sm:$0xff]
        %v604 = vld [vmem:[%s598 + $0x58] sm:$0xff]
        %v605 = vld [vmem:[%s598 + $0x68] sm:$0xff]
        %v606 = vld [vmem:[%s598 + $0x78] sm:$0xff]
        %v607 = vld [vmem:[%s381] sm:$0xff]
        %v608 = vld [vmem:[%s381 + $0x8] sm:$0xff]
        %v609 = vld [vmem:[%s381 + $0x10] sm:$0xff]
        %v610 = vld [vmem:[%s381 + $0x18] sm:$0xff]
        %v611 = vld [vmem:[%s319] sm:$0x1]
        %613 = vset.pattern.permute.xlu0 0
        %614 = vperm.xlu0 %613, %v607
        %v615 = vpop.permute.xlu0 %614
        %618 = vset.pattern.permute.xlu0 0
        %619 = vperm.xlu0 %618, %v608
        %v620 = vpop.permute.xlu0 %619
        %623 = vset.pattern.permute.xlu0 0
        %624 = vperm.xlu0 %623, %v609
        %v625 = vpop.permute.xlu0 %624
        %628 = vset.pattern.permute.xlu0 0
        %629 = vperm.xlu0 %628, %v610
        %v630 = vpop.permute.xlu0 %629
        %v633 = vlaneseq
        %v634 = vshrl.u32 %v633, 7
        %v635 = vsub.s32 0, %v634
        %v636 = vrot.slane %v611, %v635
        %v638 = vsub.f32 %v615, %v636
        %v639 = vsub.f32 %v620, %v636
        %v640 = vsub.f32 %v625, %v636
        %v641 = vsub.f32 %v630, %v636
        %v642 = vsub.f32 %v638, 0.5
        %v643 = vsub.f32 %v639, 0.5
        %v644 = vsub.f32 %v640, 0.5
        %v645 = vsub.f32 %v641, 0.5
        %v646 = vceil.f32 %v642
        %v647 = vceil.f32 %v643
        %v648 = vceil.f32 %v644
        %v649 = vceil.f32 %v645
        %v650 = vmax.f32 %v646, -8.0
        %v651 = vmax.f32 %v647, -8.0
        %v652 = vmax.f32 %v648, -8.0
        %v653 = vmax.f32 %v649, -8.0
        %v654 = vmin.f32 %v650, 8.0
        %v655 = vmin.f32 %v651, 8.0
        %v656 = vmin.f32 %v652, 8.0
        %v657 = vmin.f32 %v653, 8.0
        %v658 = vcvt.f32.s32.to.zero.pseudo %v654
        %v659 = vcvt.f32.s32.to.zero.pseudo %v655
        %v660 = vcvt.f32.s32.to.zero.pseudo %v656
        %v661 = vcvt.f32.s32.to.zero.pseudo %v657
        %v662 = vadd.s32 %v658, 8
        %v663 = vadd.s32 %v659, 8
        %v664 = vadd.s32 %v660, 8
        %v665 = vadd.s32 %v661, 8
        %v666 = vlaneseq
        %v667 = vand.u32 %v666, 127
        %v668 = vlaneseq
        %v669 = vshrl.u32 %v668, 7
        %v670 = vsub.s32 0, %v669
        %v671 = vrot.slane %v662, %v670
        %673 = vbcast.lane.b32.xlu0 %v671, 256
        %v674 = vpop.permute.xlu0 %673
        %s676 = sor.u32 256, 8
        %677 = vbcast.lane.b32.xlu0 %v671, %s676
        %v678 = vpop.permute.xlu0 %677
        %s680 = sor.u32 256, 16
        %681 = vbcast.lane.b32.xlu0 %v671, %s680
        %v682 = vpop.permute.xlu0 %681
        %s684 = sor.u32 256, 24
        %685 = vbcast.lane.b32.xlu0 %v671, %s684
        %v686 = vpop.permute.xlu0 %685
        %s688 = sor.u32 256, 32
        %689 = vbcast.lane.b32.xlu0 %v671, %s688
        %v690 = vpop.permute.xlu0 %689
        %s692 = sor.u32 256, 40
        %693 = vbcast.lane.b32.xlu0 %v671, %s692
        %v694 = vpop.permute.xlu0 %693
        %s696 = sor.u32 256, 48
        %697 = vbcast.lane.b32.xlu0 %v671, %s696
        %v698 = vpop.permute.xlu0 %697
        %s700 = sor.u32 256, 56
        %701 = vbcast.lane.b32.xlu0 %v671, %s700
        %v702 = vpop.permute.xlu0 %701
        %v703 = vlaneseq
        %v704 = vshrl.u32 %v703, 7
        %v705 = vsub.s32 1, %v704
        %v706 = vrot.slane %v662, %v705
        %708 = vbcast.lane.b32.xlu0 %v706, 256
        %v709 = vpop.permute.xlu0 %708
        %s711 = sor.u32 256, 8
        %712 = vbcast.lane.b32.xlu0 %v706, %s711
        %v713 = vpop.permute.xlu0 %712
        %s715 = sor.u32 256, 16
        %716 = vbcast.lane.b32.xlu0 %v706, %s715
        %v717 = vpop.permute.xlu0 %716
        %s719 = sor.u32 256, 24
        %720 = vbcast.lane.b32.xlu0 %v706, %s719
        %v721 = vpop.permute.xlu0 %720
        %s723 = sor.u32 256, 32
        %724 = vbcast.lane.b32.xlu0 %v706, %s723
        %v725 = vpop.permute.xlu0 %724
        %s727 = sor.u32 256, 40
        %728 = vbcast.lane.b32.xlu0 %v706, %s727
        %v729 = vpop.permute.xlu0 %728
        %s731 = sor.u32 256, 48
        %732 = vbcast.lane.b32.xlu0 %v706, %s731
        %v733 = vpop.permute.xlu0 %732
        %s735 = sor.u32 256, 56
        %736 = vbcast.lane.b32.xlu0 %v706, %s735
        %v737 = vpop.permute.xlu0 %736
        %v738 = vlaneseq
        %v739 = vshrl.u32 %v738, 7
        %v740 = vsub.s32 2, %v739
        %v741 = vrot.slane %v662, %v740
        %743 = vbcast.lane.b32.xlu0 %v741, 256
        %v744 = vpop.permute.xlu0 %743
        %s746 = sor.u32 256, 8
        %747 = vbcast.lane.b32.xlu0 %v741, %s746
        %v748 = vpop.permute.xlu0 %747
        %s750 = sor.u32 256, 16
        %751 = vbcast.lane.b32.xlu0 %v741, %s750
        %v752 = vpop.permute.xlu0 %751
        %s754 = sor.u32 256, 24
        %755 = vbcast.lane.b32.xlu0 %v741, %s754
        %v756 = vpop.permute.xlu0 %755
        %s758 = sor.u32 256, 32
        %759 = vbcast.lane.b32.xlu0 %v741, %s758
        %v760 = vpop.permute.xlu0 %759
        %s762 = sor.u32 256, 40
        %763 = vbcast.lane.b32.xlu0 %v741, %s762
        %v764 = vpop.permute.xlu0 %763
        %s766 = sor.u32 256, 48
        %767 = vbcast.lane.b32.xlu0 %v741, %s766
        %v768 = vpop.permute.xlu0 %767
        %s770 = sor.u32 256, 56
        %771 = vbcast.lane.b32.xlu0 %v741, %s770
        %v772 = vpop.permute.xlu0 %771
        %v773 = vlaneseq
        %v774 = vshrl.u32 %v773, 7
        %v775 = vsub.s32 3, %v774
        %v776 = vrot.slane %v662, %v775
        %778 = vbcast.lane.b32.xlu0 %v776, 256
        %v779 = vpop.permute.xlu0 %778
        %s781 = sor.u32 256, 8
        %782 = vbcast.lane.b32.xlu0 %v776, %s781
        %v783 = vpop.permute.xlu0 %782
        %s785 = sor.u32 256, 16
        %786 = vbcast.lane.b32.xlu0 %v776, %s785
        %v787 = vpop.permute.xlu0 %786
        %s789 = sor.u32 256, 24
        %790 = vbcast.lane.b32.xlu0 %v776, %s789
        %v791 = vpop.permute.xlu0 %790
        %s793 = sor.u32 256, 32
        %794 = vbcast.lane.b32.xlu0 %v776, %s793
        %v795 = vpop.permute.xlu0 %794
        %s797 = sor.u32 256, 40
        %798 = vbcast.lane.b32.xlu0 %v776, %s797
        %v799 = vpop.permute.xlu0 %798
        %s801 = sor.u32 256, 48
        %802 = vbcast.lane.b32.xlu0 %v776, %s801
        %v803 = vpop.permute.xlu0 %802
        %s805 = sor.u32 256, 56
        %806 = vbcast.lane.b32.xlu0 %v776, %s805
        %v807 = vpop.permute.xlu0 %806
        %v808 = vlaneseq
        %v809 = vshrl.u32 %v808, 7
        %v810 = vsub.s32 4, %v809
        %v811 = vrot.slane %v662, %v810
        %813 = vbcast.lane.b32.xlu0 %v811, 256
        %v814 = vpop.permute.xlu0 %813
        %s816 = sor.u32 256, 8
        %817 = vbcast.lane.b32.xlu0 %v811, %s816
        %v818 = vpop.permute.xlu0 %817
        %s820 = sor.u32 256, 16
        %821 = vbcast.lane.b32.xlu0 %v811, %s820
        %v822 = vpop.permute.xlu0 %821
        %s824 = sor.u32 256, 24
        %825 = vbcast.lane.b32.xlu0 %v811, %s824
        %v826 = vpop.permute.xlu0 %825
        %s828 = sor.u32 256, 32
        %829 = vbcast.lane.b32.xlu0 %v811, %s828
        %v830 = vpop.permute.xlu0 %829
        %s832 = sor.u32 256, 40
        %833 = vbcast.lane.b32.xlu0 %v811, %s832
        %v834 = vpop.permute.xlu0 %833
        %s836 = sor.u32 256, 48
        %837 = vbcast.lane.b32.xlu0 %v811, %s836
        %v838 = vpop.permute.xlu0 %837
        %s840 = sor.u32 256, 56
        %841 = vbcast.lane.b32.xlu0 %v811, %s840
        %v842 = vpop.permute.xlu0 %841
        %v843 = vlaneseq
        %v844 = vshrl.u32 %v843, 7
        %v845 = vsub.s32 5, %v844
        %v846 = vrot.slane %v662, %v845
        %848 = vbcast.lane.b32.xlu0 %v846, 256
        %v849 = vpop.permute.xlu0 %848
        %s851 = sor.u32 256, 8
        %852 = vbcast.lane.b32.xlu0 %v846, %s851
        %v853 = vpop.permute.xlu0 %852
        %s855 = sor.u32 256, 16
        %856 = vbcast.lane.b32.xlu0 %v846, %s855
        %v857 = vpop.permute.xlu0 %856
        %s859 = sor.u32 256, 24
        %860 = vbcast.lane.b32.xlu0 %v846, %s859
        %v861 = vpop.permute.xlu0 %860
        %s863 = sor.u32 256, 32
        %864 = vbcast.lane.b32.xlu0 %v846, %s863
        %v865 = vpop.permute.xlu0 %864
        %s867 = sor.u32 256, 40
        %868 = vbcast.lane.b32.xlu0 %v846, %s867
        %v869 = vpop.permute.xlu0 %868
        %s871 = sor.u32 256, 48
        %872 = vbcast.lane.b32.xlu0 %v846, %s871
        %v873 = vpop.permute.xlu0 %872
        %s875 = sor.u32 256, 56
        %876 = vbcast.lane.b32.xlu0 %v846, %s875
        %v877 = vpop.permute.xlu0 %876
        %v878 = vlaneseq
        %v879 = vshrl.u32 %v878, 7
        %v880 = vsub.s32 6, %v879
        %v881 = vrot.slane %v662, %v880
        %883 = vbcast.lane.b32.xlu0 %v881, 256
        %v884 = vpop.permute.xlu0 %883
        %s886 = sor.u32 256, 8
        %887 = vbcast.lane.b32.xlu0 %v881, %s886
        %v888 = vpop.permute.xlu0 %887
        %s890 = sor.u32 256, 16
        %891 = vbcast.lane.b32.xlu0 %v881, %s890
        %v892 = vpop.permute.xlu0 %891
        %s894 = sor.u32 256, 24
        %895 = vbcast.lane.b32.xlu0 %v881, %s894
        %v896 = vpop.permute.xlu0 %895
        %s898 = sor.u32 256, 32
        %899 = vbcast.lane.b32.xlu0 %v881, %s898
        %v900 = vpop.permute.xlu0 %899
        %s902 = sor.u32 256, 40
        %903 = vbcast.lane.b32.xlu0 %v881, %s902
        %v904 = vpop.permute.xlu0 %903
        %s906 = sor.u32 256, 48
        %907 = vbcast.lane.b32.xlu0 %v881, %s906
        %v908 = vpop.permute.xlu0 %907
        %s910 = sor.u32 256, 56
        %911 = vbcast.lane.b32.xlu0 %v881, %s910
        %v912 = vpop.permute.xlu0 %911
        %v913 = vlaneseq
        %v914 = vshrl.u32 %v913, 7
        %v915 = vsub.s32 7, %v914
        %v916 = vrot.slane %v662, %v915
        %918 = vbcast.lane.b32.xlu0 %v916, 256
        %v919 = vpop.permute.xlu0 %918
        %s921 = sor.u32 256, 8
        %922 = vbcast.lane.b32.xlu0 %v916, %s921
        %v923 = vpop.permute.xlu0 %922
        %s925 = sor.u32 256, 16
        %926 = vbcast.lane.b32.xlu0 %v916, %s925
        %v927 = vpop.permute.xlu0 %926
        %s929 = sor.u32 256, 24
        %930 = vbcast.lane.b32.xlu0 %v916, %s929
        %v931 = vpop.permute.xlu0 %930
        %s933 = sor.u32 256, 32
        %934 = vbcast.lane.b32.xlu0 %v916, %s933
        %v935 = vpop.permute.xlu0 %934
        %s937 = sor.u32 256, 40
        %938 = vbcast.lane.b32.xlu0 %v916, %s937
        %v939 = vpop.permute.xlu0 %938
        %s941 = sor.u32 256, 48
        %942 = vbcast.lane.b32.xlu0 %v916, %s941
        %v943 = vpop.permute.xlu0 %942
        %s945 = sor.u32 256, 56
        %946 = vbcast.lane.b32.xlu0 %v916, %s945
        %v947 = vpop.permute.xlu0 %946
        %v948 = vlaneseq
        %v949 = vshrl.u32 %v948, 7
        %v950 = vsub.s32 0, %v949
        %v951 = vrot.slane %v663, %v950
        %953 = vbcast.lane.b32.xlu0 %v951, 256
        %v954 = vpop.permute.xlu0 %953
        %s956 = sor.u32 256, 8
        %957 = vbcast.lane.b32.xlu0 %v951, %s956
        %v958 = vpop.permute.xlu0 %957
        %s960 = sor.u32 256, 16
        %961 = vbcast.lane.b32.xlu0 %v951, %s960
        %v962 = vpop.permute.xlu0 %961
        %s964 = sor.u32 256, 24
        %965 = vbcast.lane.b32.xlu0 %v951, %s964
        %v966 = vpop.permute.xlu0 %965
        %s968 = sor.u32 256, 32
        %969 = vbcast.lane.b32.xlu0 %v951, %s968
        %v970 = vpop.permute.xlu0 %969
        %s972 = sor.u32 256, 40
        %973 = vbcast.lane.b32.xlu0 %v951, %s972
        %v974 = vpop.permute.xlu0 %973
        %s976 = sor.u32 256, 48
        %977 = vbcast.lane.b32.xlu0 %v951, %s976
        %v978 = vpop.permute.xlu0 %977
        %s980 = sor.u32 256, 56
        %981 = vbcast.lane.b32.xlu0 %v951, %s980
        %v982 = vpop.permute.xlu0 %981
        %v983 = vlaneseq
        %v984 = vshrl.u32 %v983, 7
        %v985 = vsub.s32 1, %v984
        %v986 = vrot.slane %v663, %v985
        %988 = vbcast.lane.b32.xlu0 %v986, 256
        %v989 = vpop.permute.xlu0 %988
        %s991 = sor.u32 256, 8
        %992 = vbcast.lane.b32.xlu0 %v986, %s991
        %v993 = vpop.permute.xlu0 %992
        %s995 = sor.u32 256, 16
        %996 = vbcast.lane.b32.xlu0 %v986, %s995
        %v997 = vpop.permute.xlu0 %996
        %s999 = sor.u32 256, 24
        %1000 = vbcast.lane.b32.xlu0 %v986, %s999
        %v1001 = vpop.permute.xlu0 %1000
        %s1003 = sor.u32 256, 32
        %1004 = vbcast.lane.b32.xlu0 %v986, %s1003
        %v1005 = vpop.permute.xlu0 %1004
        %s1007 = sor.u32 256, 40
        %1008 = vbcast.lane.b32.xlu0 %v986, %s1007
        %v1009 = vpop.permute.xlu0 %1008
        %s1011 = sor.u32 256, 48
        %1012 = vbcast.lane.b32.xlu0 %v986, %s1011
        %v1013 = vpop.permute.xlu0 %1012
        %s1015 = sor.u32 256, 56
        %1016 = vbcast.lane.b32.xlu0 %v986, %s1015
        %v1017 = vpop.permute.xlu0 %1016
        %v1018 = vlaneseq
        %v1019 = vshrl.u32 %v1018, 7
        %v1020 = vsub.s32 2, %v1019
        %v1021 = vrot.slane %v663, %v1020
        %1023 = vbcast.lane.b32.xlu0 %v1021, 256
        %v1024 = vpop.permute.xlu0 %1023
        %s1026 = sor.u32 256, 8
        %1027 = vbcast.lane.b32.xlu0 %v1021, %s1026
        %v1028 = vpop.permute.xlu0 %1027
        %s1030 = sor.u32 256, 16
        %1031 = vbcast.lane.b32.xlu0 %v1021, %s1030
        %v1032 = vpop.permute.xlu0 %1031
        %s1034 = sor.u32 256, 24
        %1035 = vbcast.lane.b32.xlu0 %v1021, %s1034
        %v1036 = vpop.permute.xlu0 %1035
        %s1038 = sor.u32 256, 32
        %1039 = vbcast.lane.b32.xlu0 %v1021, %s1038
        %v1040 = vpop.permute.xlu0 %1039
        %s1042 = sor.u32 256, 40
        %1043 = vbcast.lane.b32.xlu0 %v1021, %s1042
        %v1044 = vpop.permute.xlu0 %1043
        %s1046 = sor.u32 256, 48
        %1047 = vbcast.lane.b32.xlu0 %v1021, %s1046
        %v1048 = vpop.permute.xlu0 %1047
        %s1050 = sor.u32 256, 56
        %1051 = vbcast.lane.b32.xlu0 %v1021, %s1050
        %v1052 = vpop.permute.xlu0 %1051
        %v1053 = vlaneseq
        %v1054 = vshrl.u32 %v1053, 7
        %v1055 = vsub.s32 3, %v1054
        %v1056 = vrot.slane %v663, %v1055
        %1058 = vbcast.lane.b32.xlu0 %v1056, 256
        %v1059 = vpop.permute.xlu0 %1058
        %s1061 = sor.u32 256, 8
        %1062 = vbcast.lane.b32.xlu0 %v1056, %s1061
        %v1063 = vpop.permute.xlu0 %1062
        %s1065 = sor.u32 256, 16
        %1066 = vbcast.lane.b32.xlu0 %v1056, %s1065
        %v1067 = vpop.permute.xlu0 %1066
        %s1069 = sor.u32 256, 24
        %1070 = vbcast.lane.b32.xlu0 %v1056, %s1069
        %v1071 = vpop.permute.xlu0 %1070
        %s1073 = sor.u32 256, 32
        %1074 = vbcast.lane.b32.xlu0 %v1056, %s1073
        %v1075 = vpop.permute.xlu0 %1074
        %s1077 = sor.u32 256, 40
        %1078 = vbcast.lane.b32.xlu0 %v1056, %s1077
        %v1079 = vpop.permute.xlu0 %1078
        %s1081 = sor.u32 256, 48
        %1082 = vbcast.lane.b32.xlu0 %v1056, %s1081
        %v1083 = vpop.permute.xlu0 %1082
        %s1085 = sor.u32 256, 56
        %1086 = vbcast.lane.b32.xlu0 %v1056, %s1085
        %v1087 = vpop.permute.xlu0 %1086
        %v1088 = vlaneseq
        %v1089 = vshrl.u32 %v1088, 7
        %v1090 = vsub.s32 4, %v1089
        %v1091 = vrot.slane %v663, %v1090
        %1093 = vbcast.lane.b32.xlu0 %v1091, 256
        %v1094 = vpop.permute.xlu0 %1093
        %s1096 = sor.u32 256, 8
        %1097 = vbcast.lane.b32.xlu0 %v1091, %s1096
        %v1098 = vpop.permute.xlu0 %1097
        %s1100 = sor.u32 256, 16
        %1101 = vbcast.lane.b32.xlu0 %v1091, %s1100
        %v1102 = vpop.permute.xlu0 %1101
        %s1104 = sor.u32 256, 24
        %1105 = vbcast.lane.b32.xlu0 %v1091, %s1104
        %v1106 = vpop.permute.xlu0 %1105
        %s1108 = sor.u32 256, 32
        %1109 = vbcast.lane.b32.xlu0 %v1091, %s1108
        %v1110 = vpop.permute.xlu0 %1109
        %s1112 = sor.u32 256, 40
        %1113 = vbcast.lane.b32.xlu0 %v1091, %s1112
        %v1114 = vpop.permute.xlu0 %1113
        %s1116 = sor.u32 256, 48
        %1117 = vbcast.lane.b32.xlu0 %v1091, %s1116
        %v1118 = vpop.permute.xlu0 %1117
        %s1120 = sor.u32 256, 56
        %1121 = vbcast.lane.b32.xlu0 %v1091, %s1120
        %v1122 = vpop.permute.xlu0 %1121
        %v1123 = vlaneseq
        %v1124 = vshrl.u32 %v1123, 7
        %v1125 = vsub.s32 5, %v1124
        %v1126 = vrot.slane %v663, %v1125
        %1128 = vbcast.lane.b32.xlu0 %v1126, 256
        %v1129 = vpop.permute.xlu0 %1128
        %s1131 = sor.u32 256, 8
        %1132 = vbcast.lane.b32.xlu0 %v1126, %s1131
        %v1133 = vpop.permute.xlu0 %1132
        %s1135 = sor.u32 256, 16
        %1136 = vbcast.lane.b32.xlu0 %v1126, %s1135
        %v1137 = vpop.permute.xlu0 %1136
        %s1139 = sor.u32 256, 24
        %1140 = vbcast.lane.b32.xlu0 %v1126, %s1139
        %v1141 = vpop.permute.xlu0 %1140
        %s1143 = sor.u32 256, 32
        %1144 = vbcast.lane.b32.xlu0 %v1126, %s1143
        %v1145 = vpop.permute.xlu0 %1144
        %s1147 = sor.u32 256, 40
        %1148 = vbcast.lane.b32.xlu0 %v1126, %s1147
        %v1149 = vpop.permute.xlu0 %1148
        %s1151 = sor.u32 256, 48
        %1152 = vbcast.lane.b32.xlu0 %v1126, %s1151
        %v1153 = vpop.permute.xlu0 %1152
        %s1155 = sor.u32 256, 56
        %1156 = vbcast.lane.b32.xlu0 %v1126, %s1155
        %v1157 = vpop.permute.xlu0 %1156
        %v1158 = vlaneseq
        %v1159 = vshrl.u32 %v1158, 7
        %v1160 = vsub.s32 6, %v1159
        %v1161 = vrot.slane %v663, %v1160
        %1163 = vbcast.lane.b32.xlu0 %v1161, 256
        %v1164 = vpop.permute.xlu0 %1163
        %s1166 = sor.u32 256, 8
        %1167 = vbcast.lane.b32.xlu0 %v1161, %s1166
        %v1168 = vpop.permute.xlu0 %1167
        %s1170 = sor.u32 256, 16
        %1171 = vbcast.lane.b32.xlu0 %v1161, %s1170
        %v1172 = vpop.permute.xlu0 %1171
        %s1174 = sor.u32 256, 24
        %1175 = vbcast.lane.b32.xlu0 %v1161, %s1174
        %v1176 = vpop.permute.xlu0 %1175
        %s1178 = sor.u32 256, 32
        %1179 = vbcast.lane.b32.xlu0 %v1161, %s1178
        %v1180 = vpop.permute.xlu0 %1179
        %s1182 = sor.u32 256, 40
        %1183 = vbcast.lane.b32.xlu0 %v1161, %s1182
        %v1184 = vpop.permute.xlu0 %1183
        %s1186 = sor.u32 256, 48
        %1187 = vbcast.lane.b32.xlu0 %v1161, %s1186
        %v1188 = vpop.permute.xlu0 %1187
        %s1190 = sor.u32 256, 56
        %1191 = vbcast.lane.b32.xlu0 %v1161, %s1190
        %v1192 = vpop.permute.xlu0 %1191
        %v1193 = vlaneseq
        %v1194 = vshrl.u32 %v1193, 7
        %v1195 = vsub.s32 7, %v1194
        %v1196 = vrot.slane %v663, %v1195
        %1198 = vbcast.lane.b32.xlu0 %v1196, 256
        %v1199 = vpop.permute.xlu0 %1198
        %s1201 = sor.u32 256, 8
        %1202 = vbcast.lane.b32.xlu0 %v1196, %s1201
        %v1203 = vpop.permute.xlu0 %1202
        %s1205 = sor.u32 256, 16
        %1206 = vbcast.lane.b32.xlu0 %v1196, %s1205
        %v1207 = vpop.permute.xlu0 %1206
        %s1209 = sor.u32 256, 24
        %1210 = vbcast.lane.b32.xlu0 %v1196, %s1209
        %v1211 = vpop.permute.xlu0 %1210
        %s1213 = sor.u32 256, 32
        %1214 = vbcast.lane.b32.xlu0 %v1196, %s1213
        %v1215 = vpop.permute.xlu0 %1214
        %s1217 = sor.u32 256, 40
        %1218 = vbcast.lane.b32.xlu0 %v1196, %s1217
        %v1219 = vpop.permute.xlu0 %1218
        %s1221 = sor.u32 256, 48
        %1222 = vbcast.lane.b32.xlu0 %v1196, %s1221
        %v1223 = vpop.permute.xlu0 %1222
        %s1225 = sor.u32 256, 56
        %1226 = vbcast.lane.b32.xlu0 %v1196, %s1225
        %v1227 = vpop.permute.xlu0 %1226
        %v1228 = vlaneseq
        %v1229 = vshrl.u32 %v1228, 7
        %v1230 = vsub.s32 0, %v1229
        %v1231 = vrot.slane %v664, %v1230
        %1233 = vbcast.lane.b32.xlu0 %v1231, 256
        %v1234 = vpop.permute.xlu0 %1233
        %s1236 = sor.u32 256, 8
        %1237 = vbcast.lane.b32.xlu0 %v1231, %s1236
        %v1238 = vpop.permute.xlu0 %1237
        %s1240 = sor.u32 256, 16
        %1241 = vbcast.lane.b32.xlu0 %v1231, %s1240
        %v1242 = vpop.permute.xlu0 %1241
        %s1244 = sor.u32 256, 24
        %1245 = vbcast.lane.b32.xlu0 %v1231, %s1244
        %v1246 = vpop.permute.xlu0 %1245
        %s1248 = sor.u32 256, 32
        %1249 = vbcast.lane.b32.xlu0 %v1231, %s1248
        %v1250 = vpop.permute.xlu0 %1249
        %s1252 = sor.u32 256, 40
        %1253 = vbcast.lane.b32.xlu0 %v1231, %s1252
        %v1254 = vpop.permute.xlu0 %1253
        %s1256 = sor.u32 256, 48
        %1257 = vbcast.lane.b32.xlu0 %v1231, %s1256
        %v1258 = vpop.permute.xlu0 %1257
        %s1260 = sor.u32 256, 56
        %1261 = vbcast.lane.b32.xlu0 %v1231, %s1260
        %v1262 = vpop.permute.xlu0 %1261
        %v1263 = vlaneseq
        %v1264 = vshrl.u32 %v1263, 7
        %v1265 = vsub.s32 1, %v1264
        %v1266 = vrot.slane %v664, %v1265
        %1268 = vbcast.lane.b32.xlu0 %v1266, 256
        %v1269 = vpop.permute.xlu0 %1268
        %s1271 = sor.u32 256, 8
        %1272 = vbcast.lane.b32.xlu0 %v1266, %s1271
        %v1273 = vpop.permute.xlu0 %1272
        %s1275 = sor.u32 256, 16
        %1276 = vbcast.lane.b32.xlu0 %v1266, %s1275
        %v1277 = vpop.permute.xlu0 %1276
        %s1279 = sor.u32 256, 24
        %1280 = vbcast.lane.b32.xlu0 %v1266, %s1279
        %v1281 = vpop.permute.xlu0 %1280
        %s1283 = sor.u32 256, 32
        %1284 = vbcast.lane.b32.xlu0 %v1266, %s1283
        %v1285 = vpop.permute.xlu0 %1284
        %s1287 = sor.u32 256, 40
        %1288 = vbcast.lane.b32.xlu0 %v1266, %s1287
        %v1289 = vpop.permute.xlu0 %1288
        %s1291 = sor.u32 256, 48
        %1292 = vbcast.lane.b32.xlu0 %v1266, %s1291
        %v1293 = vpop.permute.xlu0 %1292
        %s1295 = sor.u32 256, 56
        %1296 = vbcast.lane.b32.xlu0 %v1266, %s1295
        %v1297 = vpop.permute.xlu0 %1296
        %v1298 = vlaneseq
        %v1299 = vshrl.u32 %v1298, 7
        %v1300 = vsub.s32 2, %v1299
        %v1301 = vrot.slane %v664, %v1300
        %1303 = vbcast.lane.b32.xlu0 %v1301, 256
        %v1304 = vpop.permute.xlu0 %1303
        %s1306 = sor.u32 256, 8
        %1307 = vbcast.lane.b32.xlu0 %v1301, %s1306
        %v1308 = vpop.permute.xlu0 %1307
        %s1310 = sor.u32 256, 16
        %1311 = vbcast.lane.b32.xlu0 %v1301, %s1310
        %v1312 = vpop.permute.xlu0 %1311
        %s1314 = sor.u32 256, 24
        %1315 = vbcast.lane.b32.xlu0 %v1301, %s1314
        %v1316 = vpop.permute.xlu0 %1315
        %s1318 = sor.u32 256, 32
        %1319 = vbcast.lane.b32.xlu0 %v1301, %s1318
        %v1320 = vpop.permute.xlu0 %1319
        %s1322 = sor.u32 256, 40
        %1323 = vbcast.lane.b32.xlu0 %v1301, %s1322
        %v1324 = vpop.permute.xlu0 %1323
        %s1326 = sor.u32 256, 48
        %1327 = vbcast.lane.b32.xlu0 %v1301, %s1326
        %v1328 = vpop.permute.xlu0 %1327
        %s1330 = sor.u32 256, 56
        %1331 = vbcast.lane.b32.xlu0 %v1301, %s1330
        %v1332 = vpop.permute.xlu0 %1331
        %v1333 = vlaneseq
        %v1334 = vshrl.u32 %v1333, 7
        %v1335 = vsub.s32 3, %v1334
        %v1336 = vrot.slane %v664, %v1335
        %1338 = vbcast.lane.b32.xlu0 %v1336, 256
        %v1339 = vpop.permute.xlu0 %1338
        %s1341 = sor.u32 256, 8
        %1342 = vbcast.lane.b32.xlu0 %v1336, %s1341
        %v1343 = vpop.permute.xlu0 %1342
        %s1345 = sor.u32 256, 16
        %1346 = vbcast.lane.b32.xlu0 %v1336, %s1345
        %v1347 = vpop.permute.xlu0 %1346
        %s1349 = sor.u32 256, 24
        %1350 = vbcast.lane.b32.xlu0 %v1336, %s1349
        %v1351 = vpop.permute.xlu0 %1350
        %s1353 = sor.u32 256, 32
        %1354 = vbcast.lane.b32.xlu0 %v1336, %s1353
        %v1355 = vpop.permute.xlu0 %1354
        %s1357 = sor.u32 256, 40
        %1358 = vbcast.lane.b32.xlu0 %v1336, %s1357
        %v1359 = vpop.permute.xlu0 %1358
        %s1361 = sor.u32 256, 48
        %1362 = vbcast.lane.b32.xlu0 %v1336, %s1361
        %v1363 = vpop.permute.xlu0 %1362
        %s1365 = sor.u32 256, 56
        %1366 = vbcast.lane.b32.xlu0 %v1336, %s1365
        %v1367 = vpop.permute.xlu0 %1366
        %v1368 = vlaneseq
        %v1369 = vshrl.u32 %v1368, 7
        %v1370 = vsub.s32 4, %v1369
        %v1371 = vrot.slane %v664, %v1370
        %1373 = vbcast.lane.b32.xlu0 %v1371, 256
        %v1374 = vpop.permute.xlu0 %1373
        %s1376 = sor.u32 256, 8
        %1377 = vbcast.lane.b32.xlu0 %v1371, %s1376
        %v1378 = vpop.permute.xlu0 %1377
        %s1380 = sor.u32 256, 16
        %1381 = vbcast.lane.b32.xlu0 %v1371, %s1380
        %v1382 = vpop.permute.xlu0 %1381
        %s1384 = sor.u32 256, 24
        %1385 = vbcast.lane.b32.xlu0 %v1371, %s1384
        %v1386 = vpop.permute.xlu0 %1385
        %s1388 = sor.u32 256, 32
        %1389 = vbcast.lane.b32.xlu0 %v1371, %s1388
        %v1390 = vpop.permute.xlu0 %1389
        %s1392 = sor.u32 256, 40
        %1393 = vbcast.lane.b32.xlu0 %v1371, %s1392
        %v1394 = vpop.permute.xlu0 %1393
        %s1396 = sor.u32 256, 48
        %1397 = vbcast.lane.b32.xlu0 %v1371, %s1396
        %v1398 = vpop.permute.xlu0 %1397
        %s1400 = sor.u32 256, 56
        %1401 = vbcast.lane.b32.xlu0 %v1371, %s1400
        %v1402 = vpop.permute.xlu0 %1401
        %v1403 = vlaneseq
        %v1404 = vshrl.u32 %v1403, 7
        %v1405 = vsub.s32 5, %v1404
        %v1406 = vrot.slane %v664, %v1405
        %1408 = vbcast.lane.b32.xlu0 %v1406, 256
        %v1409 = vpop.permute.xlu0 %1408
        %s1411 = sor.u32 256, 8
        %1412 = vbcast.lane.b32.xlu0 %v1406, %s1411
        %v1413 = vpop.permute.xlu0 %1412
        %s1415 = sor.u32 256, 16
        %1416 = vbcast.lane.b32.xlu0 %v1406, %s1415
        %v1417 = vpop.permute.xlu0 %1416
        %s1419 = sor.u32 256, 24
        %1420 = vbcast.lane.b32.xlu0 %v1406, %s1419
        %v1421 = vpop.permute.xlu0 %1420
        %s1423 = sor.u32 256, 32
        %1424 = vbcast.lane.b32.xlu0 %v1406, %s1423
        %v1425 = vpop.permute.xlu0 %1424
        %s1427 = sor.u32 256, 40
        %1428 = vbcast.lane.b32.xlu0 %v1406, %s1427
        %v1429 = vpop.permute.xlu0 %1428
        %s1431 = sor.u32 256, 48
        %1432 = vbcast.lane.b32.xlu0 %v1406, %s1431
        %v1433 = vpop.permute.xlu0 %1432
        %s1435 = sor.u32 256, 56
        %1436 = vbcast.lane.b32.xlu0 %v1406, %s1435
        %v1437 = vpop.permute.xlu0 %1436
        %v1438 = vlaneseq
        %v1439 = vshrl.u32 %v1438, 7
        %v1440 = vsub.s32 6, %v1439
        %v1441 = vrot.slane %v664, %v1440
        %1443 = vbcast.lane.b32.xlu0 %v1441, 256
        %v1444 = vpop.permute.xlu0 %1443
        %s1446 = sor.u32 256, 8
        %1447 = vbcast.lane.b32.xlu0 %v1441, %s1446
        %v1448 = vpop.permute.xlu0 %1447
        %s1450 = sor.u32 256, 16
        %1451 = vbcast.lane.b32.xlu0 %v1441, %s1450
        %v1452 = vpop.permute.xlu0 %1451
        %s1454 = sor.u32 256, 24
        %1455 = vbcast.lane.b32.xlu0 %v1441, %s1454
        %v1456 = vpop.permute.xlu0 %1455
        %s1458 = sor.u32 256, 32
        %1459 = vbcast.lane.b32.xlu0 %v1441, %s1458
        %v1460 = vpop.permute.xlu0 %1459
        %s1462 = sor.u32 256, 40
        %1463 = vbcast.lane.b32.xlu0 %v1441, %s1462
        %v1464 = vpop.permute.xlu0 %1463
        %s1466 = sor.u32 256, 48
        %1467 = vbcast.lane.b32.xlu0 %v1441, %s1466
        %v1468 = vpop.permute.xlu0 %1467
        %s1470 = sor.u32 256, 56
        %1471 = vbcast.lane.b32.xlu0 %v1441, %s1470
        %v1472 = vpop.permute.xlu0 %1471
        %v1473 = vlaneseq
        %v1474 = vshrl.u32 %v1473, 7
        %v1475 = vsub.s32 7, %v1474
        %v1476 = vrot.slane %v664, %v1475
        %1478 = vbcast.lane.b32.xlu0 %v1476, 256
        %v1479 = vpop.permute.xlu0 %1478
        %s1481 = sor.u32 256, 8
        %1482 = vbcast.lane.b32.xlu0 %v1476, %s1481
        %v1483 = vpop.permute.xlu0 %1482
        %s1485 = sor.u32 256, 16
        %1486 = vbcast.lane.b32.xlu0 %v1476, %s1485
        %v1487 = vpop.permute.xlu0 %1486
        %s1489 = sor.u32 256, 24
        %1490 = vbcast.lane.b32.xlu0 %v1476, %s1489
        %v1491 = vpop.permute.xlu0 %1490
        %s1493 = sor.u32 256, 32
        %1494 = vbcast.lane.b32.xlu0 %v1476, %s1493
        %v1495 = vpop.permute.xlu0 %1494
        %s1497 = sor.u32 256, 40
        %1498 = vbcast.lane.b32.xlu0 %v1476, %s1497
        %v1499 = vpop.permute.xlu0 %1498
        %s1501 = sor.u32 256, 48
        %1502 = vbcast.lane.b32.xlu0 %v1476, %s1501
        %v1503 = vpop.permute.xlu0 %1502
        %s1505 = sor.u32 256, 56
        %1506 = vbcast.lane.b32.xlu0 %v1476, %s1505
        %v1507 = vpop.permute.xlu0 %1506
        %v1508 = vlaneseq
        %v1509 = vshrl.u32 %v1508, 7
        %v1510 = vsub.s32 0, %v1509
        %v1511 = vrot.slane %v665, %v1510
        %1513 = vbcast.lane.b32.xlu0 %v1511, 256
        %v1514 = vpop.permute.xlu0 %1513
        %s1516 = sor.u32 256, 8
        %1517 = vbcast.lane.b32.xlu0 %v1511, %s1516
        %v1518 = vpop.permute.xlu0 %1517
        %s1520 = sor.u32 256, 16
        %1521 = vbcast.lane.b32.xlu0 %v1511, %s1520
        %v1522 = vpop.permute.xlu0 %1521
        %s1524 = sor.u32 256, 24
        %1525 = vbcast.lane.b32.xlu0 %v1511, %s1524
        %v1526 = vpop.permute.xlu0 %1525
        %s1528 = sor.u32 256, 32
        %1529 = vbcast.lane.b32.xlu0 %v1511, %s1528
        %v1530 = vpop.permute.xlu0 %1529
        %s1532 = sor.u32 256, 40
        %1533 = vbcast.lane.b32.xlu0 %v1511, %s1532
        %v1534 = vpop.permute.xlu0 %1533
        %s1536 = sor.u32 256, 48
        %1537 = vbcast.lane.b32.xlu0 %v1511, %s1536
        %v1538 = vpop.permute.xlu0 %1537
        %s1540 = sor.u32 256, 56
        %1541 = vbcast.lane.b32.xlu0 %v1511, %s1540
        %v1542 = vpop.permute.xlu0 %1541
        %v1543 = vlaneseq
        %v1544 = vshrl.u32 %v1543, 7
        %v1545 = vsub.s32 1, %v1544
        %v1546 = vrot.slane %v665, %v1545
        %1548 = vbcast.lane.b32.xlu0 %v1546, 256
        %v1549 = vpop.permute.xlu0 %1548
        %s1551 = sor.u32 256, 8
        %1552 = vbcast.lane.b32.xlu0 %v1546, %s1551
        %v1553 = vpop.permute.xlu0 %1552
        %s1555 = sor.u32 256, 16
        %1556 = vbcast.lane.b32.xlu0 %v1546, %s1555
        %v1557 = vpop.permute.xlu0 %1556
        %s1559 = sor.u32 256, 24
        %1560 = vbcast.lane.b32.xlu0 %v1546, %s1559
        %v1561 = vpop.permute.xlu0 %1560
        %s1563 = sor.u32 256, 32
        %1564 = vbcast.lane.b32.xlu0 %v1546, %s1563
        %v1565 = vpop.permute.xlu0 %1564
        %s1567 = sor.u32 256, 40
        %1568 = vbcast.lane.b32.xlu0 %v1546, %s1567
        %v1569 = vpop.permute.xlu0 %1568
        %s1571 = sor.u32 256, 48
        %1572 = vbcast.lane.b32.xlu0 %v1546, %s1571
        %v1573 = vpop.permute.xlu0 %1572
        %s1575 = sor.u32 256, 56
        %1576 = vbcast.lane.b32.xlu0 %v1546, %s1575
        %v1577 = vpop.permute.xlu0 %1576
        %v1578 = vlaneseq
        %v1579 = vshrl.u32 %v1578, 7
        %v1580 = vsub.s32 2, %v1579
        %v1581 = vrot.slane %v665, %v1580
        %1583 = vbcast.lane.b32.xlu0 %v1581, 256
        %v1584 = vpop.permute.xlu0 %1583
        %s1586 = sor.u32 256, 8
        %1587 = vbcast.lane.b32.xlu0 %v1581, %s1586
        %v1588 = vpop.permute.xlu0 %1587
        %s1590 = sor.u32 256, 16
        %1591 = vbcast.lane.b32.xlu0 %v1581, %s1590
        %v1592 = vpop.permute.xlu0 %1591
        %s1594 = sor.u32 256, 24
        %1595 = vbcast.lane.b32.xlu0 %v1581, %s1594
        %v1596 = vpop.permute.xlu0 %1595
        %s1598 = sor.u32 256, 32
        %1599 = vbcast.lane.b32.xlu0 %v1581, %s1598
        %v1600 = vpop.permute.xlu0 %1599
        %s1602 = sor.u32 256, 40
        %1603 = vbcast.lane.b32.xlu0 %v1581, %s1602
        %v1604 = vpop.permute.xlu0 %1603
        %s1606 = sor.u32 256, 48
        %1607 = vbcast.lane.b32.xlu0 %v1581, %s1606
        %v1608 = vpop.permute.xlu0 %1607
        %s1610 = sor.u32 256, 56
        %1611 = vbcast.lane.b32.xlu0 %v1581, %s1610
        %v1612 = vpop.permute.xlu0 %1611
        %v1613 = vlaneseq
        %v1614 = vshrl.u32 %v1613, 7
        %v1615 = vsub.s32 3, %v1614
        %v1616 = vrot.slane %v665, %v1615
        %1618 = vbcast.lane.b32.xlu0 %v1616, 256
        %v1619 = vpop.permute.xlu0 %1618
        %s1621 = sor.u32 256, 8
        %1622 = vbcast.lane.b32.xlu0 %v1616, %s1621
        %v1623 = vpop.permute.xlu0 %1622
        %s1625 = sor.u32 256, 16
        %1626 = vbcast.lane.b32.xlu0 %v1616, %s1625
        %v1627 = vpop.permute.xlu0 %1626
        %s1629 = sor.u32 256, 24
        %1630 = vbcast.lane.b32.xlu0 %v1616, %s1629
        %v1631 = vpop.permute.xlu0 %1630
        %s1633 = sor.u32 256, 32
        %1634 = vbcast.lane.b32.xlu0 %v1616, %s1633
        %v1635 = vpop.permute.xlu0 %1634
        %s1637 = sor.u32 256, 40
        %1638 = vbcast.lane.b32.xlu0 %v1616, %s1637
        %v1639 = vpop.permute.xlu0 %1638
        %s1641 = sor.u32 256, 48
        %1642 = vbcast.lane.b32.xlu0 %v1616, %s1641
        %v1643 = vpop.permute.xlu0 %1642
        %s1645 = sor.u32 256, 56
        %1646 = vbcast.lane.b32.xlu0 %v1616, %s1645
        %v1647 = vpop.permute.xlu0 %1646
        %v1648 = vlaneseq
        %v1649 = vshrl.u32 %v1648, 7
        %v1650 = vsub.s32 4, %v1649
        %v1651 = vrot.slane %v665, %v1650
        %1653 = vbcast.lane.b32.xlu0 %v1651, 256
        %v1654 = vpop.permute.xlu0 %1653
        %s1656 = sor.u32 256, 8
        %1657 = vbcast.lane.b32.xlu0 %v1651, %s1656
        %v1658 = vpop.permute.xlu0 %1657
        %s1660 = sor.u32 256, 16
        %1661 = vbcast.lane.b32.xlu0 %v1651, %s1660
        %v1662 = vpop.permute.xlu0 %1661
        %s1664 = sor.u32 256, 24
        %1665 = vbcast.lane.b32.xlu0 %v1651, %s1664
        %v1666 = vpop.permute.xlu0 %1665
        %s1668 = sor.u32 256, 32
        %1669 = vbcast.lane.b32.xlu0 %v1651, %s1668
        %v1670 = vpop.permute.xlu0 %1669
        %s1672 = sor.u32 256, 40
        %1673 = vbcast.lane.b32.xlu0 %v1651, %s1672
        %v1674 = vpop.permute.xlu0 %1673
        %s1676 = sor.u32 256, 48
        %1677 = vbcast.lane.b32.xlu0 %v1651, %s1676
        %v1678 = vpop.permute.xlu0 %1677
        %s1680 = sor.u32 256, 56
        %1681 = vbcast.lane.b32.xlu0 %v1651, %s1680
        %v1682 = vpop.permute.xlu0 %1681
        %v1683 = vlaneseq
        %v1684 = vshrl.u32 %v1683, 7
        %v1685 = vsub.s32 5, %v1684
        %v1686 = vrot.slane %v665, %v1685
        %1688 = vbcast.lane.b32.xlu0 %v1686, 256
        %v1689 = vpop.permute.xlu0 %1688
        %s1691 = sor.u32 256, 8
        %1692 = vbcast.lane.b32.xlu0 %v1686, %s1691
        %v1693 = vpop.permute.xlu0 %1692
        %s1695 = sor.u32 256, 16
        %1696 = vbcast.lane.b32.xlu0 %v1686, %s1695
        %v1697 = vpop.permute.xlu0 %1696
        %s1699 = sor.u32 256, 24
        %1700 = vbcast.lane.b32.xlu0 %v1686, %s1699
        %v1701 = vpop.permute.xlu0 %1700
        %s1703 = sor.u32 256, 32
        %1704 = vbcast.lane.b32.xlu0 %v1686, %s1703
        %v1705 = vpop.permute.xlu0 %1704
        %s1707 = sor.u32 256, 40
        %1708 = vbcast.lane.b32.xlu0 %v1686, %s1707
        %v1709 = vpop.permute.xlu0 %1708
        %s1711 = sor.u32 256, 48
        %1712 = vbcast.lane.b32.xlu0 %v1686, %s1711
        %v1713 = vpop.permute.xlu0 %1712
        %s1715 = sor.u32 256, 56
        %1716 = vbcast.lane.b32.xlu0 %v1686, %s1715
        %v1717 = vpop.permute.xlu0 %1716
        %v1718 = vlaneseq
        %v1719 = vshrl.u32 %v1718, 7
        %v1720 = vsub.s32 6, %v1719
        %v1721 = vrot.slane %v665, %v1720
        %1723 = vbcast.lane.b32.xlu0 %v1721, 256
        %v1724 = vpop.permute.xlu0 %1723
        %s1726 = sor.u32 256, 8
        %1727 = vbcast.lane.b32.xlu0 %v1721, %s1726
        %v1728 = vpop.permute.xlu0 %1727
        %s1730 = sor.u32 256, 16
        %1731 = vbcast.lane.b32.xlu0 %v1721, %s1730
        %v1732 = vpop.permute.xlu0 %1731
        %s1734 = sor.u32 256, 24
        %1735 = vbcast.lane.b32.xlu0 %v1721, %s1734
        %v1736 = vpop.permute.xlu0 %1735
        %s1738 = sor.u32 256, 32
        %1739 = vbcast.lane.b32.xlu0 %v1721, %s1738
        %v1740 = vpop.permute.xlu0 %1739
        %s1742 = sor.u32 256, 40
        %1743 = vbcast.lane.b32.xlu0 %v1721, %s1742
        %v1744 = vpop.permute.xlu0 %1743
        %s1746 = sor.u32 256, 48
        %1747 = vbcast.lane.b32.xlu0 %v1721, %s1746
        %v1748 = vpop.permute.xlu0 %1747
        %s1750 = sor.u32 256, 56
        %1751 = vbcast.lane.b32.xlu0 %v1721, %s1750
        %v1752 = vpop.permute.xlu0 %1751
        %v1753 = vlaneseq
        %v1754 = vshrl.u32 %v1753, 7
        %v1755 = vsub.s32 7, %v1754
        %v1756 = vrot.slane %v665, %v1755
        %1758 = vbcast.lane.b32.xlu0 %v1756, 256
        %v1759 = vpop.permute.xlu0 %1758
        %s1761 = sor.u32 256, 8
        %1762 = vbcast.lane.b32.xlu0 %v1756, %s1761
        %v1763 = vpop.permute.xlu0 %1762
        %s1765 = sor.u32 256, 16
        %1766 = vbcast.lane.b32.xlu0 %v1756, %s1765
        %v1767 = vpop.permute.xlu0 %1766
        %s1769 = sor.u32 256, 24
        %1770 = vbcast.lane.b32.xlu0 %v1756, %s1769
        %v1771 = vpop.permute.xlu0 %1770
        %s1773 = sor.u32 256, 32
        %1774 = vbcast.lane.b32.xlu0 %v1756, %s1773
        %v1775 = vpop.permute.xlu0 %1774
        %s1777 = sor.u32 256, 40
        %1778 = vbcast.lane.b32.xlu0 %v1756, %s1777
        %v1779 = vpop.permute.xlu0 %1778
        %s1781 = sor.u32 256, 48
        %1782 = vbcast.lane.b32.xlu0 %v1756, %s1781
        %v1783 = vpop.permute.xlu0 %1782
        %s1785 = sor.u32 256, 56
        %1786 = vbcast.lane.b32.xlu0 %v1756, %s1785
        %v1787 = vpop.permute.xlu0 %1786
        %vm1788 = vcmp.eq.s32.totalorder %v667, %v674
        %vm1789 = vcmp.eq.s32.totalorder %v667, %v678
        %vm1790 = vcmp.eq.s32.totalorder %v667, %v682
        %vm1791 = vcmp.eq.s32.totalorder %v667, %v686
        %vm1792 = vcmp.eq.s32.totalorder %v667, %v690
        %vm1793 = vcmp.eq.s32.totalorder %v667, %v694
        %vm1794 = vcmp.eq.s32.totalorder %v667, %v698
        %vm1795 = vcmp.eq.s32.totalorder %v667, %v702
        %vm1796 = vcmp.eq.s32.totalorder %v667, %v709
        %vm1797 = vcmp.eq.s32.totalorder %v667, %v713
        %vm1798 = vcmp.eq.s32.totalorder %v667, %v717
        %vm1799 = vcmp.eq.s32.totalorder %v667, %v721
        %vm1800 = vcmp.eq.s32.totalorder %v667, %v725
        %vm1801 = vcmp.eq.s32.totalorder %v667, %v729
        %vm1802 = vcmp.eq.s32.totalorder %v667, %v733
        %vm1803 = vcmp.eq.s32.totalorder %v667, %v737
        %vm1804 = vcmp.eq.s32.totalorder %v667, %v744
        %vm1805 = vcmp.eq.s32.totalorder %v667, %v748
        %vm1806 = vcmp.eq.s32.totalorder %v667, %v752
        %vm1807 = vcmp.eq.s32.totalorder %v667, %v756
        %vm1808 = vcmp.eq.s32.totalorder %v667, %v760
        %vm1809 = vcmp.eq.s32.totalorder %v667, %v764
        %vm1810 = vcmp.eq.s32.totalorder %v667, %v768
        %vm1811 = vcmp.eq.s32.totalorder %v667, %v772
        %vm1812 = vcmp.eq.s32.totalorder %v667, %v779
        %vm1813 = vcmp.eq.s32.totalorder %v667, %v783
        %vm1814 = vcmp.eq.s32.totalorder %v667, %v787
        %vm1815 = vcmp.eq.s32.totalorder %v667, %v791
        %vm1816 = vcmp.eq.s32.totalorder %v667, %v795
        %vm1817 = vcmp.eq.s32.totalorder %v667, %v799
        %vm1818 = vcmp.eq.s32.totalorder %v667, %v803
        %vm1819 = vcmp.eq.s32.totalorder %v667, %v807
        %vm1820 = vcmp.eq.s32.totalorder %v667, %v814
        %vm1821 = vcmp.eq.s32.totalorder %v667, %v818
        %vm1822 = vcmp.eq.s32.totalorder %v667, %v822
        %vm1823 = vcmp.eq.s32.totalorder %v667, %v826
        %vm1824 = vcmp.eq.s32.totalorder %v667, %v830
        %vm1825 = vcmp.eq.s32.totalorder %v667, %v834
        %vm1826 = vcmp.eq.s32.totalorder %v667, %v838
        %vm1827 = vcmp.eq.s32.totalorder %v667, %v842
        %vm1828 = vcmp.eq.s32.totalorder %v667, %v849
        %vm1829 = vcmp.eq.s32.totalorder %v667, %v853
        %vm1830 = vcmp.eq.s32.totalorder %v667, %v857
        %vm1831 = vcmp.eq.s32.totalorder %v667, %v861
        %vm1832 = vcmp.eq.s32.totalorder %v667, %v865
        %vm1833 = vcmp.eq.s32.totalorder %v667, %v869
        %vm1834 = vcmp.eq.s32.totalorder %v667, %v873
        %vm1835 = vcmp.eq.s32.totalorder %v667, %v877
        %vm1836 = vcmp.eq.s32.totalorder %v667, %v884
        %vm1837 = vcmp.eq.s32.totalorder %v667, %v888
        %vm1838 = vcmp.eq.s32.totalorder %v667, %v892
        %vm1839 = vcmp.eq.s32.totalorder %v667, %v896
        %vm1840 = vcmp.eq.s32.totalorder %v667, %v900
        %vm1841 = vcmp.eq.s32.totalorder %v667, %v904
        %vm1842 = vcmp.eq.s32.totalorder %v667, %v908
        %vm1843 = vcmp.eq.s32.totalorder %v667, %v912
        %vm1844 = vcmp.eq.s32.totalorder %v667, %v919
        %vm1845 = vcmp.eq.s32.totalorder %v667, %v923
        %vm1846 = vcmp.eq.s32.totalorder %v667, %v927
        %vm1847 = vcmp.eq.s32.totalorder %v667, %v931
        %vm1848 = vcmp.eq.s32.totalorder %v667, %v935
        %vm1849 = vcmp.eq.s32.totalorder %v667, %v939
        %vm1850 = vcmp.eq.s32.totalorder %v667, %v943
        %vm1851 = vcmp.eq.s32.totalorder %v667, %v947
        %vm1852 = vcmp.eq.s32.totalorder %v667, %v954
        %vm1853 = vcmp.eq.s32.totalorder %v667, %v958
        %vm1854 = vcmp.eq.s32.totalorder %v667, %v962
        %vm1855 = vcmp.eq.s32.totalorder %v667, %v966
        %vm1856 = vcmp.eq.s32.totalorder %v667, %v970
        %vm1857 = vcmp.eq.s32.totalorder %v667, %v974
        %vm1858 = vcmp.eq.s32.totalorder %v667, %v978
        %vm1859 = vcmp.eq.s32.totalorder %v667, %v982
        %vm1860 = vcmp.eq.s32.totalorder %v667, %v989
        %vm1861 = vcmp.eq.s32.totalorder %v667, %v993
        %vm1862 = vcmp.eq.s32.totalorder %v667, %v997
        %vm1863 = vcmp.eq.s32.totalorder %v667, %v1001
        %vm1864 = vcmp.eq.s32.totalorder %v667, %v1005
        %vm1865 = vcmp.eq.s32.totalorder %v667, %v1009
        %vm1866 = vcmp.eq.s32.totalorder %v667, %v1013
        %vm1867 = vcmp.eq.s32.totalorder %v667, %v1017
        %vm1868 = vcmp.eq.s32.totalorder %v667, %v1024
        %vm1869 = vcmp.eq.s32.totalorder %v667, %v1028
        %vm1870 = vcmp.eq.s32.totalorder %v667, %v1032
        %vm1871 = vcmp.eq.s32.totalorder %v667, %v1036
        %vm1872 = vcmp.eq.s32.totalorder %v667, %v1040
        %vm1873 = vcmp.eq.s32.totalorder %v667, %v1044
        %vm1874 = vcmp.eq.s32.totalorder %v667, %v1048
        %vm1875 = vcmp.eq.s32.totalorder %v667, %v1052
        %vm1876 = vcmp.eq.s32.totalorder %v667, %v1059
        %vm1877 = vcmp.eq.s32.totalorder %v667, %v1063
        %vm1878 = vcmp.eq.s32.totalorder %v667, %v1067
        %vm1879 = vcmp.eq.s32.totalorder %v667, %v1071
        %vm1880 = vcmp.eq.s32.totalorder %v667, %v1075
        %vm1881 = vcmp.eq.s32.totalorder %v667, %v1079
        %vm1882 = vcmp.eq.s32.totalorder %v667, %v1083
        %vm1883 = vcmp.eq.s32.totalorder %v667, %v1087
        %vm1884 = vcmp.eq.s32.totalorder %v667, %v1094
        %vm1885 = vcmp.eq.s32.totalorder %v667, %v1098
        %vm1886 = vcmp.eq.s32.totalorder %v667, %v1102
        %vm1887 = vcmp.eq.s32.totalorder %v667, %v1106
        %vm1888 = vcmp.eq.s32.totalorder %v667, %v1110
        %vm1889 = vcmp.eq.s32.totalorder %v667, %v1114
        %vm1890 = vcmp.eq.s32.totalorder %v667, %v1118
        %vm1891 = vcmp.eq.s32.totalorder %v667, %v1122
        %vm1892 = vcmp.eq.s32.totalorder %v667, %v1129
        %vm1893 = vcmp.eq.s32.totalorder %v667, %v1133
        %vm1894 = vcmp.eq.s32.totalorder %v667, %v1137
        %vm1895 = vcmp.eq.s32.totalorder %v667, %v1141
        %vm1896 = vcmp.eq.s32.totalorder %v667, %v1145
        %vm1897 = vcmp.eq.s32.totalorder %v667, %v1149
        %vm1898 = vcmp.eq.s32.totalorder %v667, %v1153
        %vm1899 = vcmp.eq.s32.totalorder %v667, %v1157
        %vm1900 = vcmp.eq.s32.totalorder %v667, %v1164
        %vm1901 = vcmp.eq.s32.totalorder %v667, %v1168
        %vm1902 = vcmp.eq.s32.totalorder %v667, %v1172
        %vm1903 = vcmp.eq.s32.totalorder %v667, %v1176
        %vm1904 = vcmp.eq.s32.totalorder %v667, %v1180
        %vm1905 = vcmp.eq.s32.totalorder %v667, %v1184
        %vm1906 = vcmp.eq.s32.totalorder %v667, %v1188
        %vm1907 = vcmp.eq.s32.totalorder %v667, %v1192
        %vm1908 = vcmp.eq.s32.totalorder %v667, %v1199
        %vm1909 = vcmp.eq.s32.totalorder %v667, %v1203
        %vm1910 = vcmp.eq.s32.totalorder %v667, %v1207
        %vm1911 = vcmp.eq.s32.totalorder %v667, %v1211
        %vm1912 = vcmp.eq.s32.totalorder %v667, %v1215
        %vm1913 = vcmp.eq.s32.totalorder %v667, %v1219
        %vm1914 = vcmp.eq.s32.totalorder %v667, %v1223
        %vm1915 = vcmp.eq.s32.totalorder %v667, %v1227
        %vm1916 = vcmp.eq.s32.totalorder %v667, %v1234
        %vm1917 = vcmp.eq.s32.totalorder %v667, %v1238
        %vm1918 = vcmp.eq.s32.totalorder %v667, %v1242
        %vm1919 = vcmp.eq.s32.totalorder %v667, %v1246
        %vm1920 = vcmp.eq.s32.totalorder %v667, %v1250
        %vm1921 = vcmp.eq.s32.totalorder %v667, %v1254
        %vm1922 = vcmp.eq.s32.totalorder %v667, %v1258
        %vm1923 = vcmp.eq.s32.totalorder %v667, %v1262
        %vm1924 = vcmp.eq.s32.totalorder %v667, %v1269
        %vm1925 = vcmp.eq.s32.totalorder %v667, %v1273
        %vm1926 = vcmp.eq.s32.totalorder %v667, %v1277
        %vm1927 = vcmp.eq.s32.totalorder %v667, %v1281
        %vm1928 = vcmp.eq.s32.totalorder %v667, %v1285
        %vm1929 = vcmp.eq.s32.totalorder %v667, %v1289
        %vm1930 = vcmp.eq.s32.totalorder %v667, %v1293
        %vm1931 = vcmp.eq.s32.totalorder %v667, %v1297
        %vm1932 = vcmp.eq.s32.totalorder %v667, %v1304
        %vm1933 = vcmp.eq.s32.totalorder %v667, %v1308
        %vm1934 = vcmp.eq.s32.totalorder %v667, %v1312
        %vm1935 = vcmp.eq.s32.totalorder %v667, %v1316
        %vm1936 = vcmp.eq.s32.totalorder %v667, %v1320
        %vm1937 = vcmp.eq.s32.totalorder %v667, %v1324
        %vm1938 = vcmp.eq.s32.totalorder %v667, %v1328
        %vm1939 = vcmp.eq.s32.totalorder %v667, %v1332
        %vm1940 = vcmp.eq.s32.totalorder %v667, %v1339
        %vm1941 = vcmp.eq.s32.totalorder %v667, %v1343
        %vm1942 = vcmp.eq.s32.totalorder %v667, %v1347
        %vm1943 = vcmp.eq.s32.totalorder %v667, %v1351
        %vm1944 = vcmp.eq.s32.totalorder %v667, %v1355
        %vm1945 = vcmp.eq.s32.totalorder %v667, %v1359
        %vm1946 = vcmp.eq.s32.totalorder %v667, %v1363
        %vm1947 = vcmp.eq.s32.totalorder %v667, %v1367
        %vm1948 = vcmp.eq.s32.totalorder %v667, %v1374
        %vm1949 = vcmp.eq.s32.totalorder %v667, %v1378
        %vm1950 = vcmp.eq.s32.totalorder %v667, %v1382
        %vm1951 = vcmp.eq.s32.totalorder %v667, %v1386
        %vm1952 = vcmp.eq.s32.totalorder %v667, %v1390
        %vm1953 = vcmp.eq.s32.totalorder %v667, %v1394
        %vm1954 = vcmp.eq.s32.totalorder %v667, %v1398
        %vm1955 = vcmp.eq.s32.totalorder %v667, %v1402
        %vm1956 = vcmp.eq.s32.totalorder %v667, %v1409
        %vm1957 = vcmp.eq.s32.totalorder %v667, %v1413
        %vm1958 = vcmp.eq.s32.totalorder %v667, %v1417
        %vm1959 = vcmp.eq.s32.totalorder %v667, %v1421
        %vm1960 = vcmp.eq.s32.totalorder %v667, %v1425
        %vm1961 = vcmp.eq.s32.totalorder %v667, %v1429
        %vm1962 = vcmp.eq.s32.totalorder %v667, %v1433
        %vm1963 = vcmp.eq.s32.totalorder %v667, %v1437
        %vm1964 = vcmp.eq.s32.totalorder %v667, %v1444
        %vm1965 = vcmp.eq.s32.totalorder %v667, %v1448
        %vm1966 = vcmp.eq.s32.totalorder %v667, %v1452
        %vm1967 = vcmp.eq.s32.totalorder %v667, %v1456
        %vm1968 = vcmp.eq.s32.totalorder %v667, %v1460
        %vm1969 = vcmp.eq.s32.totalorder %v667, %v1464
        %vm1970 = vcmp.eq.s32.totalorder %v667, %v1468
        %vm1971 = vcmp.eq.s32.totalorder %v667, %v1472
        %vm1972 = vcmp.eq.s32.totalorder %v667, %v1479
        %vm1973 = vcmp.eq.s32.totalorder %v667, %v1483
        %vm1974 = vcmp.eq.s32.totalorder %v667, %v1487
        %vm1975 = vcmp.eq.s32.totalorder %v667, %v1491
        %vm1976 = vcmp.eq.s32.totalorder %v667, %v1495
        %vm1977 = vcmp.eq.s32.totalorder %v667, %v1499
        %vm1978 = vcmp.eq.s32.totalorder %v667, %v1503
        %vm1979 = vcmp.eq.s32.totalorder %v667, %v1507
        %vm1980 = vcmp.eq.s32.totalorder %v667, %v1514
        %vm1981 = vcmp.eq.s32.totalorder %v667, %v1518
        %vm1982 = vcmp.eq.s32.totalorder %v667, %v1522
        %vm1983 = vcmp.eq.s32.totalorder %v667, %v1526
        %vm1984 = vcmp.eq.s32.totalorder %v667, %v1530
        %vm1985 = vcmp.eq.s32.totalorder %v667, %v1534
        %vm1986 = vcmp.eq.s32.totalorder %v667, %v1538
        %vm1987 = vcmp.eq.s32.totalorder %v667, %v1542
        %vm1988 = vcmp.eq.s32.totalorder %v667, %v1549
        %vm1989 = vcmp.eq.s32.totalorder %v667, %v1553
        %vm1990 = vcmp.eq.s32.totalorder %v667, %v1557
        %vm1991 = vcmp.eq.s32.totalorder %v667, %v1561
        %vm1992 = vcmp.eq.s32.totalorder %v667, %v1565
        %vm1993 = vcmp.eq.s32.totalorder %v667, %v1569
        %vm1994 = vcmp.eq.s32.totalorder %v667, %v1573
        %vm1995 = vcmp.eq.s32.totalorder %v667, %v1577
        %vm1996 = vcmp.eq.s32.totalorder %v667, %v1584
        %vm1997 = vcmp.eq.s32.totalorder %v667, %v1588
        %vm1998 = vcmp.eq.s32.totalorder %v667, %v1592
        %vm1999 = vcmp.eq.s32.totalorder %v667, %v1596
        %vm2000 = vcmp.eq.s32.totalorder %v667, %v1600
        %vm2001 = vcmp.eq.s32.totalorder %v667, %v1604
        %vm2002 = vcmp.eq.s32.totalorder %v667, %v1608
        %vm2003 = vcmp.eq.s32.totalorder %v667, %v1612
        %vm2004 = vcmp.eq.s32.totalorder %v667, %v1619
        %vm2005 = vcmp.eq.s32.totalorder %v667, %v1623
        %vm2006 = vcmp.eq.s32.totalorder %v667, %v1627
        %vm2007 = vcmp.eq.s32.totalorder %v667, %v1631
        %vm2008 = vcmp.eq.s32.totalorder %v667, %v1635
        %vm2009 = vcmp.eq.s32.totalorder %v667, %v1639
        %vm2010 = vcmp.eq.s32.totalorder %v667, %v1643
        %vm2011 = vcmp.eq.s32.totalorder %v667, %v1647
        %vm2012 = vcmp.eq.s32.totalorder %v667, %v1654
        %vm2013 = vcmp.eq.s32.totalorder %v667, %v1658
        %vm2014 = vcmp.eq.s32.totalorder %v667, %v1662
        %vm2015 = vcmp.eq.s32.totalorder %v667, %v1666
        %vm2016 = vcmp.eq.s32.totalorder %v667, %v1670
        %vm2017 = vcmp.eq.s32.totalorder %v667, %v1674
        %vm2018 = vcmp.eq.s32.totalorder %v667, %v1678
        %vm2019 = vcmp.eq.s32.totalorder %v667, %v1682
        %vm2020 = vcmp.eq.s32.totalorder %v667, %v1689
        %vm2021 = vcmp.eq.s32.totalorder %v667, %v1693
        %vm2022 = vcmp.eq.s32.totalorder %v667, %v1697
        %vm2023 = vcmp.eq.s32.totalorder %v667, %v1701
        %vm2024 = vcmp.eq.s32.totalorder %v667, %v1705
        %vm2025 = vcmp.eq.s32.totalorder %v667, %v1709
        %vm2026 = vcmp.eq.s32.totalorder %v667, %v1713
        %vm2027 = vcmp.eq.s32.totalorder %v667, %v1717
        %vm2028 = vcmp.eq.s32.totalorder %v667, %v1724
        %vm2029 = vcmp.eq.s32.totalorder %v667, %v1728
        %vm2030 = vcmp.eq.s32.totalorder %v667, %v1732
        %vm2031 = vcmp.eq.s32.totalorder %v667, %v1736
        %vm2032 = vcmp.eq.s32.totalorder %v667, %v1740
        %vm2033 = vcmp.eq.s32.totalorder %v667, %v1744
        %vm2034 = vcmp.eq.s32.totalorder %v667, %v1748
        %vm2035 = vcmp.eq.s32.totalorder %v667, %v1752
        %vm2036 = vcmp.eq.s32.totalorder %v667, %v1759
        %vm2037 = vcmp.eq.s32.totalorder %v667, %v1763
        %vm2038 = vcmp.eq.s32.totalorder %v667, %v1767
        %vm2039 = vcmp.eq.s32.totalorder %v667, %v1771
        %vm2040 = vcmp.eq.s32.totalorder %v667, %v1775
        %vm2041 = vcmp.eq.s32.totalorder %v667, %v1779
        %vm2042 = vcmp.eq.s32.totalorder %v667, %v1783
        %vm2043 = vcmp.eq.s32.totalorder %v667, %v1787
        %v2044 = vsel %vm1788, 1, 0
        %v2045 = vsel %vm1789, 1, 0
        %v2046 = vsel %vm1790, 1, 0
        %v2047 = vsel %vm1791, 1, 0
        %v2048 = vsel %vm1792, 1, 0
        %v2049 = vsel %vm1793, 1, 0
        %v2050 = vsel %vm1794, 1, 0
        %v2051 = vsel %vm1795, 1, 0
        %v2052 = vsel %vm1796, 1, 0
        %v2053 = vsel %vm1797, 1, 0
        %v2054 = vsel %vm1798, 1, 0
        %v2055 = vsel %vm1799, 1, 0
        %v2056 = vsel %vm1800, 1, 0
        %v2057 = vsel %vm1801, 1, 0
        %v2058 = vsel %vm1802, 1, 0
        %v2059 = vsel %vm1803, 1, 0
        %v2060 = vsel %vm1804, 1, 0
        %v2061 = vsel %vm1805, 1, 0
        %v2062 = vsel %vm1806, 1, 0
        %v2063 = vsel %vm1807, 1, 0
        %v2064 = vsel %vm1808, 1, 0
        %v2065 = vsel %vm1809, 1, 0
        %v2066 = vsel %vm1810, 1, 0
        %v2067 = vsel %vm1811, 1, 0
        %v2068 = vsel %vm1812, 1, 0
        %v2069 = vsel %vm1813, 1, 0
        %v2070 = vsel %vm1814, 1, 0
        %v2071 = vsel %vm1815, 1, 0
        %v2072 = vsel %vm1816, 1, 0
        %v2073 = vsel %vm1817, 1, 0
        %v2074 = vsel %vm1818, 1, 0
        %v2075 = vsel %vm1819, 1, 0
        %v2076 = vsel %vm1820, 1, 0
        %v2077 = vsel %vm1821, 1, 0
        %v2078 = vsel %vm1822, 1, 0
        %v2079 = vsel %vm1823, 1, 0
        %v2080 = vsel %vm1824, 1, 0
        %v2081 = vsel %vm1825, 1, 0
        %v2082 = vsel %vm1826, 1, 0
        %v2083 = vsel %vm1827, 1, 0
        %v2084 = vsel %vm1828, 1, 0
        %v2085 = vsel %vm1829, 1, 0
        %v2086 = vsel %vm1830, 1, 0
        %v2087 = vsel %vm1831, 1, 0
        %v2088 = vsel %vm1832, 1, 0
        %v2089 = vsel %vm1833, 1, 0
        %v2090 = vsel %vm1834, 1, 0
        %v2091 = vsel %vm1835, 1, 0
        %v2092 = vsel %vm1836, 1, 0
        %v2093 = vsel %vm1837, 1, 0
        %v2094 = vsel %vm1838, 1, 0
        %v2095 = vsel %vm1839, 1, 0
        %v2096 = vsel %vm1840, 1, 0
        %v2097 = vsel %vm1841, 1, 0
        %v2098 = vsel %vm1842, 1, 0
        %v2099 = vsel %vm1843, 1, 0
        %v2100 = vsel %vm1844, 1, 0
        %v2101 = vsel %vm1845, 1, 0
        %v2102 = vsel %vm1846, 1, 0
        %v2103 = vsel %vm1847, 1, 0
        %v2104 = vsel %vm1848, 1, 0
        %v2105 = vsel %vm1849, 1, 0
        %v2106 = vsel %vm1850, 1, 0
        %v2107 = vsel %vm1851, 1, 0
        %v2108 = vsel %vm1852, 1, 0
        %v2109 = vsel %vm1853, 1, 0
        %v2110 = vsel %vm1854, 1, 0
        %v2111 = vsel %vm1855, 1, 0
        %v2112 = vsel %vm1856, 1, 0
        %v2113 = vsel %vm1857, 1, 0
        %v2114 = vsel %vm1858, 1, 0
        %v2115 = vsel %vm1859, 1, 0
        %v2116 = vsel %vm1860, 1, 0
        %v2117 = vsel %vm1861, 1, 0
        %v2118 = vsel %vm1862, 1, 0
        %v2119 = vsel %vm1863, 1, 0
        %v2120 = vsel %vm1864, 1, 0
        %v2121 = vsel %vm1865, 1, 0
        %v2122 = vsel %vm1866, 1, 0
        %v2123 = vsel %vm1867, 1, 0
        %v2124 = vsel %vm1868, 1, 0
        %v2125 = vsel %vm1869, 1, 0
        %v2126 = vsel %vm1870, 1, 0
        %v2127 = vsel %vm1871, 1, 0
        %v2128 = vsel %vm1872, 1, 0
        %v2129 = vsel %vm1873, 1, 0
        %v2130 = vsel %vm1874, 1, 0
        %v2131 = vsel %vm1875, 1, 0
        %v2132 = vsel %vm1876, 1, 0
        %v2133 = vsel %vm1877, 1, 0
        %v2134 = vsel %vm1878, 1, 0
        %v2135 = vsel %vm1879, 1, 0
        %v2136 = vsel %vm1880, 1, 0
        %v2137 = vsel %vm1881, 1, 0
        %v2138 = vsel %vm1882, 1, 0
        %v2139 = vsel %vm1883, 1, 0
        %v2140 = vsel %vm1884, 1, 0
        %v2141 = vsel %vm1885, 1, 0
        %v2142 = vsel %vm1886, 1, 0
        %v2143 = vsel %vm1887, 1, 0
        %v2144 = vsel %vm1888, 1, 0
        %v2145 = vsel %vm1889, 1, 0
        %v2146 = vsel %vm1890, 1, 0
        %v2147 = vsel %vm1891, 1, 0
        %v2148 = vsel %vm1892, 1, 0
        %v2149 = vsel %vm1893, 1, 0
        %v2150 = vsel %vm1894, 1, 0
        %v2151 = vsel %vm1895, 1, 0
        %v2152 = vsel %vm1896, 1, 0
        %v2153 = vsel %vm1897, 1, 0
        %v2154 = vsel %vm1898, 1, 0
        %v2155 = vsel %vm1899, 1, 0
        %v2156 = vsel %vm1900, 1, 0
        %v2157 = vsel %vm1901, 1, 0
        %v2158 = vsel %vm1902, 1, 0
        %v2159 = vsel %vm1903, 1, 0
        %v2160 = vsel %vm1904, 1, 0
        %v2161 = vsel %vm1905, 1, 0
        %v2162 = vsel %vm1906, 1, 0
        %v2163 = vsel %vm1907, 1, 0
        %v2164 = vsel %vm1908, 1, 0
        %v2165 = vsel %vm1909, 1, 0
        %v2166 = vsel %vm1910, 1, 0
        %v2167 = vsel %vm1911, 1, 0
        %v2168 = vsel %vm1912, 1, 0
        %v2169 = vsel %vm1913, 1, 0
        %v2170 = vsel %vm1914, 1, 0
        %v2171 = vsel %vm1915, 1, 0
        %v2172 = vsel %vm1916, 1, 0
        %v2173 = vsel %vm1917, 1, 0
        %v2174 = vsel %vm1918, 1, 0
        %v2175 = vsel %vm1919, 1, 0
        %v2176 = vsel %vm1920, 1, 0
        %v2177 = vsel %vm1921, 1, 0
        %v2178 = vsel %vm1922, 1, 0
        %v2179 = vsel %vm1923, 1, 0
        %v2180 = vsel %vm1924, 1, 0
        %v2181 = vsel %vm1925, 1, 0
        %v2182 = vsel %vm1926, 1, 0
        %v2183 = vsel %vm1927, 1, 0
        %v2184 = vsel %vm1928, 1, 0
        %v2185 = vsel %vm1929, 1, 0
        %v2186 = vsel %vm1930, 1, 0
        %v2187 = vsel %vm1931, 1, 0
        %v2188 = vsel %vm1932, 1, 0
        %v2189 = vsel %vm1933, 1, 0
        %v2190 = vsel %vm1934, 1, 0
        %v2191 = vsel %vm1935, 1, 0
        %v2192 = vsel %vm1936, 1, 0
        %v2193 = vsel %vm1937, 1, 0
        %v2194 = vsel %vm1938, 1, 0
        %v2195 = vsel %vm1939, 1, 0
        %v2196 = vsel %vm1940, 1, 0
        %v2197 = vsel %vm1941, 1, 0
        %v2198 = vsel %vm1942, 1, 0
        %v2199 = vsel %vm1943, 1, 0
        %v2200 = vsel %vm1944, 1, 0
        %v2201 = vsel %vm1945, 1, 0
        %v2202 = vsel %vm1946, 1, 0
        %v2203 = vsel %vm1947, 1, 0
        %v2204 = vsel %vm1948, 1, 0
        %v2205 = vsel %vm1949, 1, 0
        %v2206 = vsel %vm1950, 1, 0
        %v2207 = vsel %vm1951, 1, 0
        %v2208 = vsel %vm1952, 1, 0
        %v2209 = vsel %vm1953, 1, 0
        %v2210 = vsel %vm1954, 1, 0
        %v2211 = vsel %vm1955, 1, 0
        %v2212 = vsel %vm1956, 1, 0
        %v2213 = vsel %vm1957, 1, 0
        %v2214 = vsel %vm1958, 1, 0
        %v2215 = vsel %vm1959, 1, 0
        %v2216 = vsel %vm1960, 1, 0
        %v2217 = vsel %vm1961, 1, 0
        %v2218 = vsel %vm1962, 1, 0
        %v2219 = vsel %vm1963, 1, 0
        %v2220 = vsel %vm1964, 1, 0
        %v2221 = vsel %vm1965, 1, 0
        %v2222 = vsel %vm1966, 1, 0
        %v2223 = vsel %vm1967, 1, 0
        %v2224 = vsel %vm1968, 1, 0
        %v2225 = vsel %vm1969, 1, 0
        %v2226 = vsel %vm1970, 1, 0
        %v2227 = vsel %vm1971, 1, 0
        %v2228 = vsel %vm1972, 1, 0
        %v2229 = vsel %vm1973, 1, 0
        %v2230 = vsel %vm1974, 1, 0
        %v2231 = vsel %vm1975, 1, 0
        %v2232 = vsel %vm1976, 1, 0
        %v2233 = vsel %vm1977, 1, 0
        %v2234 = vsel %vm1978, 1, 0
        %v2235 = vsel %vm1979, 1, 0
        %v2236 = vsel %vm1980, 1, 0
        %v2237 = vsel %vm1981, 1, 0
        %v2238 = vsel %vm1982, 1, 0
        %v2239 = vsel %vm1983, 1, 0
        %v2240 = vsel %vm1984, 1, 0
        %v2241 = vsel %vm1985, 1, 0
        %v2242 = vsel %vm1986, 1, 0
        %v2243 = vsel %vm1987, 1, 0
        %v2244 = vsel %vm1988, 1, 0
        %v2245 = vsel %vm1989, 1, 0
        %v2246 = vsel %vm1990, 1, 0
        %v2247 = vsel %vm1991, 1, 0
        %v2248 = vsel %vm1992, 1, 0
        %v2249 = vsel %vm1993, 1, 0
        %v2250 = vsel %vm1994, 1, 0
        %v2251 = vsel %vm1995, 1, 0
        %v2252 = vsel %vm1996, 1, 0
        %v2253 = vsel %vm1997, 1, 0
        %v2254 = vsel %vm1998, 1, 0
        %v2255 = vsel %vm1999, 1, 0
        %v2256 = vsel %vm2000, 1, 0
        %v2257 = vsel %vm2001, 1, 0
        %v2258 = vsel %vm2002, 1, 0
        %v2259 = vsel %vm2003, 1, 0
        %v2260 = vsel %vm2004, 1, 0
        %v2261 = vsel %vm2005, 1, 0
        %v2262 = vsel %vm2006, 1, 0
        %v2263 = vsel %vm2007, 1, 0
        %v2264 = vsel %vm2008, 1, 0
        %v2265 = vsel %vm2009, 1, 0
        %v2266 = vsel %vm2010, 1, 0
        %v2267 = vsel %vm2011, 1, 0
        %v2268 = vsel %vm2012, 1, 0
        %v2269 = vsel %vm2013, 1, 0
        %v2270 = vsel %vm2014, 1, 0
        %v2271 = vsel %vm2015, 1, 0
        %v2272 = vsel %vm2016, 1, 0
        %v2273 = vsel %vm2017, 1, 0
        %v2274 = vsel %vm2018, 1, 0
        %v2275 = vsel %vm2019, 1, 0
        %v2276 = vsel %vm2020, 1, 0
        %v2277 = vsel %vm2021, 1, 0
        %v2278 = vsel %vm2022, 1, 0
        %v2279 = vsel %vm2023, 1, 0
        %v2280 = vsel %vm2024, 1, 0
        %v2281 = vsel %vm2025, 1, 0
        %v2282 = vsel %vm2026, 1, 0
        %v2283 = vsel %vm2027, 1, 0
        %v2284 = vsel %vm2028, 1, 0
        %v2285 = vsel %vm2029, 1, 0
        %v2286 = vsel %vm2030, 1, 0
        %v2287 = vsel %vm2031, 1, 0
        %v2288 = vsel %vm2032, 1, 0
        %v2289 = vsel %vm2033, 1, 0
        %v2290 = vsel %vm2034, 1, 0
        %v2291 = vsel %vm2035, 1, 0
        %v2292 = vsel %vm2036, 1, 0
        %v2293 = vsel %vm2037, 1, 0
        %v2294 = vsel %vm2038, 1, 0
        %v2295 = vsel %vm2039, 1, 0
        %v2296 = vsel %vm2040, 1, 0
        %v2297 = vsel %vm2041, 1, 0
        %v2298 = vsel %vm2042, 1, 0
        %v2299 = vsel %vm2043, 1, 0
        %v2300 = vcvt.s32.f32 %v2044
        %v2301 = vcvt.s32.f32 %v2045
        %v2302 = vcvt.s32.f32 %v2046
        %v2303 = vcvt.s32.f32 %v2047
        %v2304 = vcvt.s32.f32 %v2048
        %v2305 = vcvt.s32.f32 %v2049
        %v2306 = vcvt.s32.f32 %v2050
        %v2307 = vcvt.s32.f32 %v2051
        %v2308 = vcvt.s32.f32 %v2052
        %v2309 = vcvt.s32.f32 %v2053
        %v2310 = vcvt.s32.f32 %v2054
        %v2311 = vcvt.s32.f32 %v2055
        %v2312 = vcvt.s32.f32 %v2056
        %v2313 = vcvt.s32.f32 %v2057
        %v2314 = vcvt.s32.f32 %v2058
        %v2315 = vcvt.s32.f32 %v2059
        %v2316 = vcvt.s32.f32 %v2060
        %v2317 = vcvt.s32.f32 %v2061
        %v2318 = vcvt.s32.f32 %v2062
        %v2319 = vcvt.s32.f32 %v2063
        %v2320 = vcvt.s32.f32 %v2064
        %v2321 = vcvt.s32.f32 %v2065
        %v2322 = vcvt.s32.f32 %v2066
        %v2323 = vcvt.s32.f32 %v2067
        %v2324 = vcvt.s32.f32 %v2068
        %v2325 = vcvt.s32.f32 %v2069
        %v2326 = vcvt.s32.f32 %v2070
        %v2327 = vcvt.s32.f32 %v2071
        %v2328 = vcvt.s32.f32 %v2072
        %v2329 = vcvt.s32.f32 %v2073
        %v2330 = vcvt.s32.f32 %v2074
        %v2331 = vcvt.s32.f32 %v2075
        %v2332 = vcvt.s32.f32 %v2076
        %v2333 = vcvt.s32.f32 %v2077
        %v2334 = vcvt.s32.f32 %v2078
        %v2335 = vcvt.s32.f32 %v2079
        %v2336 = vcvt.s32.f32 %v2080
        %v2337 = vcvt.s32.f32 %v2081
        %v2338 = vcvt.s32.f32 %v2082
        %v2339 = vcvt.s32.f32 %v2083
        %v2340 = vcvt.s32.f32 %v2084
        %v2341 = vcvt.s32.f32 %v2085
        %v2342 = vcvt.s32.f32 %v2086
        %v2343 = vcvt.s32.f32 %v2087
        %v2344 = vcvt.s32.f32 %v2088
        %v2345 = vcvt.s32.f32 %v2089
        %v2346 = vcvt.s32.f32 %v2090
        %v2347 = vcvt.s32.f32 %v2091
        %v2348 = vcvt.s32.f32 %v2092
        %v2349 = vcvt.s32.f32 %v2093
        %v2350 = vcvt.s32.f32 %v2094
        %v2351 = vcvt.s32.f32 %v2095
        %v2352 = vcvt.s32.f32 %v2096
        %v2353 = vcvt.s32.f32 %v2097
        %v2354 = vcvt.s32.f32 %v2098
        %v2355 = vcvt.s32.f32 %v2099
        %v2356 = vcvt.s32.f32 %v2100
        %v2357 = vcvt.s32.f32 %v2101
        %v2358 = vcvt.s32.f32 %v2102
        %v2359 = vcvt.s32.f32 %v2103
        %v2360 = vcvt.s32.f32 %v2104
        %v2361 = vcvt.s32.f32 %v2105
        %v2362 = vcvt.s32.f32 %v2106
        %v2363 = vcvt.s32.f32 %v2107
        %v2364 = vcvt.s32.f32 %v2108
        %v2365 = vcvt.s32.f32 %v2109
        %v2366 = vcvt.s32.f32 %v2110
        %v2367 = vcvt.s32.f32 %v2111
        %v2368 = vcvt.s32.f32 %v2112
        %v2369 = vcvt.s32.f32 %v2113
        %v2370 = vcvt.s32.f32 %v2114
        %v2371 = vcvt.s32.f32 %v2115
        %v2372 = vcvt.s32.f32 %v2116
        %v2373 = vcvt.s32.f32 %v2117
        %v2374 = vcvt.s32.f32 %v2118
        %v2375 = vcvt.s32.f32 %v2119
        %v2376 = vcvt.s32.f32 %v2120
        %v2377 = vcvt.s32.f32 %v2121
        %v2378 = vcvt.s32.f32 %v2122
        %v2379 = vcvt.s32.f32 %v2123
        %v2380 = vcvt.s32.f32 %v2124
        %v2381 = vcvt.s32.f32 %v2125
        %v2382 = vcvt.s32.f32 %v2126
        %v2383 = vcvt.s32.f32 %v2127
        %v2384 = vcvt.s32.f32 %v2128
        %v2385 = vcvt.s32.f32 %v2129
        %v2386 = vcvt.s32.f32 %v2130
        %v2387 = vcvt.s32.f32 %v2131
        %v2388 = vcvt.s32.f32 %v2132
        %v2389 = vcvt.s32.f32 %v2133
        %v2390 = vcvt.s32.f32 %v2134
        %v2391 = vcvt.s32.f32 %v2135
        %v2392 = vcvt.s32.f32 %v2136
        %v2393 = vcvt.s32.f32 %v2137
        %v2394 = vcvt.s32.f32 %v2138
        %v2395 = vcvt.s32.f32 %v2139
        %v2396 = vcvt.s32.f32 %v2140
        %v2397 = vcvt.s32.f32 %v2141
        %v2398 = vcvt.s32.f32 %v2142
        %v2399 = vcvt.s32.f32 %v2143
        %v2400 = vcvt.s32.f32 %v2144
        %v2401 = vcvt.s32.f32 %v2145
        %v2402 = vcvt.s32.f32 %v2146
        %v2403 = vcvt.s32.f32 %v2147
        %v2404 = vcvt.s32.f32 %v2148
        %v2405 = vcvt.s32.f32 %v2149
        %v2406 = vcvt.s32.f32 %v2150
        %v2407 = vcvt.s32.f32 %v2151
        %v2408 = vcvt.s32.f32 %v2152
        %v2409 = vcvt.s32.f32 %v2153
        %v2410 = vcvt.s32.f32 %v2154
        %v2411 = vcvt.s32.f32 %v2155
        %v2412 = vcvt.s32.f32 %v2156
        %v2413 = vcvt.s32.f32 %v2157
        %v2414 = vcvt.s32.f32 %v2158
        %v2415 = vcvt.s32.f32 %v2159
        %v2416 = vcvt.s32.f32 %v2160
        %v2417 = vcvt.s32.f32 %v2161
        %v2418 = vcvt.s32.f32 %v2162
        %v2419 = vcvt.s32.f32 %v2163
        %v2420 = vcvt.s32.f32 %v2164
        %v2421 = vcvt.s32.f32 %v2165
        %v2422 = vcvt.s32.f32 %v2166
        %v2423 = vcvt.s32.f32 %v2167
        %v2424 = vcvt.s32.f32 %v2168
        %v2425 = vcvt.s32.f32 %v2169
        %v2426 = vcvt.s32.f32 %v2170
        %v2427 = vcvt.s32.f32 %v2171
        %v2428 = vcvt.s32.f32 %v2172
        %v2429 = vcvt.s32.f32 %v2173
        %v2430 = vcvt.s32.f32 %v2174
        %v2431 = vcvt.s32.f32 %v2175
        %v2432 = vcvt.s32.f32 %v2176
        %v2433 = vcvt.s32.f32 %v2177
        %v2434 = vcvt.s32.f32 %v2178
        %v2435 = vcvt.s32.f32 %v2179
        %v2436 = vcvt.s32.f32 %v2180
        %v2437 = vcvt.s32.f32 %v2181
        %v2438 = vcvt.s32.f32 %v2182
        %v2439 = vcvt.s32.f32 %v2183
        %v2440 = vcvt.s32.f32 %v2184
        %v2441 = vcvt.s32.f32 %v2185
        %v2442 = vcvt.s32.f32 %v2186
        %v2443 = vcvt.s32.f32 %v2187
        %v2444 = vcvt.s32.f32 %v2188
        %v2445 = vcvt.s32.f32 %v2189
        %v2446 = vcvt.s32.f32 %v2190
        %v2447 = vcvt.s32.f32 %v2191
        %v2448 = vcvt.s32.f32 %v2192
        %v2449 = vcvt.s32.f32 %v2193
        %v2450 = vcvt.s32.f32 %v2194
        %v2451 = vcvt.s32.f32 %v2195
        %v2452 = vcvt.s32.f32 %v2196
        %v2453 = vcvt.s32.f32 %v2197
        %v2454 = vcvt.s32.f32 %v2198
        %v2455 = vcvt.s32.f32 %v2199
        %v2456 = vcvt.s32.f32 %v2200
        %v2457 = vcvt.s32.f32 %v2201
        %v2458 = vcvt.s32.f32 %v2202
        %v2459 = vcvt.s32.f32 %v2203
        %v2460 = vcvt.s32.f32 %v2204
        %v2461 = vcvt.s32.f32 %v2205
        %v2462 = vcvt.s32.f32 %v2206
        %v2463 = vcvt.s32.f32 %v2207
        %v2464 = vcvt.s32.f32 %v2208
        %v2465 = vcvt.s32.f32 %v2209
        %v2466 = vcvt.s32.f32 %v2210
        %v2467 = vcvt.s32.f32 %v2211
        %v2468 = vcvt.s32.f32 %v2212
        %v2469 = vcvt.s32.f32 %v2213
        %v2470 = vcvt.s32.f32 %v2214
        %v2471 = vcvt.s32.f32 %v2215
        %v2472 = vcvt.s32.f32 %v2216
        %v2473 = vcvt.s32.f32 %v2217
        %v2474 = vcvt.s32.f32 %v2218
        %v2475 = vcvt.s32.f32 %v2219
        %v2476 = vcvt.s32.f32 %v2220
        %v2477 = vcvt.s32.f32 %v2221
        %v2478 = vcvt.s32.f32 %v2222
        %v2479 = vcvt.s32.f32 %v2223
        %v2480 = vcvt.s32.f32 %v2224
        %v2481 = vcvt.s32.f32 %v2225
        %v2482 = vcvt.s32.f32 %v2226
        %v2483 = vcvt.s32.f32 %v2227
        %v2484 = vcvt.s32.f32 %v2228
        %v2485 = vcvt.s32.f32 %v2229
        %v2486 = vcvt.s32.f32 %v2230
        %v2487 = vcvt.s32.f32 %v2231
        %v2488 = vcvt.s32.f32 %v2232
        %v2489 = vcvt.s32.f32 %v2233
        %v2490 = vcvt.s32.f32 %v2234
        %v2491 = vcvt.s32.f32 %v2235
        %v2492 = vcvt.s32.f32 %v2236
        %v2493 = vcvt.s32.f32 %v2237
        %v2494 = vcvt.s32.f32 %v2238
        %v2495 = vcvt.s32.f32 %v2239
        %v2496 = vcvt.s32.f32 %v2240
        %v2497 = vcvt.s32.f32 %v2241
        %v2498 = vcvt.s32.f32 %v2242
        %v2499 = vcvt.s32.f32 %v2243
        %v2500 = vcvt.s32.f32 %v2244
        %v2501 = vcvt.s32.f32 %v2245
        %v2502 = vcvt.s32.f32 %v2246
        %v2503 = vcvt.s32.f32 %v2247
        %v2504 = vcvt.s32.f32 %v2248
        %v2505 = vcvt.s32.f32 %v2249
        %v2506 = vcvt.s32.f32 %v2250
        %v2507 = vcvt.s32.f32 %v2251
        %v2508 = vcvt.s32.f32 %v2252
        %v2509 = vcvt.s32.f32 %v2253
        %v2510 = vcvt.s32.f32 %v2254
        %v2511 = vcvt.s32.f32 %v2255
        %v2512 = vcvt.s32.f32 %v2256
        %v2513 = vcvt.s32.f32 %v2257
        %v2514 = vcvt.s32.f32 %v2258
        %v2515 = vcvt.s32.f32 %v2259
        %v2516 = vcvt.s32.f32 %v2260
        %v2517 = vcvt.s32.f32 %v2261
        %v2518 = vcvt.s32.f32 %v2262
        %v2519 = vcvt.s32.f32 %v2263
        %v2520 = vcvt.s32.f32 %v2264
        %v2521 = vcvt.s32.f32 %v2265
        %v2522 = vcvt.s32.f32 %v2266
        %v2523 = vcvt.s32.f32 %v2267
        %v2524 = vcvt.s32.f32 %v2268
        %v2525 = vcvt.s32.f32 %v2269
        %v2526 = vcvt.s32.f32 %v2270
        %v2527 = vcvt.s32.f32 %v2271
        %v2528 = vcvt.s32.f32 %v2272
        %v2529 = vcvt.s32.f32 %v2273
        %v2530 = vcvt.s32.f32 %v2274
        %v2531 = vcvt.s32.f32 %v2275
        %v2532 = vcvt.s32.f32 %v2276
        %v2533 = vcvt.s32.f32 %v2277
        %v2534 = vcvt.s32.f32 %v2278
        %v2535 = vcvt.s32.f32 %v2279
        %v2536 = vcvt.s32.f32 %v2280
        %v2537 = vcvt.s32.f32 %v2281
        %v2538 = vcvt.s32.f32 %v2282
        %v2539 = vcvt.s32.f32 %v2283
        %v2540 = vcvt.s32.f32 %v2284
        %v2541 = vcvt.s32.f32 %v2285
        %v2542 = vcvt.s32.f32 %v2286
        %v2543 = vcvt.s32.f32 %v2287
        %v2544 = vcvt.s32.f32 %v2288
        %v2545 = vcvt.s32.f32 %v2289
        %v2546 = vcvt.s32.f32 %v2290
        %v2547 = vcvt.s32.f32 %v2291
        %v2548 = vcvt.s32.f32 %v2292
        %v2549 = vcvt.s32.f32 %v2293
        %v2550 = vcvt.s32.f32 %v2294
        %v2551 = vcvt.s32.f32 %v2295
        %v2552 = vcvt.s32.f32 %v2296
        %v2553 = vcvt.s32.f32 %v2297
        %v2554 = vcvt.s32.f32 %v2298
        %v2555 = vcvt.s32.f32 %v2299
        %v2556 = vld [vmem:[#allocation9] sm:$0xff]
        %v2557 = vld [vmem:[#allocation9 + $0x8] sm:$0xff]
        %v2558 = vld [vmem:[#allocation9 + $0x10] sm:$0x1]
        %vm2559 = vcmask 138240
        %v2561 = vsel %vm2559, %v2300, 0
        %v2564 = vsel %vm2559, %v2301, 0
        %v2567 = vsel %vm2559, %v2302, 0
        %v2570 = vsel %vm2559, %v2303, 0
        %v2573 = vsel %vm2559, %v2304, 0
        %v2576 = vsel %vm2559, %v2305, 0
        %v2579 = vsel %vm2559, %v2306, 0
        %v2582 = vsel %vm2559, %v2307, 0
        %v2585 = vsel %vm2559, %v2308, 0
        %v2588 = vsel %vm2559, %v2309, 0
        %v2591 = vsel %vm2559, %v2310, 0
        %v2594 = vsel %vm2559, %v2311, 0
        %v2597 = vsel %vm2559, %v2312, 0
        %v2600 = vsel %vm2559, %v2313, 0
        %v2603 = vsel %vm2559, %v2314, 0
        %v2606 = vsel %vm2559, %v2315, 0
        %v2609 = vsel %vm2559, %v2316, 0
        %v2612 = vsel %vm2559, %v2317, 0
        %v2615 = vsel %vm2559, %v2318, 0
        %v2618 = vsel %vm2559, %v2319, 0
        %v2621 = vsel %vm2559, %v2320, 0
        %v2624 = vsel %vm2559, %v2321, 0
        %v2627 = vsel %vm2559, %v2322, 0
        %v2630 = vsel %vm2559, %v2323, 0
        %v2633 = vsel %vm2559, %v2324, 0
        %v2636 = vsel %vm2559, %v2325, 0
        %v2639 = vsel %vm2559, %v2326, 0
        %v2642 = vsel %vm2559, %v2327, 0
        %v2645 = vsel %vm2559, %v2328, 0
        %v2648 = vsel %vm2559, %v2329, 0
        %v2651 = vsel %vm2559, %v2330, 0
        %v2654 = vsel %vm2559, %v2331, 0
        %v2657 = vsel %vm2559, %v2332, 0
        %v2660 = vsel %vm2559, %v2333, 0
        %v2663 = vsel %vm2559, %v2334, 0
        %v2666 = vsel %vm2559, %v2335, 0
        %v2669 = vsel %vm2559, %v2336, 0
        %v2672 = vsel %vm2559, %v2337, 0
        %v2675 = vsel %vm2559, %v2338, 0
        %v2678 = vsel %vm2559, %v2339, 0
        %v2681 = vsel %vm2559, %v2340, 0
        %v2684 = vsel %vm2559, %v2341, 0
        %v2687 = vsel %vm2559, %v2342, 0
        %v2690 = vsel %vm2559, %v2343, 0
        %v2693 = vsel %vm2559, %v2344, 0
        %v2696 = vsel %vm2559, %v2345, 0
        %v2699 = vsel %vm2559, %v2346, 0
        %v2702 = vsel %vm2559, %v2347, 0
        %v2705 = vsel %vm2559, %v2348, 0
        %v2708 = vsel %vm2559, %v2349, 0
        %v2711 = vsel %vm2559, %v2350, 0
        %v2714 = vsel %vm2559, %v2351, 0
        %v2717 = vsel %vm2559, %v2352, 0
        %v2720 = vsel %vm2559, %v2353, 0
        %v2723 = vsel %vm2559, %v2354, 0
        %v2726 = vsel %vm2559, %v2355, 0
        %v2729 = vsel %vm2559, %v2356, 0
        %v2732 = vsel %vm2559, %v2357, 0
        %v2735 = vsel %vm2559, %v2358, 0
        %v2738 = vsel %vm2559, %v2359, 0
        %v2741 = vsel %vm2559, %v2360, 0
        %v2744 = vsel %vm2559, %v2361, 0
        %v2747 = vsel %vm2559, %v2362, 0
        %v2750 = vsel %vm2559, %v2363, 0
        %v2753 = vsel %vm2559, %v2364, 0
        %v2756 = vsel %vm2559, %v2365, 0
        %v2759 = vsel %vm2559, %v2366, 0
        %v2762 = vsel %vm2559, %v2367, 0
        %v2765 = vsel %vm2559, %v2368, 0
        %v2768 = vsel %vm2559, %v2369, 0
        %v2771 = vsel %vm2559, %v2370, 0
        %v2774 = vsel %vm2559, %v2371, 0
        %v2777 = vsel %vm2559, %v2372, 0
        %v2780 = vsel %vm2559, %v2373, 0
        %v2783 = vsel %vm2559, %v2374, 0
        %v2786 = vsel %vm2559, %v2375, 0
        %v2789 = vsel %vm2559, %v2376, 0
        %v2792 = vsel %vm2559, %v2377, 0
        %v2795 = vsel %vm2559, %v2378, 0
        %v2798 = vsel %vm2559, %v2379, 0
        %v2801 = vsel %vm2559, %v2380, 0
        %v2804 = vsel %vm2559, %v2381, 0
        %v2807 = vsel %vm2559, %v2382, 0
        %v2810 = vsel %vm2559, %v2383, 0
        %v2813 = vsel %vm2559, %v2384, 0
        %v2816 = vsel %vm2559, %v2385, 0
        %v2819 = vsel %vm2559, %v2386, 0
        %v2822 = vsel %vm2559, %v2387, 0
        %v2825 = vsel %vm2559, %v2388, 0
        %v2828 = vsel %vm2559, %v2389, 0
        %v2831 = vsel %vm2559, %v2390, 0
        %v2834 = vsel %vm2559, %v2391, 0
        %v2837 = vsel %vm2559, %v2392, 0
        %v2840 = vsel %vm2559, %v2393, 0
        %v2843 = vsel %vm2559, %v2394, 0
        %v2846 = vsel %vm2559, %v2395, 0
        %v2849 = vsel %vm2559, %v2396, 0
        %v2852 = vsel %vm2559, %v2397, 0
        %v2855 = vsel %vm2559, %v2398, 0
        %v2858 = vsel %vm2559, %v2399, 0
        %v2861 = vsel %vm2559, %v2400, 0
        %v2864 = vsel %vm2559, %v2401, 0
        %v2867 = vsel %vm2559, %v2402, 0
        %v2870 = vsel %vm2559, %v2403, 0
        %v2873 = vsel %vm2559, %v2404, 0
        %v2876 = vsel %vm2559, %v2405, 0
        %v2879 = vsel %vm2559, %v2406, 0
        %v2882 = vsel %vm2559, %v2407, 0
        %v2885 = vsel %vm2559, %v2408, 0
        %v2888 = vsel %vm2559, %v2409, 0
        %v2891 = vsel %vm2559, %v2410, 0
        %v2894 = vsel %vm2559, %v2411, 0
        %v2897 = vsel %vm2559, %v2412, 0
        %v2900 = vsel %vm2559, %v2413, 0
        %v2903 = vsel %vm2559, %v2414, 0
        %v2906 = vsel %vm2559, %v2415, 0
        %v2909 = vsel %vm2559, %v2416, 0
        %v2912 = vsel %vm2559, %v2417, 0
        %v2915 = vsel %vm2559, %v2418, 0
        %v2918 = vsel %vm2559, %v2419, 0
        %v2921 = vsel %vm2559, %v2420, 0
        %v2924 = vsel %vm2559, %v2421, 0
        %v2927 = vsel %vm2559, %v2422, 0
        %v2930 = vsel %vm2559, %v2423, 0
        %v2933 = vsel %vm2559, %v2424, 0
        %v2936 = vsel %vm2559, %v2425, 0
        %v2939 = vsel %vm2559, %v2426, 0
        %v2942 = vsel %vm2559, %v2427, 0
        %v2945 = vsel %vm2559, %v2428, 0
        %v2948 = vsel %vm2559, %v2429, 0
        %v2951 = vsel %vm2559, %v2430, 0
        %v2954 = vsel %vm2559, %v2431, 0
        %v2957 = vsel %vm2559, %v2432, 0
        %v2960 = vsel %vm2559, %v2433, 0
        %v2963 = vsel %vm2559, %v2434, 0
        %v2966 = vsel %vm2559, %v2435, 0
        %v2969 = vsel %vm2559, %v2436, 0
        %v2972 = vsel %vm2559, %v2437, 0
        %v2975 = vsel %vm2559, %v2438, 0
        %v2978 = vsel %vm2559, %v2439, 0
        %v2981 = vsel %vm2559, %v2440, 0
        %v2984 = vsel %vm2559, %v2441, 0
        %v2987 = vsel %vm2559, %v2442, 0
        %v2990 = vsel %vm2559, %v2443, 0
        %v2993 = vsel %vm2559, %v2444, 0
        %v2996 = vsel %vm2559, %v2445, 0
        %v2999 = vsel %vm2559, %v2446, 0
        %v3002 = vsel %vm2559, %v2447, 0
        %v3005 = vsel %vm2559, %v2448, 0
        %v3008 = vsel %vm2559, %v2449, 0
        %v3011 = vsel %vm2559, %v2450, 0
        %v3014 = vsel %vm2559, %v2451, 0
        %v3017 = vsel %vm2559, %v2452, 0
        %v3020 = vsel %vm2559, %v2453, 0
        %v3023 = vsel %vm2559, %v2454, 0
        %v3026 = vsel %vm2559, %v2455, 0
        %v3029 = vsel %vm2559, %v2456, 0
        %v3032 = vsel %vm2559, %v2457, 0
        %v3035 = vsel %vm2559, %v2458, 0
        %v3038 = vsel %vm2559, %v2459, 0
        %v3041 = vsel %vm2559, %v2460, 0
        %v3044 = vsel %vm2559, %v2461, 0
        %v3047 = vsel %vm2559, %v2462, 0
        %v3050 = vsel %vm2559, %v2463, 0
        %v3053 = vsel %vm2559, %v2464, 0
        %v3056 = vsel %vm2559, %v2465, 0
        %v3059 = vsel %vm2559, %v2466, 0
        %v3062 = vsel %vm2559, %v2467, 0
        %v3065 = vsel %vm2559, %v2468, 0
        %v3068 = vsel %vm2559, %v2469, 0
        %v3071 = vsel %vm2559, %v2470, 0
        %v3074 = vsel %vm2559, %v2471, 0
        %v3077 = vsel %vm2559, %v2472, 0
        %v3080 = vsel %vm2559, %v2473, 0
        %v3083 = vsel %vm2559, %v2474, 0
        %v3086 = vsel %vm2559, %v2475, 0
        %v3089 = vsel %vm2559, %v2476, 0
        %v3092 = vsel %vm2559, %v2477, 0
        %v3095 = vsel %vm2559, %v2478, 0
        %v3098 = vsel %vm2559, %v2479, 0
        %v3101 = vsel %vm2559, %v2480, 0
        %v3104 = vsel %vm2559, %v2481, 0
        %v3107 = vsel %vm2559, %v2482, 0
        %v3110 = vsel %vm2559, %v2483, 0
        %v3113 = vsel %vm2559, %v2484, 0
        %v3116 = vsel %vm2559, %v2485, 0
        %v3119 = vsel %vm2559, %v2486, 0
        %v3122 = vsel %vm2559, %v2487, 0
        %v3125 = vsel %vm2559, %v2488, 0
        %v3128 = vsel %vm2559, %v2489, 0
        %v3131 = vsel %vm2559, %v2490, 0
        %v3134 = vsel %vm2559, %v2491, 0
        %v3137 = vsel %vm2559, %v2492, 0
        %v3140 = vsel %vm2559, %v2493, 0
        %v3143 = vsel %vm2559, %v2494, 0
        %v3146 = vsel %vm2559, %v2495, 0
        %v3149 = vsel %vm2559, %v2496, 0
        %v3152 = vsel %vm2559, %v2497, 0
        %v3155 = vsel %vm2559, %v2498, 0
        %v3158 = vsel %vm2559, %v2499, 0
        %v3161 = vsel %vm2559, %v2500, 0
        %v3164 = vsel %vm2559, %v2501, 0
        %v3167 = vsel %vm2559, %v2502, 0
        %v3170 = vsel %vm2559, %v2503, 0
        %v3173 = vsel %vm2559, %v2504, 0
        %v3176 = vsel %vm2559, %v2505, 0
        %v3179 = vsel %vm2559, %v2506, 0
        %v3182 = vsel %vm2559, %v2507, 0
        %v3185 = vsel %vm2559, %v2508, 0
        %v3188 = vsel %vm2559, %v2509, 0
        %v3191 = vsel %vm2559, %v2510, 0
        %v3194 = vsel %vm2559, %v2511, 0
        %v3197 = vsel %vm2559, %v2512, 0
        %v3200 = vsel %vm2559, %v2513, 0
        %v3203 = vsel %vm2559, %v2514, 0
        %v3206 = vsel %vm2559, %v2515, 0
        %v3209 = vsel %vm2559, %v2516, 0
        %v3212 = vsel %vm2559, %v2517, 0
        %v3215 = vsel %vm2559, %v2518, 0
        %v3218 = vsel %vm2559, %v2519, 0
        %v3221 = vsel %vm2559, %v2520, 0
        %v3224 = vsel %vm2559, %v2521, 0
        %v3227 = vsel %vm2559, %v2522, 0
        %v3230 = vsel %vm2559, %v2523, 0
        %v3233 = vsel %vm2559, %v2524, 0
        %v3236 = vsel %vm2559, %v2525, 0
        %v3239 = vsel %vm2559, %v2526, 0
        %v3242 = vsel %vm2559, %v2527, 0
        %v3245 = vsel %vm2559, %v2528, 0
        %v3248 = vsel %vm2559, %v2529, 0
        %v3251 = vsel %vm2559, %v2530, 0
        %v3254 = vsel %vm2559, %v2531, 0
        %v3257 = vsel %vm2559, %v2532, 0
        %v3260 = vsel %vm2559, %v2533, 0
        %v3263 = vsel %vm2559, %v2534, 0
        %v3266 = vsel %vm2559, %v2535, 0
        %v3269 = vsel %vm2559, %v2536, 0
        %v3272 = vsel %vm2559, %v2537, 0
        %v3275 = vsel %vm2559, %v2538, 0
        %v3278 = vsel %vm2559, %v2539, 0
        %v3281 = vsel %vm2559, %v2540, 0
        %v3284 = vsel %vm2559, %v2541, 0
        %v3287 = vsel %vm2559, %v2542, 0
        %v3290 = vsel %vm2559, %v2543, 0
        %v3293 = vsel %vm2559, %v2544, 0
        %v3296 = vsel %vm2559, %v2545, 0
        %v3299 = vsel %vm2559, %v2546, 0
        %v3302 = vsel %vm2559, %v2547, 0
        %v3305 = vsel %vm2559, %v2548, 0
        %v3308 = vsel %vm2559, %v2549, 0
        %v3311 = vsel %vm2559, %v2550, 0
        %v3314 = vsel %vm2559, %v2551, 0
        %v3317 = vsel %vm2559, %v2552, 0
        %v3320 = vsel %vm2559, %v2553, 0
        %v3323 = vsel %vm2559, %v2554, 0
        %v3326 = vsel %vm2559, %v2555, 0
        %vm3328 = vcmask 1040384
        %v3330 = vsel %vm3328, %v2558, 0
        %3332 = vmatprep.subr.mxu0 0.0
        %3333 = vmatpush1.msra.mxu0 %v2556
        %3334 = vmatprep.subr.mxu0 0.0
        %3335 = vmatpush1.msra.mxu0 %v2557
        %3336 = vmatprep.subr.mxu0 0.0
        %3337 = vmatpush1.msra.mxu0 %v3330
        %3338 = vmatprep.subr.mxu0 0.0
        %3339 = vmatpush1.msra.mxu0 0.0
        %3340 = vmatprep.subr.mxu0 0.0
        %3341 = vmatpush1.msra.mxu0 0.0
        %3342 = vmatprep.subr.mxu0 0.0
        %3343 = vmatpush1.msra.mxu0 0.0
        %3344 = vmatprep.subr.mxu0 0.0
        %3345 = vmatpush1.msra.mxu0 0.0
        %3346 = vmatprep.subr.mxu0 0.0
        %3347 = vmatpush1.msra.mxu0 0.0
        %3348 = vmatprep.subr.mxu0 0.0
        %3349 = vmatpush1.msra.mxu0 0.0
        %3350 = vmatprep.subr.mxu0 0.0
        %3351 = vmatpush1.msra.mxu0 0.0
        %3352 = vmatprep.subr.mxu0 0.0
        %3353 = vmatpush1.msra.mxu0 0.0
        %3354 = vmatprep.subr.mxu0 0.0
        %3355 = vmatpush1.msra.mxu0 0.0
        %3356 = vmatprep.subr.mxu0 0.0
        %3357 = vmatpush1.msra.mxu0 0.0
        %3358 = vmatprep.subr.mxu0 0.0
        %3359 = vmatpush1.msra.mxu0 0.0
        %3360 = vmatprep.subr.mxu0 0.0
        %3361 = vmatpush1.msra.mxu0 0.0
        %3362 = vmatprep.subr.mxu0 0.0
        %3363 = vmatpush1.msra.mxu0 0.0
        %3364 = vmatprep.subr.mxu0 0.0
        %3365 = vmatpush1.msra.mxu0 0.0
        %3366 = vmatprep.subr.mxu0 0.0
        %3367 = vmatpush1.msra.mxu0 0.0
        %3368 = vmatprep.subr.mxu0 0.0
        %3369 = vmatpush1.msra.mxu0 0.0
        %3370 = vmatprep.subr.mxu0 0.0
        %3371 = vmatpush1.msra.mxu0 0.0
        %3372 = vmatprep.subr.mxu0 0.0
        %3373 = vmatpush1.msra.mxu0 0.0
        %3374 = vmatprep.subr.mxu0 0.0
        %3375 = vmatpush1.msra.mxu0 0.0
        %3376 = vmatprep.subr.mxu0 0.0
        %3377 = vmatpush1.msra.mxu0 0.0
        %3378 = vmatprep.subr.mxu0 0.0
        %3379 = vmatpush1.msra.mxu0 0.0
        %3380 = vmatprep.subr.mxu0 0.0
        %3381 = vmatpush1.msra.mxu0 0.0
        %3382 = vmatprep.subr.mxu0 0.0
        %3383 = vmatpush1.msra.mxu0 0.0
        %3384 = vmatprep.subr.mxu0 0.0
        %3385 = vmatpush1.msra.mxu0 0.0
        %3386 = vmatprep.subr.mxu0 0.0
        %3387 = vmatpush1.msra.mxu0 0.0
        %3388 = vmatprep.subr.mxu0 0.0
        %3389 = vmatpush1.msra.mxu0 0.0
        %3390 = vmatprep.subr.mxu0 0.0
        %3391 = vmatpush1.msra.mxu0 0.0
        %3392 = vmatprep.subr.mxu0 0.0
        %3393 = vmatpush1.msra.mxu0 0.0
        %3394 = vmatprep.subr.mxu0 0.0
        %3395 = vmatpush1.msra.mxu0 0.0
        %3396 = vmatprep.mubr.f32.mxu0 0.0
        %3397 = vmatmul.mubr.f32.gmra.mrb[0].mxu0 %v2561
        %v3398 = vpop.f32.mrb[0].mxu0
        %v3399 = vadd.f32 0.0, %v3398
        %v3400 = vpop.f32.mrb[0].mxu0
        %3401 = vmatprep.mubr.f32.mxu0 0.0
        %3402 = vmatmul.mubr.f32.gmra.mrb[0].mxu0 %v2564
        %v3403 = vpop.f32.mrb[0].mxu0
        %v3404 = vadd.f32 0.0, %v3403
        %v3405 = vpop.f32.mrb[0].mxu0
        %3406 = vmatprep.mubr.f32.mxu0 0.0
        %3407 = vmatmul.mubr.f32.gmra.mrb[0].mxu0 %v2567
        %v3408 = vpop.f32.mrb[0].mxu0
        %v3409 = vadd.f32 0.0, %v3408
        %v3410 = vpop.f32.mrb[0].mxu0
        %3411 = vmatprep.mubr.f32.mxu0 0.0
        %3412 = vmatmul.mubr.f32.gmra.mrb[0].mxu0 %v2570
        %v3413 = vpop.f32.mrb[0].mxu0
        %v3414 = vadd.f32 0.0, %v3413
        %v3415 = vpop.f32.mrb[0].mxu0
        %3416 = vmatprep.mubr.f32.mxu0 0.0
        %3417 = vmatmul.mubr.f32.gmra.mrb[0].mxu0 %v2573
        %v3418 = vpop.f32.mrb[0].mxu0
        %v3419 = vadd.f32 0.0, %v3418
        %v3420 = vpop.f32.mrb[0].mxu0
        %3421 = vmatprep.mubr.f32.mxu0 0.0
        %3422 = vmatmul.mubr.f32.gmra.mrb[0].mxu0 %v2576
        %v3423 = vpop.f32.mrb[0].mxu0
        %v3424 = vadd.f32 0.0, %v3423
        %v3425 = vpop.f32.mrb[0].mxu0
        %3426 = vmatprep.mubr.f32.mxu0 0.0
        %3427 = vmatmul.mubr.f32.gmra.mrb[0].mxu0 %v2579
        %v3428 = vpop.f32.mrb[0].mxu0
        %v3429 = vadd.f32 0.0, %v3428
        %v3430 = vpop.f32.mrb[0].mxu0
        %3431 = vmatprep.mubr.f32.mxu0 0.0
        %3432 = vmatmul.mubr.f32.gmra.mrb[0].mxu0 %v2582
        %v3433 = vpop.f32.mrb[0].mxu0
        %v3434 = vadd.f32 0.0, %v3433
        %v3435 = vpop.f32.mrb[0].mxu0
        %3436 = vmatprep.mubr.f32.mxu0 0.0
        %3437 = vmatmul.mubr.f32.gmra.mrb[0].mxu0 %v2585
        %v3438 = vpop.f32.mrb[0].mxu0
        %v3439 = vadd.f32 0.0, %v3438
        %v3440 = vpop.f32.mrb[0].mxu0
        %3441 = vmatprep.mubr.f32.mxu0 0.0
        %3442 = vmatmul.mubr.f32.gmra.mrb[0].mxu0 %v2588
        %v3443 = vpop.f32.mrb[0].mxu0
        %v3444 = vadd.f32 0.0, %v3443
        %v3445 = vpop.f32.mrb[0].mxu0
        %3446 = vmatprep.mubr.f32.mxu0 0.0
        %3447 = vmatmul.mubr.f32.gmra.mrb[0].mxu0 %v2591
        %v3448 = vpop.f32.mrb[0].mxu0
        %v3449 = vadd.f32 0.0, %v3448
        %v3450 = vpop.f32.mrb[0].mxu0
        %3451 = vmatprep.mubr.f32.mxu0 0.0
        %3452 = vmatmul.mubr.f32.gmra.mrb[0].mxu0 %v2594
        %v3453 = vpop.f32.mrb[0].mxu0
        %v3454 = vadd.f32 0.0, %v3453
        %v3455 = vpop.f32.mrb[0].mxu0
        %3456 = vmatprep.mubr.f32.mxu0 0.0
        %3457 = vmatmul.mubr.f32.gmra.mrb[0].mxu0 %v2597
        %v3458 = vpop.f32.mrb[0].mxu0
        %v3459 = vadd.f32 0.0, %v3458
        %v3460 = vpop.f32.mrb[0].mxu0
        %3461 = vmatprep.mubr.f32.mxu0 0.0
        %3462 = vmatmul.mubr.f32.gmra.mrb[0].mxu0 %v2600
        %v3463 = vpop.f32.mrb[0].mxu0
        %v3464 = vadd.f32 0.0, %v3463
        %v3465 = vpop.f32.mrb[0].mxu0
        %3466 = vmatprep.mubr.f32.mxu0 0.0
        %3467 = vmatmul.mubr.f32.gmra.mrb[0].mxu0 %v2603
        %v3468 = vpop.f32.mrb[0].mxu0
        %v3469 = vadd.f32 0.0, %v3468
        %v3470 = vpop.f32.mrb[0].mxu0
        %3471 = vmatprep.mubr.f32.mxu0 0.0
        %3472 = vmatmul.mubr.f32.gmra.mrb[0].mxu0 %v2606
        %v3473 = vpop.f32.mrb[0].mxu0
        %v3474 = vadd.f32 0.0, %v3473
        %v3475 = vpop.f32.mrb[0].mxu0
        %3476 = vmatprep.mubr.f32.mxu0 0.0
        %3477 = vmatmul.mubr.f32.gmra.mrb[0].mxu0 %v2609
        %v3478 = vpop.f32.mrb[0].mxu0
        %v3479 = vadd.f32 0.0, %v3478
        %v3480 = vpop.f32.mrb[0].mxu0
        %3481 = vmatprep.mubr.f32.mxu0 0.0
        %3482 = vmatmul.mubr.f32.gmra.mrb[0].mxu0 %v2612
        %v3483 = vpop.f32.mrb[0].mxu0
        %v3484 = vadd.f32 0.0, %v3483
        %v3485 = vpop.f32.mrb[0].mxu0
        %3486 = vmatprep.mubr.f32.mxu0 0.0
        %3487 = vmatmul.mubr.f32.gmra.mrb[0].mxu0 %v2615
        %v3488 = vpop.f32.mrb[0].mxu0
        %v3489 = vadd.f32 0.0, %v3488
        %v3490 = vpop.f32.mrb[0].mxu0
        %3491 = vmatprep.mubr.f32.mxu0 0.0
        %3492 = vmatmul.mubr.f32.gmra.mrb[0].mxu0 %v2618
        %v3493 = vpop.f32.mrb[0].mxu0
        %v3494 = vadd.f32 0.0, %v3493
        %v3495 = vpop.f32.mrb[0].mxu0
        %3496 = vmatprep.mubr.f32.mxu0 0.0
        %3497 = vmatmul.mubr.f32.gmra.mrb[0].mxu0 %v2621
        %v3498 = vpop.f32.mrb[0].mxu0
        %v3499 = vadd.f32 0.0, %v3498
        %v3500 = vpop.f32.mrb[0].mxu0
        %3501 = vmatprep.mubr.f32.mxu0 0.0
        %3502 = vmatmul.mubr.f32.gmra.mrb[0].mxu0 %v2624
        %v3503 = vpop.f32.mrb[0].mxu0
        %v3504 = vadd.f32 0.0, %v3503
        %v3505 = vpop.f32.mrb[0].mxu0
        %3506 = vmatprep.mubr.f32.mxu0 0.0
        %3507 = vmatmul.mubr.f32.gmra.mrb[0].mxu0 %v2627
        %v3508 = vpop.f32.mrb[0].mxu0
        %v3509 = vadd.f32 0.0, %v3508
        %v3510 = vpop.f32.mrb[0].mxu0
        %3511 = vmatprep.mubr.f32.mxu0 0.0
        %3512 = vmatmul.mubr.f32.gmra.mrb[0].mxu0 %v2630
        %v3513 = vpop.f32.mrb[0].mxu0
        %v3514 = vadd.f32 0.0, %v3513
        %v3515 = vpop.f32.mrb[0].mxu0
        %3516 = vmatprep.mubr.f32.mxu0 0.0
        %3517 = vmatmul.mubr.f32.gmra.mrb[0].mxu0 %v2633
        %v3518 = vpop.f32.mrb[0].mxu0
        %v3519 = vadd.f32 0.0, %v3518
        %v3520 = vpop.f32.mrb[0].mxu0
        %3521 = vmatprep.mubr.f32.mxu0 0.0
        %3522 = vmatmul.mubr.f32.gmra.mrb[0].mxu0 %v2636
        %v3523 = vpop.f32.mrb[0].mxu0
        %v3524 = vadd.f32 0.0, %v3523
        %v3525 = vpop.f32.mrb[0].mxu0
        %3526 = vmatprep.mubr.f32.mxu0 0.0
        %3527 = vmatmul.mubr.f32.gmra.mrb[0].mxu0 %v2639
        %v3528 = vpop.f32.mrb[0].mxu0
        %v3529 = vadd.f32 0.0, %v3528
        %v3530 = vpop.f32.mrb[0].mxu0
        %3531 = vmatprep.mubr.f32.mxu0 0.0
        %3532 = vmatmul.mubr.f32.gmra.mrb[0].mxu0 %v2642
        %v3533 = vpop.f32.mrb[0].mxu0
        %v3534 = vadd.f32 0.0, %v3533
        %v3535 = vpop.f32.mrb[0].mxu0
        %3536 = vmatprep.mubr.f32.mxu0 0.0
        %3537 = vmatmul.mubr.f32.gmra.mrb[0].mxu0 %v2645
        %v3538 = vpop.f32.mrb[0].mxu0
        %v3539 = vadd.f32 0.0, %v3538
        %v3540 = vpop.f32.mrb[0].mxu0
        %3541 = vmatprep.mubr.f32.mxu0 0.0
        %3542 = vmatmul.mubr.f32.gmra.mrb[0].mxu0 %v2648
        %v3543 = vpop.f32.mrb[0].mxu0
        %v3544 = vadd.f32 0.0, %v3543
        %v3545 = vpop.f32.mrb[0].mxu0
        %3546 = vmatprep.mubr.f32.mxu0 0.0
        %3547 = vmatmul.mubr.f32.gmra.mrb[0].mxu0 %v2651
        %v3548 = vpop.f32.mrb[0].mxu0
        %v3549 = vadd.f32 0.0, %v3548
        %v3550 = vpop.f32.mrb[0].mxu0
        %3551 = vmatprep.mubr.f32.mxu0 0.0
        %3552 = vmatmul.mubr.f32.gmra.mrb[0].mxu0 %v2654
        %v3553 = vpop.f32.mrb[0].mxu0
        %v3554 = vadd.f32 0.0, %v3553
        %v3555 = vpop.f32.mrb[0].mxu0
        %3556 = vmatprep.mubr.f32.mxu0 0.0
        %3557 = vmatmul.mubr.f32.gmra.mrb[0].mxu0 %v2657
        %v3558 = vpop.f32.mrb[0].mxu0
        %v3559 = vadd.f32 0.0, %v3558
        %v3560 = vpop.f32.mrb[0].mxu0
        %3561 = vmatprep.mubr.f32.mxu0 0.0
        %3562 = vmatmul.mubr.f32.gmra.mrb[0].mxu0 %v2660
        %v3563 = vpop.f32.mrb[0].mxu0
        %v3564 = vadd.f32 0.0, %v3563
        %v3565 = vpop.f32.mrb[0].mxu0
        %3566 = vmatprep.mubr.f32.mxu0 0.0
        %3567 = vmatmul.mubr.f32.gmra.mrb[0].mxu0 %v2663
        %v3568 = vpop.f32.mrb[0].mxu0
        %v3569 = vadd.f32 0.0, %v3568
        %v3570 = vpop.f32.mrb[0].mxu0
        %3571 = vmatprep.mubr.f32.mxu0 0.0
        %3572 = vmatmul.mubr.f32.gmra.mrb[0].mxu0 %v2666
        %v3573 = vpop.f32.mrb[0].mxu0
        %v3574 = vadd.f32 0.0, %v3573
        %v3575 = vpop.f32.mrb[0].mxu0
        %3576 = vmatprep.mubr.f32.mxu0 0.0
        %3577 = vmatmul.mubr.f32.gmra.mrb[0].mxu0 %v2669
        %v3578 = vpop.f32.mrb[0].mxu0
        %v3579 = vadd.f32 0.0, %v3578
        %v3580 = vpop.f32.mrb[0].mxu0
        %3581 = vmatprep.mubr.f32.mxu0 0.0
        %3582 = vmatmul.mubr.f32.gmra.mrb[0].mxu0 %v2672
        %v3583 = vpop.f32.mrb[0].mxu0
        %v3584 = vadd.f32 0.0, %v3583
        %v3585 = vpop.f32.mrb[0].mxu0
        %3586 = vmatprep.mubr.f32.mxu0 0.0
        %3587 = vmatmul.mubr.f32.gmra.mrb[0].mxu0 %v2675
        %v3588 = vpop.f32.mrb[0].mxu0
        %v3589 = vadd.f32 0.0, %v3588
        %v3590 = vpop.f32.mrb[0].mxu0
        %3591 = vmatprep.mubr.f32.mxu0 0.0
        %3592 = vmatmul.mubr.f32.gmra.mrb[0].mxu0 %v2678
        %v3593 = vpop.f32.mrb[0].mxu0
        %v3594 = vadd.f32 0.0, %v3593
        %v3595 = vpop.f32.mrb[0].mxu0
        %3596 = vmatprep.mubr.f32.mxu0 0.0
        %3597 = vmatmul.mubr.f32.gmra.mrb[0].mxu0 %v2681
        %v3598 = vpop.f32.mrb[0].mxu0
        %v3599 = vadd.f32 0.0, %v3598
        %v3600 = vpop.f32.mrb[0].mxu0
        %3601 = vmatprep.mubr.f32.mxu0 0.0
        %3602 = vmatmul.mubr.f32.gmra.mrb[0].mxu0 %v2684
        %v3603 = vpop.f32.mrb[0].mxu0
        %v3604 = vadd.f32 0.0, %v3603
        %v3605 = vpop.f32.mrb[0].mxu0
        %3606 = vmatprep.mubr.f32.mxu0 0.0
        %3607 = vmatmul.mubr.f32.gmra.mrb[0].mxu0 %v2687
        %v3608 = vpop.f32.mrb[0].mxu0
        %v3609 = vadd.f32 0.0, %v3608
        %v3610 = vpop.f32.mrb[0].mxu0
        %3611 = vmatprep.mubr.f32.mxu0 0.0
        %3612 = vmatmul.mubr.f32.gmra.mrb[0].mxu0 %v2690
        %v3613 = vpop.f32.mrb[0].mxu0
        %v3614 = vadd.f32 0.0, %v3613
        %v3615 = vpop.f32.mrb[0].mxu0
        %3616 = vmatprep.mubr.f32.mxu0 0.0
        %3617 = vmatmul.mubr.f32.gmra.mrb[0].mxu0 %v2693
        %v3618 = vpop.f32.mrb[0].mxu0
        %v3619 = vadd.f32 0.0, %v3618
        %v3620 = vpop.f32.mrb[0].mxu0
        %3621 = vmatprep.mubr.f32.mxu0 0.0
        %3622 = vmatmul.mubr.f32.gmra.mrb[0].mxu0 %v2696
        %v3623 = vpop.f32.mrb[0].mxu0
        %v3624 = vadd.f32 0.0, %v3623
        %v3625 = vpop.f32.mrb[0].mxu0
        %3626 = vmatprep.mubr.f32.mxu0 0.0
        %3627 = vmatmul.mubr.f32.gmra.mrb[0].mxu0 %v2699
        %v3628 = vpop.f32.mrb[0].mxu0
        %v3629 = vadd.f32 0.0, %v3628
        %v3630 = vpop.f32.mrb[0].mxu0
        %3631 = vmatprep.mubr.f32.mxu0 0.0
        %3632 = vmatmul.mubr.f32.gmra.mrb[0].mxu0 %v2702
        %v3633 = vpop.f32.mrb[0].mxu0
        %v3634 = vadd.f32 0.0, %v3633
        %v3635 = vpop.f32.mrb[0].mxu0
        %3636 = vmatprep.mubr.f32.mxu0 0.0
        %3637 = vmatmul.mubr.f32.gmra.mrb[0].mxu0 %v2705
        %v3638 = vpop.f32.mrb[0].mxu0
        %v3639 = vadd.f32 0.0, %v3638
        %v3640 = vpop.f32.mrb[0].mxu0
        %3641 = vmatprep.mubr.f32.mxu0 0.0
        %3642 = vmatmul.mubr.f32.gmra.mrb[0].mxu0 %v2708
        %v3643 = vpop.f32.mrb[0].mxu0
        %v3644 = vadd.f32 0.0, %v3643
        %v3645 = vpop.f32.mrb[0].mxu0
        %3646 = vmatprep.mubr.f32.mxu0 0.0
        %3647 = vmatmul.mubr.f32.gmra.mrb[0].mxu0 %v2711
        %v3648 = vpop.f32.mrb[0].mxu0
        %v3649 = vadd.f32 0.0, %v3648
        %v3650 = vpop.f32.mrb[0].mxu0
        %3651 = vmatprep.mubr.f32.mxu0 0.0
        %3652 = vmatmul.mubr.f32.gmra.mrb[0].mxu0 %v2714
        %v3653 = vpop.f32.mrb[0].mxu0
        %v3654 = vadd.f32 0.0, %v3653
        %v3655 = vpop.f32.mrb[0].mxu0
        %3656 = vmatprep.mubr.f32.mxu0 0.0
        %3657 = vmatmul.mubr.f32.gmra.mrb[0].mxu0 %v2717
        %v3658 = vpop.f32.mrb[0].mxu0
        %v3659 = vadd.f32 0.0, %v3658
        %v3660 = vpop.f32.mrb[0].mxu0
        %3661 = vmatprep.mubr.f32.mxu0 0.0
        %3662 = vmatmul.mubr.f32.gmra.mrb[0].mxu0 %v2720
        %v3663 = vpop.f32.mrb[0].mxu0
        %v3664 = vadd.f32 0.0, %v3663
        %v3665 = vpop.f32.mrb[0].mxu0
        %3666 = vmatprep.mubr.f32.mxu0 0.0
        %3667 = vmatmul.mubr.f32.gmra.mrb[0].mxu0 %v2723
        %v3668 = vpop.f32.mrb[0].mxu0
        %v3669 = vadd.f32 0.0, %v3668
        %v3670 = vpop.f32.mrb[0].mxu0
        %3671 = vmatprep.mubr.f32.mxu0 0.0
        %3672 = vmatmul.mubr.f32.gmra.mrb[0].mxu0 %v2726
        %v3673 = vpop.f32.mrb[0].mxu0
        %v3674 = vadd.f32 0.0, %v3673
        %v3675 = vpop.f32.mrb[0].mxu0
        %3676 = vmatprep.mubr.f32.mxu0 0.0
        %3677 = vmatmul.mubr.f32.gmra.mrb[0].mxu0 %v2729
        %v3678 = vpop.f32.mrb[0].mxu0
        %v3679 = vadd.f32 0.0, %v3678
        %v3680 = vpop.f32.mrb[0].mxu0
        %3681 = vmatprep.mubr.f32.mxu0 0.0
        %3682 = vmatmul.mubr.f32.gmra.mrb[0].mxu0 %v2732
        %v3683 = vpop.f32.mrb[0].mxu0
        %v3684 = vadd.f32 0.0, %v3683
        %v3685 = vpop.f32.mrb[0].mxu0
        %3686 = vmatprep.mubr.f32.mxu0 0.0
        %3687 = vmatmul.mubr.f32.gmra.mrb[0].mxu0 %v2735
        %v3688 = vpop.f32.mrb[0].mxu0
        %v3689 = vadd.f32 0.0, %v3688
        %v3690 = vpop.f32.mrb[0].mxu0
        %3691 = vmatprep.mubr.f32.mxu0 0.0
        %3692 = vmatmul.mubr.f32.gmra.mrb[0].mxu0 %v2738
        %v3693 = vpop.f32.mrb[0].mxu0
        %v3694 = vadd.f32 0.0, %v3693
        %v3695 = vpop.f32.mrb[0].mxu0
        %3696 = vmatprep.mubr.f32.mxu0 0.0
        %3697 = vmatmul.mubr.f32.gmra.mrb[0].mxu0 %v2741
        %v3698 = vpop.f32.mrb[0].mxu0
        %v3699 = vadd.f32 0.0, %v3698
        %v3700 = vpop.f32.mrb[0].mxu0
        %3701 = vmatprep.mubr.f32.mxu0 0.0
        %3702 = vmatmul.mubr.f32.gmra.mrb[0].mxu0 %v2744
        %v3703 = vpop.f32.mrb[0].mxu0
        %v3704 = vadd.f32 0.0, %v3703
        %v3705 = vpop.f32.mrb[0].mxu0
        %3706 = vmatprep.mubr.f32.mxu0 0.0
        %3707 = vmatmul.mubr.f32.gmra.mrb[0].mxu0 %v2747
        %v3708 = vpop.f32.mrb[0].mxu0
        %v3709 = vadd.f32 0.0, %v3708
        %v3710 = vpop.f32.mrb[0].mxu0
        %3711 = vmatprep.mubr.f32.mxu0 0.0
        %3712 = vmatmul.mubr.f32.gmra.mrb[0].mxu0 %v2750
        %v3713 = vpop.f32.mrb[0].mxu0
        %v3714 = vadd.f32 0.0, %v3713
        %v3715 = vpop.f32.mrb[0].mxu0
        %3716 = vmatprep.mubr.f32.mxu0 0.0
        %3717 = vmatmul.mubr.f32.gmra.mrb[0].mxu0 %v2753
        %v3718 = vpop.f32.mrb[0].mxu0
        %v3719 = vadd.f32 0.0, %v3718
        %v3720 = vpop.f32.mrb[0].mxu0
        %3721 = vmatprep.mubr.f32.mxu0 0.0
        %3722 = vmatmul.mubr.f32.gmra.mrb[0].mxu0 %v2756
        %v3723 = vpop.f32.mrb[0].mxu0
        %v3724 = vadd.f32 0.0, %v3723
        %v3725 = vpop.f32.mrb[0].mxu0
        %3726 = vmatprep.mubr.f32.mxu0 0.0
        %3727 = vmatmul.mubr.f32.gmra.mrb[0].mxu0 %v2759
        %v3728 = vpop.f32.mrb[0].mxu0
        %v3729 = vadd.f32 0.0, %v3728
        %v3730 = vpop.f32.mrb[0].mxu0
        %3731 = vmatprep.mubr.f32.mxu0 0.0
        %3732 = vmatmul.mubr.f32.gmra.mrb[0].mxu0 %v2762
        %v3733 = vpop.f32.mrb[0].mxu0
        %v3734 = vadd.f32 0.0, %v3733
        %v3735 = vpop.f32.mrb[0].mxu0
        %3736 = vmatprep.mubr.f32.mxu0 0.0
        %3737 = vmatmul.mubr.f32.gmra.mrb[0].mxu0 %v2765
        %v3738 = vpop.f32.mrb[0].mxu0
        %v3739 = vadd.f32 0.0, %v3738
        %v3740 = vpop.f32.mrb[0].mxu0
        %3741 = vmatprep.mubr.f32.mxu0 0.0
        %3742 = vmatmul.mubr.f32.gmra.mrb[0].mxu0 %v2768
        %v3743 = vpop.f32.mrb[0].mxu0
        %v3744 = vadd.f32 0.0, %v3743
        %v3745 = vpop.f32.mrb[0].mxu0
        %3746 = vmatprep.mubr.f32.mxu0 0.0
        %3747 = vmatmul.mubr.f32.gmra.mrb[0].mxu0 %v2771
        %v3748 = vpop.f32.mrb[0].mxu0
        %v3749 = vadd.f32 0.0, %v3748
        %v3750 = vpop.f32.mrb[0].mxu0
        %3751 = vmatprep.mubr.f32.mxu0 0.0
        %3752 = vmatmul.mubr.f32.gmra.mrb[0].mxu0 %v2774
        %v3753 = vpop.f32.mrb[0].mxu0
        %v3754 = vadd.f32 0.0, %v3753
        %v3755 = vpop.f32.mrb[0].mxu0
        %3756 = vmatprep.mubr.f32.mxu0 0.0
        %3757 = vmatmul.mubr.f32.gmra.mrb[0].mxu0 %v2777
        %v3758 = vpop.f32.mrb[0].mxu0
        %v3759 = vadd.f32 0.0, %v3758
        %v3760 = vpop.f32.mrb[0].mxu0
        %3761 = vmatprep.mubr.f32.mxu0 0.0
        %3762 = vmatmul.mubr.f32.gmra.mrb[0].mxu0 %v2780
        %v3763 = vpop.f32.mrb[0].mxu0
        %v3764 = vadd.f32 0.0, %v3763
        %v3765 = vpop.f32.mrb[0].mxu0
        %3766 = vmatprep.mubr.f32.mxu0 0.0
        %3767 = vmatmul.mubr.f32.gmra.mrb[0].mxu0 %v2783
        %v3768 = vpop.f32.mrb[0].mxu0
        %v3769 = vadd.f32 0.0, %v3768
        %v3770 = vpop.f32.mrb[0].mxu0
        %3771 = vmatprep.mubr.f32.mxu0 0.0
        %3772 = vmatmul.mubr.f32.gmra.mrb[0].mxu0 %v2786
        %v3773 = vpop.f32.mrb[0].mxu0
        %v3774 = vadd.f32 0.0, %v3773
        %v3775 = vpop.f32.mrb[0].mxu0
        %3776 = vmatprep.mubr.f32.mxu0 0.0
        %3777 = vmatmul.mubr.f32.gmra.mrb[0].mxu0 %v2789
        %v3778 = vpop.f32.mrb[0].mxu0
        %v3779 = vadd.f32 0.0, %v3778
        %v3780 = vpop.f32.mrb[0].mxu0
        %3781 = vmatprep.mubr.f32.mxu0 0.0
        %3782 = vmatmul.mubr.f32.gmra.mrb[0].mxu0 %v2792
        %v3783 = vpop.f32.mrb[0].mxu0
        %v3784 = vadd.f32 0.0, %v3783
        %v3785 = vpop.f32.mrb[0].mxu0
        %3786 = vmatprep.mubr.f32.mxu0 0.0
        %3787 = vmatmul.mubr.f32.gmra.mrb[0].mxu0 %v2795
        %v3788 = vpop.f32.mrb[0].mxu0
        %v3789 = vadd.f32 0.0, %v3788
        %v3790 = vpop.f32.mrb[0].mxu0
        %3791 = vmatprep.mubr.f32.mxu0 0.0
        %3792 = vmatmul.mubr.f32.gmra.mrb[0].mxu0 %v2798
        %v3793 = vpop.f32.mrb[0].mxu0
        %v3794 = vadd.f32 0.0, %v3793
        %v3795 = vpop.f32.mrb[0].mxu0
        %3796 = vmatprep.mubr.f32.mxu0 0.0
        %3797 = vmatmul.mubr.f32.gmra.mrb[0].mxu0 %v2801
        %v3798 = vpop.f32.mrb[0].mxu0
        %v3799 = vadd.f32 0.0, %v3798
        %v3800 = vpop.f32.mrb[0].mxu0
        %3801 = vmatprep.mubr.f32.mxu0 0.0
        %3802 = vmatmul.mubr.f32.gmra.mrb[0].mxu0 %v2804
        %v3803 = vpop.f32.mrb[0].mxu0
        %v3804 = vadd.f32 0.0, %v3803
        %v3805 = vpop.f32.mrb[0].mxu0
        %3806 = vmatprep.mubr.f32.mxu0 0.0
        %3807 = vmatmul.mubr.f32.gmra.mrb[0].mxu0 %v2807
        %v3808 = vpop.f32.mrb[0].mxu0
        %v3809 = vadd.f32 0.0, %v3808
        %v3810 = vpop.f32.mrb[0].mxu0
        %3811 = vmatprep.mubr.f32.mxu0 0.0
        %3812 = vmatmul.mubr.f32.gmra.mrb[0].mxu0 %v2810
        %v3813 = vpop.f32.mrb[0].mxu0
        %v3814 = vadd.f32 0.0, %v3813
        %v3815 = vpop.f32.mrb[0].mxu0
        %3816 = vmatprep.mubr.f32.mxu0 0.0
        %3817 = vmatmul.mubr.f32.gmra.mrb[0].mxu0 %v2813
        %v3818 = vpop.f32.mrb[0].mxu0
        %v3819 = vadd.f32 0.0, %v3818
        %v3820 = vpop.f32.mrb[0].mxu0
        %3821 = vmatprep.mubr.f32.mxu0 0.0
        %3822 = vmatmul.mubr.f32.gmra.mrb[0].mxu0 %v2816
        %v3823 = vpop.f32.mrb[0].mxu0
        %v3824 = vadd.f32 0.0, %v3823
        %v3825 = vpop.f32.mrb[0].mxu0
        %3826 = vmatprep.mubr.f32.mxu0 0.0
        %3827 = vmatmul.mubr.f32.gmra.mrb[0].mxu0 %v2819
        %v3828 = vpop.f32.mrb[0].mxu0
        %v3829 = vadd.f32 0.0, %v3828
        %v3830 = vpop.f32.mrb[0].mxu0
        %3831 = vmatprep.mubr.f32.mxu0 0.0
        %3832 = vmatmul.mubr.f32.gmra.mrb[0].mxu0 %v2822
        %v3833 = vpop.f32.mrb[0].mxu0
        %v3834 = vadd.f32 0.0, %v3833
        %v3835 = vpop.f32.mrb[0].mxu0
        %3836 = vmatprep.mubr.f32.mxu0 0.0
        %3837 = vmatmul.mubr.f32.gmra.mrb[0].mxu0 %v2825
        %v3838 = vpop.f32.mrb[0].mxu0
        %v3839 = vadd.f32 0.0, %v3838
        %v3840 = vpop.f32.mrb[0].mxu0
        %3841 = vmatprep.mubr.f32.mxu0 0.0
        %3842 = vmatmul.mubr.f32.gmra.mrb[0].mxu0 %v2828
        %v3843 = vpop.f32.mrb[0].mxu0
        %v3844 = vadd.f32 0.0, %v3843
        %v3845 = vpop.f32.mrb[0].mxu0
        %3846 = vmatprep.mubr.f32.mxu0 0.0
        %3847 = vmatmul.mubr.f32.gmra.mrb[0].mxu0 %v2831
        %v3848 = vpop.f32.mrb[0].mxu0
        %v3849 = vadd.f32 0.0, %v3848
        %v3850 = vpop.f32.mrb[0].mxu0
        %3851 = vmatprep.mubr.f32.mxu0 0.0
        %3852 = vmatmul.mubr.f32.gmra.mrb[0].mxu0 %v2834
        %v3853 = vpop.f32.mrb[0].mxu0
        %v3854 = vadd.f32 0.0, %v3853
        %v3855 = vpop.f32.mrb[0].mxu0
        %3856 = vmatprep.mubr.f32.mxu0 0.0
        %3857 = vmatmul.mubr.f32.gmra.mrb[0].mxu0 %v2837
        %v3858 = vpop.f32.mrb[0].mxu0
        %v3859 = vadd.f32 0.0, %v3858
        %v3860 = vpop.f32.mrb[0].mxu0
        %3861 = vmatprep.mubr.f32.mxu0 0.0
        %3862 = vmatmul.mubr.f32.gmra.mrb[0].mxu0 %v2840
        %v3863 = vpop.f32.mrb[0].mxu0
        %v3864 = vadd.f32 0.0, %v3863
        %v3865 = vpop.f32.mrb[0].mxu0
        %3866 = vmatprep.mubr.f32.mxu0 0.0
        %3867 = vmatmul.mubr.f32.gmra.mrb[0].mxu0 %v2843
        %v3868 = vpop.f32.mrb[0].mxu0
        %v3869 = vadd.f32 0.0, %v3868
        %v3870 = vpop.f32.mrb[0].mxu0
        %3871 = vmatprep.mubr.f32.mxu0 0.0
        %3872 = vmatmul.mubr.f32.gmra.mrb[0].mxu0 %v2846
        %v3873 = vpop.f32.mrb[0].mxu0
        %v3874 = vadd.f32 0.0, %v3873
        %v3875 = vpop.f32.mrb[0].mxu0
        %3876 = vmatprep.mubr.f32.mxu0 0.0
        %3877 = vmatmul.mubr.f32.gmra.mrb[0].mxu0 %v2849
        %v3878 = vpop.f32.mrb[0].mxu0
        %v3879 = vadd.f32 0.0, %v3878
        %v3880 = vpop.f32.mrb[0].mxu0
        %3881 = vmatprep.mubr.f32.mxu0 0.0
        %3882 = vmatmul.mubr.f32.gmra.mrb[0].mxu0 %v2852
        %v3883 = vpop.f32.mrb[0].mxu0
        %v3884 = vadd.f32 0.0, %v3883
        %v3885 = vpop.f32.mrb[0].mxu0
        %3886 = vmatprep.mubr.f32.mxu0 0.0
        %3887 = vmatmul.mubr.f32.gmra.mrb[0].mxu0 %v2855
        %v3888 = vpop.f32.mrb[0].mxu0
        %v3889 = vadd.f32 0.0, %v3888
        %v3890 = vpop.f32.mrb[0].mxu0
        %3891 = vmatprep.mubr.f32.mxu0 0.0
        %3892 = vmatmul.mubr.f32.gmra.mrb[0].mxu0 %v2858
        %v3893 = vpop.f32.mrb[0].mxu0
        %v3894 = vadd.f32 0.0, %v3893
        %v3895 = vpop.f32.mrb[0].mxu0
        %3896 = vmatprep.mubr.f32.mxu0 0.0
        %3897 = vmatmul.mubr.f32.gmra.mrb[0].mxu0 %v2861
        %v3898 = vpop.f32.mrb[0].mxu0
        %v3899 = vadd.f32 0.0, %v3898
        %v3900 = vpop.f32.mrb[0].mxu0
        %3901 = vmatprep.mubr.f32.mxu0 0.0
        %3902 = vmatmul.mubr.f32.gmra.mrb[0].mxu0 %v2864
        %v3903 = vpop.f32.mrb[0].mxu0
        %v3904 = vadd.f32 0.0, %v3903
        %v3905 = vpop.f32.mrb[0].mxu0
        %3906 = vmatprep.mubr.f32.mxu0 0.0
        %3907 = vmatmul.mubr.f32.gmra.mrb[0].mxu0 %v2867
        %v3908 = vpop.f32.mrb[0].mxu0
        %v3909 = vadd.f32 0.0, %v3908
        %v3910 = vpop.f32.mrb[0].mxu0
        %3911 = vmatprep.mubr.f32.mxu0 0.0
        %3912 = vmatmul.mubr.f32.gmra.mrb[0].mxu0 %v2870
        %v3913 = vpop.f32.mrb[0].mxu0
        %v3914 = vadd.f32 0.0, %v3913
        %v3915 = vpop.f32.mrb[0].mxu0
        %3916 = vmatprep.mubr.f32.mxu0 0.0
        %3917 = vmatmul.mubr.f32.gmra.mrb[0].mxu0 %v2873
        %v3918 = vpop.f32.mrb[0].mxu0
        %v3919 = vadd.f32 0.0, %v3918
        %v3920 = vpop.f32.mrb[0].mxu0
        %3921 = vmatprep.mubr.f32.mxu0 0.0
        %3922 = vmatmul.mubr.f32.gmra.mrb[0].mxu0 %v2876
        %v3923 = vpop.f32.mrb[0].mxu0
        %v3924 = vadd.f32 0.0, %v3923
        %v3925 = vpop.f32.mrb[0].mxu0
        %3926 = vmatprep.mubr.f32.mxu0 0.0
        %3927 = vmatmul.mubr.f32.gmra.mrb[0].mxu0 %v2879
        %v3928 = vpop.f32.mrb[0].mxu0
        %v3929 = vadd.f32 0.0, %v3928
        %v3930 = vpop.f32.mrb[0].mxu0
        %3931 = vmatprep.mubr.f32.mxu0 0.0
        %3932 = vmatmul.mubr.f32.gmra.mrb[0].mxu0 %v2882
        %v3933 = vpop.f32.mrb[0].mxu0
        %v3934 = vadd.f32 0.0, %v3933
        %v3935 = vpop.f32.mrb[0].mxu0
        %3936 = vmatprep.mubr.f32.mxu0 0.0
        %3937 = vmatmul.mubr.f32.gmra.mrb[0].mxu0 %v2885
        %v3938 = vpop.f32.mrb[0].mxu0
        %v3939 = vadd.f32 0.0, %v3938
        %v3940 = vpop.f32.mrb[0].mxu0
        %3941 = vmatprep.mubr.f32.mxu0 0.0
        %3942 = vmatmul.mubr.f32.gmra.mrb[0].mxu0 %v2888
        %v3943 = vpop.f32.mrb[0].mxu0
        %v3944 = vadd.f32 0.0, %v3943
        %v3945 = vpop.f32.mrb[0].mxu0
        %3946 = vmatprep.mubr.f32.mxu0 0.0
        %3947 = vmatmul.mubr.f32.gmra.mrb[0].mxu0 %v2891
        %v3948 = vpop.f32.mrb[0].mxu0
        %v3949 = vadd.f32 0.0, %v3948
        %v3950 = vpop.f32.mrb[0].mxu0
        %3951 = vmatprep.mubr.f32.mxu0 0.0
        %3952 = vmatmul.mubr.f32.gmra.mrb[0].mxu0 %v2894
        %v3953 = vpop.f32.mrb[0].mxu0
        %v3954 = vadd.f32 0.0, %v3953
        %v3955 = vpop.f32.mrb[0].mxu0
        %3956 = vmatprep.mubr.f32.mxu0 0.0
        %3957 = vmatmul.mubr.f32.gmra.mrb[0].mxu0 %v2897
        %v3958 = vpop.f32.mrb[0].mxu0
        %v3959 = vadd.f32 0.0, %v3958
        %v3960 = vpop.f32.mrb[0].mxu0
        %3961 = vmatprep.mubr.f32.mxu0 0.0
        %3962 = vmatmul.mubr.f32.gmra.mrb[0].mxu0 %v2900
        %v3963 = vpop.f32.mrb[0].mxu0
        %v3964 = vadd.f32 0.0, %v3963
        %v3965 = vpop.f32.mrb[0].mxu0
        %3966 = vmatprep.mubr.f32.mxu0 0.0
        %3967 = vmatmul.mubr.f32.gmra.mrb[0].mxu0 %v2903
        %v3968 = vpop.f32.mrb[0].mxu0
        %v3969 = vadd.f32 0.0, %v3968
        %v3970 = vpop.f32.mrb[0].mxu0
        %3971 = vmatprep.mubr.f32.mxu0 0.0
        %3972 = vmatmul.mubr.f32.gmra.mrb[0].mxu0 %v2906
        %v3973 = vpop.f32.mrb[0].mxu0
        %v3974 = vadd.f32 0.0, %v3973
        %v3975 = vpop.f32.mrb[0].mxu0
        %3976 = vmatprep.mubr.f32.mxu0 0.0
        %3977 = vmatmul.mubr.f32.gmra.mrb[0].mxu0 %v2909
        %v3978 = vpop.f32.mrb[0].mxu0
        %v3979 = vadd.f32 0.0, %v3978
        %v3980 = vpop.f32.mrb[0].mxu0
        %3981 = vmatprep.mubr.f32.mxu0 0.0
        %3982 = vmatmul.mubr.f32.gmra.mrb[0].mxu0 %v2912
        %v3983 = vpop.f32.mrb[0].mxu0
        %v3984 = vadd.f32 0.0, %v3983
        %v3985 = vpop.f32.mrb[0].mxu0
        %3986 = vmatprep.mubr.f32.mxu0 0.0
        %3987 = vmatmul.mubr.f32.gmra.mrb[0].mxu0 %v2915
        %v3988 = vpop.f32.mrb[0].mxu0
        %v3989 = vadd.f32 0.0, %v3988
        %v3990 = vpop.f32.mrb[0].mxu0
        %3991 = vmatprep.mubr.f32.mxu0 0.0
        %3992 = vmatmul.mubr.f32.gmra.mrb[0].mxu0 %v2918
        %v3993 = vpop.f32.mrb[0].mxu0
        %v3994 = vadd.f32 0.0, %v3993
        %v3995 = vpop.f32.mrb[0].mxu0
        %3996 = vmatprep.mubr.f32.mxu0 0.0
        %3997 = vmatmul.mubr.f32.gmra.mrb[0].mxu0 %v2921
        %v3998 = vpop.f32.mrb[0].mxu0
        %v3999 = vadd.f32 0.0, %v3998
        %v4000 = vpop.f32.mrb[0].mxu0
        %4001 = vmatprep.mubr.f32.mxu0 0.0
        %4002 = vmatmul.mubr.f32.gmra.mrb[0].mxu0 %v2924
        %v4003 = vpop.f32.mrb[0].mxu0
        %v4004 = vadd.f32 0.0, %v4003
        %v4005 = vpop.f32.mrb[0].mxu0
        %4006 = vmatprep.mubr.f32.mxu0 0.0
        %4007 = vmatmul.mubr.f32.gmra.mrb[0].mxu0 %v2927
        %v4008 = vpop.f32.mrb[0].mxu0
        %v4009 = vadd.f32 0.0, %v4008
        %v4010 = vpop.f32.mrb[0].mxu0
        %4011 = vmatprep.mubr.f32.mxu0 0.0
        %4012 = vmatmul.mubr.f32.gmra.mrb[0].mxu0 %v2930
        %v4013 = vpop.f32.mrb[0].mxu0
        %v4014 = vadd.f32 0.0, %v4013
        %v4015 = vpop.f32.mrb[0].mxu0
        %4016 = vmatprep.mubr.f32.mxu0 0.0
        %4017 = vmatmul.mubr.f32.gmra.mrb[0].mxu0 %v2933
        %v4018 = vpop.f32.mrb[0].mxu0
        %v4019 = vadd.f32 0.0, %v4018
        %v4020 = vpop.f32.mrb[0].mxu0
        %4021 = vmatprep.mubr.f32.mxu0 0.0
        %4022 = vmatmul.mubr.f32.gmra.mrb[0].mxu0 %v2936
        %v4023 = vpop.f32.mrb[0].mxu0
        %v4024 = vadd.f32 0.0, %v4023
        %v4025 = vpop.f32.mrb[0].mxu0
        %4026 = vmatprep.mubr.f32.mxu0 0.0
        %4027 = vmatmul.mubr.f32.gmra.mrb[0].mxu0 %v2939
        %v4028 = vpop.f32.mrb[0].mxu0
        %v4029 = vadd.f32 0.0, %v4028
        %v4030 = vpop.f32.mrb[0].mxu0
        %4031 = vmatprep.mubr.f32.mxu0 0.0
        %4032 = vmatmul.mubr.f32.gmra.mrb[0].mxu0 %v2942
        %v4033 = vpop.f32.mrb[0].mxu0
        %v4034 = vadd.f32 0.0, %v4033
        %v4035 = vpop.f32.mrb[0].mxu0
        %4036 = vmatprep.mubr.f32.mxu0 0.0
        %4037 = vmatmul.mubr.f32.gmra.mrb[0].mxu0 %v2945
        %v4038 = vpop.f32.mrb[0].mxu0
        %v4039 = vadd.f32 0.0, %v4038
        %v4040 = vpop.f32.mrb[0].mxu0
        %4041 = vmatprep.mubr.f32.mxu0 0.0
        %4042 = vmatmul.mubr.f32.gmra.mrb[0].mxu0 %v2948
        %v4043 = vpop.f32.mrb[0].mxu0
        %v4044 = vadd.f32 0.0, %v4043
        %v4045 = vpop.f32.mrb[0].mxu0
        %4046 = vmatprep.mubr.f32.mxu0 0.0
        %4047 = vmatmul.mubr.f32.gmra.mrb[0].mxu0 %v2951
        %v4048 = vpop.f32.mrb[0].mxu0
        %v4049 = vadd.f32 0.0, %v4048
        %v4050 = vpop.f32.mrb[0].mxu0
        %4051 = vmatprep.mubr.f32.mxu0 0.0
        %4052 = vmatmul.mubr.f32.gmra.mrb[0].mxu0 %v2954
        %v4053 = vpop.f32.mrb[0].mxu0
        %v4054 = vadd.f32 0.0, %v4053
        %v4055 = vpop.f32.mrb[0].mxu0
        %4056 = vmatprep.mubr.f32.mxu0 0.0
        %4057 = vmatmul.mubr.f32.gmra.mrb[0].mxu0 %v2957
        %v4058 = vpop.f32.mrb[0].mxu0
        %v4059 = vadd.f32 0.0, %v4058
        %v4060 = vpop.f32.mrb[0].mxu0
        %4061 = vmatprep.mubr.f32.mxu0 0.0
        %4062 = vmatmul.mubr.f32.gmra.mrb[0].mxu0 %v2960
        %v4063 = vpop.f32.mrb[0].mxu0
        %v4064 = vadd.f32 0.0, %v4063
        %v4065 = vpop.f32.mrb[0].mxu0
        %4066 = vmatprep.mubr.f32.mxu0 0.0
        %4067 = vmatmul.mubr.f32.gmra.mrb[0].mxu0 %v2963
        %v4068 = vpop.f32.mrb[0].mxu0
        %v4069 = vadd.f32 0.0, %v4068
        %v4070 = vpop.f32.mrb[0].mxu0
        %4071 = vmatprep.mubr.f32.mxu0 0.0
        %4072 = vmatmul.mubr.f32.gmra.mrb[0].mxu0 %v2966
        %v4073 = vpop.f32.mrb[0].mxu0
        %v4074 = vadd.f32 0.0, %v4073
        %v4075 = vpop.f32.mrb[0].mxu0
        %4076 = vmatprep.mubr.f32.mxu0 0.0
        %4077 = vmatmul.mubr.f32.gmra.mrb[0].mxu0 %v2969
        %v4078 = vpop.f32.mrb[0].mxu0
        %v4079 = vadd.f32 0.0, %v4078
        %v4080 = vpop.f32.mrb[0].mxu0
        %4081 = vmatprep.mubr.f32.mxu0 0.0
        %4082 = vmatmul.mubr.f32.gmra.mrb[0].mxu0 %v2972
        %v4083 = vpop.f32.mrb[0].mxu0
        %v4084 = vadd.f32 0.0, %v4083
        %v4085 = vpop.f32.mrb[0].mxu0
        %4086 = vmatprep.mubr.f32.mxu0 0.0
        %4087 = vmatmul.mubr.f32.gmra.mrb[0].mxu0 %v2975
        %v4088 = vpop.f32.mrb[0].mxu0
        %v4089 = vadd.f32 0.0, %v4088
        %v4090 = vpop.f32.mrb[0].mxu0
        %4091 = vmatprep.mubr.f32.mxu0 0.0
        %4092 = vmatmul.mubr.f32.gmra.mrb[0].mxu0 %v2978
        %v4093 = vpop.f32.mrb[0].mxu0
        %v4094 = vadd.f32 0.0, %v4093
        %v4095 = vpop.f32.mrb[0].mxu0
        %4096 = vmatprep.mubr.f32.mxu0 0.0
        %4097 = vmatmul.mubr.f32.gmra.mrb[0].mxu0 %v2981
        %v4098 = vpop.f32.mrb[0].mxu0
        %v4099 = vadd.f32 0.0, %v4098
        %v4100 = vpop.f32.mrb[0].mxu0
        %4101 = vmatprep.mubr.f32.mxu0 0.0
        %4102 = vmatmul.mubr.f32.gmra.mrb[0].mxu0 %v2984
        %v4103 = vpop.f32.mrb[0].mxu0
        %v4104 = vadd.f32 0.0, %v4103
        %v4105 = vpop.f32.mrb[0].mxu0
        %4106 = vmatprep.mubr.f32.mxu0 0.0
        %4107 = vmatmul.mubr.f32.gmra.mrb[0].mxu0 %v2987
        %v4108 = vpop.f32.mrb[0].mxu0
        %v4109 = vadd.f32 0.0, %v4108
        %v4110 = vpop.f32.mrb[0].mxu0
        %4111 = vmatprep.mubr.f32.mxu0 0.0
        %4112 = vmatmul.mubr.f32.gmra.mrb[0].mxu0 %v2990
        %v4113 = vpop.f32.mrb[0].mxu0
        %v4114 = vadd.f32 0.0, %v4113
        %v4115 = vpop.f32.mrb[0].mxu0
        %4116 = vmatprep.mubr.f32.mxu0 0.0
        %4117 = vmatmul.mubr.f32.gmra.mrb[0].mxu0 %v2993
        %v4118 = vpop.f32.mrb[0].mxu0
        %v4119 = vadd.f32 0.0, %v4118
        %v4120 = vpop.f32.mrb[0].mxu0
        %4121 = vmatprep.mubr.f32.mxu0 0.0
        %4122 = vmatmul.mubr.f32.gmra.mrb[0].mxu0 %v2996
        %v4123 = vpop.f32.mrb[0].mxu0
        %v4124 = vadd.f32 0.0, %v4123
        %v4125 = vpop.f32.mrb[0].mxu0
        %4126 = vmatprep.mubr.f32.mxu0 0.0
        %4127 = vmatmul.mubr.f32.gmra.mrb[0].mxu0 %v2999
        %v4128 = vpop.f32.mrb[0].mxu0
        %v4129 = vadd.f32 0.0, %v4128
        %v4130 = vpop.f32.mrb[0].mxu0
        %4131 = vmatprep.mubr.f32.mxu0 0.0
        %4132 = vmatmul.mubr.f32.gmra.mrb[0].mxu0 %v3002
        %v4133 = vpop.f32.mrb[0].mxu0
        %v4134 = vadd.f32 0.0, %v4133
        %v4135 = vpop.f32.mrb[0].mxu0
        %4136 = vmatprep.mubr.f32.mxu0 0.0
        %4137 = vmatmul.mubr.f32.gmra.mrb[0].mxu0 %v3005
        %v4138 = vpop.f32.mrb[0].mxu0
        %v4139 = vadd.f32 0.0, %v4138
        %v4140 = vpop.f32.mrb[0].mxu0
        %4141 = vmatprep.mubr.f32.mxu0 0.0
        %4142 = vmatmul.mubr.f32.gmra.mrb[0].mxu0 %v3008
        %v4143 = vpop.f32.mrb[0].mxu0
        %v4144 = vadd.f32 0.0, %v4143
        %v4145 = vpop.f32.mrb[0].mxu0
        %4146 = vmatprep.mubr.f32.mxu0 0.0
        %4147 = vmatmul.mubr.f32.gmra.mrb[0].mxu0 %v3011
        %v4148 = vpop.f32.mrb[0].mxu0
        %v4149 = vadd.f32 0.0, %v4148
        %v4150 = vpop.f32.mrb[0].mxu0
        %4151 = vmatprep.mubr.f32.mxu0 0.0
        %4152 = vmatmul.mubr.f32.gmra.mrb[0].mxu0 %v3014
        %v4153 = vpop.f32.mrb[0].mxu0
        %v4154 = vadd.f32 0.0, %v4153
        %v4155 = vpop.f32.mrb[0].mxu0
        %4156 = vmatprep.mubr.f32.mxu0 0.0
        %4157 = vmatmul.mubr.f32.gmra.mrb[0].mxu0 %v3017
        %v4158 = vpop.f32.mrb[0].mxu0
        %v4159 = vadd.f32 0.0, %v4158
        %v4160 = vpop.f32.mrb[0].mxu0
        %4161 = vmatprep.mubr.f32.mxu0 0.0
        %4162 = vmatmul.mubr.f32.gmra.mrb[0].mxu0 %v3020
        %v4163 = vpop.f32.mrb[0].mxu0
        %v4164 = vadd.f32 0.0, %v4163
        %v4165 = vpop.f32.mrb[0].mxu0
        %4166 = vmatprep.mubr.f32.mxu0 0.0
        %4167 = vmatmul.mubr.f32.gmra.mrb[0].mxu0 %v3023
        %v4168 = vpop.f32.mrb[0].mxu0
        %v4169 = vadd.f32 0.0, %v4168
        %v4170 = vpop.f32.mrb[0].mxu0
        %4171 = vmatprep.mubr.f32.mxu0 0.0
        %4172 = vmatmul.mubr.f32.gmra.mrb[0].mxu0 %v3026
        %v4173 = vpop.f32.mrb[0].mxu0
        %v4174 = vadd.f32 0.0, %v4173
        %v4175 = vpop.f32.mrb[0].mxu0
        %4176 = vmatprep.mubr.f32.mxu0 0.0
        %4177 = vmatmul.mubr.f32.gmra.mrb[0].mxu0 %v3029
        %v4178 = vpop.f32.mrb[0].mxu0
        %v4179 = vadd.f32 0.0, %v4178
        %v4180 = vpop.f32.mrb[0].mxu0
        %4181 = vmatprep.mubr.f32.mxu0 0.0
        %4182 = vmatmul.mubr.f32.gmra.mrb[0].mxu0 %v3032
        %v4183 = vpop.f32.mrb[0].mxu0
        %v4184 = vadd.f32 0.0, %v4183
        %v4185 = vpop.f32.mrb[0].mxu0
        %4186 = vmatprep.mubr.f32.mxu0 0.0
        %4187 = vmatmul.mubr.f32.gmra.mrb[0].mxu0 %v3035
        %v4188 = vpop.f32.mrb[0].mxu0
        %v4189 = vadd.f32 0.0, %v4188
        %v4190 = vpop.f32.mrb[0].mxu0
        %4191 = vmatprep.mubr.f32.mxu0 0.0
        %4192 = vmatmul.mubr.f32.gmra.mrb[0].mxu0 %v3038
        %v4193 = vpop.f32.mrb[0].mxu0
        %v4194 = vadd.f32 0.0, %v4193
        %v4195 = vpop.f32.mrb[0].mxu0
        %4196 = vmatprep.mubr.f32.mxu0 0.0
        %4197 = vmatmul.mubr.f32.gmra.mrb[0].mxu0 %v3041
        %v4198 = vpop.f32.mrb[0].mxu0
        %v4199 = vadd.f32 0.0, %v4198
        %v4200 = vpop.f32.mrb[0].mxu0
        %4201 = vmatprep.mubr.f32.mxu0 0.0
        %4202 = vmatmul.mubr.f32.gmra.mrb[0].mxu0 %v3044
        %v4203 = vpop.f32.mrb[0].mxu0
        %v4204 = vadd.f32 0.0, %v4203
        %v4205 = vpop.f32.mrb[0].mxu0
        %4206 = vmatprep.mubr.f32.mxu0 0.0
        %4207 = vmatmul.mubr.f32.gmra.mrb[0].mxu0 %v3047
        %v4208 = vpop.f32.mrb[0].mxu0
        %v4209 = vadd.f32 0.0, %v4208
        %v4210 = vpop.f32.mrb[0].mxu0
        %4211 = vmatprep.mubr.f32.mxu0 0.0
        %4212 = vmatmul.mubr.f32.gmra.mrb[0].mxu0 %v3050
        %v4213 = vpop.f32.mrb[0].mxu0
        %v4214 = vadd.f32 0.0, %v4213
        %v4215 = vpop.f32.mrb[0].mxu0
        %4216 = vmatprep.mubr.f32.mxu0 0.0
        %4217 = vmatmul.mubr.f32.gmra.mrb[0].mxu0 %v3053
        %v4218 = vpop.f32.mrb[0].mxu0
        %v4219 = vadd.f32 0.0, %v4218
        %v4220 = vpop.f32.mrb[0].mxu0
        %4221 = vmatprep.mubr.f32.mxu0 0.0
        %4222 = vmatmul.mubr.f32.gmra.mrb[0].mxu0 %v3056
        %v4223 = vpop.f32.mrb[0].mxu0
        %v4224 = vadd.f32 0.0, %v4223
        %v4225 = vpop.f32.mrb[0].mxu0
        %4226 = vmatprep.mubr.f32.mxu0 0.0
        %4227 = vmatmul.mubr.f32.gmra.mrb[0].mxu0 %v3059
        %v4228 = vpop.f32.mrb[0].mxu0
        %v4229 = vadd.f32 0.0, %v4228
        %v4230 = vpop.f32.mrb[0].mxu0
        %4231 = vmatprep.mubr.f32.mxu0 0.0
        %4232 = vmatmul.mubr.f32.gmra.mrb[0].mxu0 %v3062
        %v4233 = vpop.f32.mrb[0].mxu0
        %v4234 = vadd.f32 0.0, %v4233
        %v4235 = vpop.f32.mrb[0].mxu0
        %4236 = vmatprep.mubr.f32.mxu0 0.0
        %4237 = vmatmul.mubr.f32.gmra.mrb[0].mxu0 %v3065
        %v4238 = vpop.f32.mrb[0].mxu0
        %v4239 = vadd.f32 0.0, %v4238
        %v4240 = vpop.f32.mrb[0].mxu0
        %4241 = vmatprep.mubr.f32.mxu0 0.0
        %4242 = vmatmul.mubr.f32.gmra.mrb[0].mxu0 %v3068
        %v4243 = vpop.f32.mrb[0].mxu0
        %v4244 = vadd.f32 0.0, %v4243
        %v4245 = vpop.f32.mrb[0].mxu0
        %4246 = vmatprep.mubr.f32.mxu0 0.0
        %4247 = vmatmul.mubr.f32.gmra.mrb[0].mxu0 %v3071
        %v4248 = vpop.f32.mrb[0].mxu0
        %v4249 = vadd.f32 0.0, %v4248
        %v4250 = vpop.f32.mrb[0].mxu0
        %4251 = vmatprep.mubr.f32.mxu0 0.0
        %4252 = vmatmul.mubr.f32.gmra.mrb[0].mxu0 %v3074
        %v4253 = vpop.f32.mrb[0].mxu0
        %v4254 = vadd.f32 0.0, %v4253
        %v4255 = vpop.f32.mrb[0].mxu0
        %4256 = vmatprep.mubr.f32.mxu0 0.0
        %4257 = vmatmul.mubr.f32.gmra.mrb[0].mxu0 %v3077
        %v4258 = vpop.f32.mrb[0].mxu0
        %v4259 = vadd.f32 0.0, %v4258
        %v4260 = vpop.f32.mrb[0].mxu0
        %4261 = vmatprep.mubr.f32.mxu0 0.0
        %4262 = vmatmul.mubr.f32.gmra.mrb[0].mxu0 %v3080
        %v4263 = vpop.f32.mrb[0].mxu0
        %v4264 = vadd.f32 0.0, %v4263
        %v4265 = vpop.f32.mrb[0].mxu0
        %4266 = vmatprep.mubr.f32.mxu0 0.0
        %4267 = vmatmul.mubr.f32.gmra.mrb[0].mxu0 %v3083
        %v4268 = vpop.f32.mrb[0].mxu0
        %v4269 = vadd.f32 0.0, %v4268
        %v4270 = vpop.f32.mrb[0].mxu0
        %4271 = vmatprep.mubr.f32.mxu0 0.0
        %4272 = vmatmul.mubr.f32.gmra.mrb[0].mxu0 %v3086
        %v4273 = vpop.f32.mrb[0].mxu0
        %v4274 = vadd.f32 0.0, %v4273
        %v4275 = vpop.f32.mrb[0].mxu0
        %4276 = vmatprep.mubr.f32.mxu0 0.0
        %4277 = vmatmul.mubr.f32.gmra.mrb[0].mxu0 %v3089
        %v4278 = vpop.f32.mrb[0].mxu0
        %v4279 = vadd.f32 0.0, %v4278
        %v4280 = vpop.f32.mrb[0].mxu0
        %4281 = vmatprep.mubr.f32.mxu0 0.0
        %4282 = vmatmul.mubr.f32.gmra.mrb[0].mxu0 %v3092
        %v4283 = vpop.f32.mrb[0].mxu0
        %v4284 = vadd.f32 0.0, %v4283
        %v4285 = vpop.f32.mrb[0].mxu0
        %4286 = vmatprep.mubr.f32.mxu0 0.0
        %4287 = vmatmul.mubr.f32.gmra.mrb[0].mxu0 %v3095
        %v4288 = vpop.f32.mrb[0].mxu0
        %v4289 = vadd.f32 0.0, %v4288
        %v4290 = vpop.f32.mrb[0].mxu0
        %4291 = vmatprep.mubr.f32.mxu0 0.0
        %4292 = vmatmul.mubr.f32.gmra.mrb[0].mxu0 %v3098
        %v4293 = vpop.f32.mrb[0].mxu0
        %v4294 = vadd.f32 0.0, %v4293
        %v4295 = vpop.f32.mrb[0].mxu0
        %4296 = vmatprep.mubr.f32.mxu0 0.0
        %4297 = vmatmul.mubr.f32.gmra.mrb[0].mxu0 %v3101
        %v4298 = vpop.f32.mrb[0].mxu0
        %v4299 = vadd.f32 0.0, %v4298
        %v4300 = vpop.f32.mrb[0].mxu0
        %4301 = vmatprep.mubr.f32.mxu0 0.0
        %4302 = vmatmul.mubr.f32.gmra.mrb[0].mxu0 %v3104
        %v4303 = vpop.f32.mrb[0].mxu0
        %v4304 = vadd.f32 0.0, %v4303
        %v4305 = vpop.f32.mrb[0].mxu0
        %4306 = vmatprep.mubr.f32.mxu0 0.0
        %4307 = vmatmul.mubr.f32.gmra.mrb[0].mxu0 %v3107
        %v4308 = vpop.f32.mrb[0].mxu0
        %v4309 = vadd.f32 0.0, %v4308
        %v4310 = vpop.f32.mrb[0].mxu0
        %4311 = vmatprep.mubr.f32.mxu0 0.0
        %4312 = vmatmul.mubr.f32.gmra.mrb[0].mxu0 %v3110
        %v4313 = vpop.f32.mrb[0].mxu0
        %v4314 = vadd.f32 0.0, %v4313
        %v4315 = vpop.f32.mrb[0].mxu0
        %4316 = vmatprep.mubr.f32.mxu0 0.0
        %4317 = vmatmul.mubr.f32.gmra.mrb[0].mxu0 %v3113
        %v4318 = vpop.f32.mrb[0].mxu0
        %v4319 = vadd.f32 0.0, %v4318
        %v4320 = vpop.f32.mrb[0].mxu0
        %4321 = vmatprep.mubr.f32.mxu0 0.0
        %4322 = vmatmul.mubr.f32.gmra.mrb[0].mxu0 %v3116
        %v4323 = vpop.f32.mrb[0].mxu0
        %v4324 = vadd.f32 0.0, %v4323
        %v4325 = vpop.f32.mrb[0].mxu0
        %4326 = vmatprep.mubr.f32.mxu0 0.0
        %4327 = vmatmul.mubr.f32.gmra.mrb[0].mxu0 %v3119
        %v4328 = vpop.f32.mrb[0].mxu0
        %v4329 = vadd.f32 0.0, %v4328
        %v4330 = vpop.f32.mrb[0].mxu0
        %4331 = vmatprep.mubr.f32.mxu0 0.0
        %4332 = vmatmul.mubr.f32.gmra.mrb[0].mxu0 %v3122
        %v4333 = vpop.f32.mrb[0].mxu0
        %v4334 = vadd.f32 0.0, %v4333
        %v4335 = vpop.f32.mrb[0].mxu0
        %4336 = vmatprep.mubr.f32.mxu0 0.0
        %4337 = vmatmul.mubr.f32.gmra.mrb[0].mxu0 %v3125
        %v4338 = vpop.f32.mrb[0].mxu0
        %v4339 = vadd.f32 0.0, %v4338
        %v4340 = vpop.f32.mrb[0].mxu0
        %4341 = vmatprep.mubr.f32.mxu0 0.0
        %4342 = vmatmul.mubr.f32.gmra.mrb[0].mxu0 %v3128
        %v4343 = vpop.f32.mrb[0].mxu0
        %v4344 = vadd.f32 0.0, %v4343
        %v4345 = vpop.f32.mrb[0].mxu0
        %4346 = vmatprep.mubr.f32.mxu0 0.0
        %4347 = vmatmul.mubr.f32.gmra.mrb[0].mxu0 %v3131
        %v4348 = vpop.f32.mrb[0].mxu0
        %v4349 = vadd.f32 0.0, %v4348
        %v4350 = vpop.f32.mrb[0].mxu0
        %4351 = vmatprep.mubr.f32.mxu0 0.0
        %4352 = vmatmul.mubr.f32.gmra.mrb[0].mxu0 %v3134
        %v4353 = vpop.f32.mrb[0].mxu0
        %v4354 = vadd.f32 0.0, %v4353
        %v4355 = vpop.f32.mrb[0].mxu0
        %4356 = vmatprep.mubr.f32.mxu0 0.0
        %4357 = vmatmul.mubr.f32.gmra.mrb[0].mxu0 %v3137
        %v4358 = vpop.f32.mrb[0].mxu0
        %v4359 = vadd.f32 0.0, %v4358
        %v4360 = vpop.f32.mrb[0].mxu0
        %4361 = vmatprep.mubr.f32.mxu0 0.0
        %4362 = vmatmul.mubr.f32.gmra.mrb[0].mxu0 %v3140
        %v4363 = vpop.f32.mrb[0].mxu0
        %v4364 = vadd.f32 0.0, %v4363
        %v4365 = vpop.f32.mrb[0].mxu0
        %4366 = vmatprep.mubr.f32.mxu0 0.0
        %4367 = vmatmul.mubr.f32.gmra.mrb[0].mxu0 %v3143
        %v4368 = vpop.f32.mrb[0].mxu0
        %v4369 = vadd.f32 0.0, %v4368
        %v4370 = vpop.f32.mrb[0].mxu0
        %4371 = vmatprep.mubr.f32.mxu0 0.0
        %4372 = vmatmul.mubr.f32.gmra.mrb[0].mxu0 %v3146
        %v4373 = vpop.f32.mrb[0].mxu0
        %v4374 = vadd.f32 0.0, %v4373
        %v4375 = vpop.f32.mrb[0].mxu0
        %4376 = vmatprep.mubr.f32.mxu0 0.0
        %4377 = vmatmul.mubr.f32.gmra.mrb[0].mxu0 %v3149
        %v4378 = vpop.f32.mrb[0].mxu0
        %v4379 = vadd.f32 0.0, %v4378
        %v4380 = vpop.f32.mrb[0].mxu0
        %4381 = vmatprep.mubr.f32.mxu0 0.0
        %4382 = vmatmul.mubr.f32.gmra.mrb[0].mxu0 %v3152
        %v4383 = vpop.f32.mrb[0].mxu0
        %v4384 = vadd.f32 0.0, %v4383
        %v4385 = vpop.f32.mrb[0].mxu0
        %4386 = vmatprep.mubr.f32.mxu0 0.0
        %4387 = vmatmul.mubr.f32.gmra.mrb[0].mxu0 %v3155
        %v4388 = vpop.f32.mrb[0].mxu0
        %v4389 = vadd.f32 0.0, %v4388
        %v4390 = vpop.f32.mrb[0].mxu0
        %4391 = vmatprep.mubr.f32.mxu0 0.0
        %4392 = vmatmul.mubr.f32.gmra.mrb[0].mxu0 %v3158
        %v4393 = vpop.f32.mrb[0].mxu0
        %v4394 = vadd.f32 0.0, %v4393
        %v4395 = vpop.f32.mrb[0].mxu0
        %4396 = vmatprep.mubr.f32.mxu0 0.0
        %4397 = vmatmul.mubr.f32.gmra.mrb[0].mxu0 %v3161
        %v4398 = vpop.f32.mrb[0].mxu0
        %v4399 = vadd.f32 0.0, %v4398
        %v4400 = vpop.f32.mrb[0].mxu0
        %4401 = vmatprep.mubr.f32.mxu0 0.0
        %4402 = vmatmul.mubr.f32.gmra.mrb[0].mxu0 %v3164
        %v4403 = vpop.f32.mrb[0].mxu0
        %v4404 = vadd.f32 0.0, %v4403
        %v4405 = vpop.f32.mrb[0].mxu0
        %4406 = vmatprep.mubr.f32.mxu0 0.0
        %4407 = vmatmul.mubr.f32.gmra.mrb[0].mxu0 %v3167
        %v4408 = vpop.f32.mrb[0].mxu0
        %v4409 = vadd.f32 0.0, %v4408
        %v4410 = vpop.f32.mrb[0].mxu0
        %4411 = vmatprep.mubr.f32.mxu0 0.0
        %4412 = vmatmul.mubr.f32.gmra.mrb[0].mxu0 %v3170
        %v4413 = vpop.f32.mrb[0].mxu0
        %v4414 = vadd.f32 0.0, %v4413
        %v4415 = vpop.f32.mrb[0].mxu0
        %4416 = vmatprep.mubr.f32.mxu0 0.0
        %4417 = vmatmul.mubr.f32.gmra.mrb[0].mxu0 %v3173
        %v4418 = vpop.f32.mrb[0].mxu0
        %v4419 = vadd.f32 0.0, %v4418
        %v4420 = vpop.f32.mrb[0].mxu0
        %4421 = vmatprep.mubr.f32.mxu0 0.0
        %4422 = vmatmul.mubr.f32.gmra.mrb[0].mxu0 %v3176
        %v4423 = vpop.f32.mrb[0].mxu0
        %v4424 = vadd.f32 0.0, %v4423
        %v4425 = vpop.f32.mrb[0].mxu0
        %4426 = vmatprep.mubr.f32.mxu0 0.0
        %4427 = vmatmul.mubr.f32.gmra.mrb[0].mxu0 %v3179
        %v4428 = vpop.f32.mrb[0].mxu0
        %v4429 = vadd.f32 0.0, %v4428
        %v4430 = vpop.f32.mrb[0].mxu0
        %4431 = vmatprep.mubr.f32.mxu0 0.0
        %4432 = vmatmul.mubr.f32.gmra.mrb[0].mxu0 %v3182
        %v4433 = vpop.f32.mrb[0].mxu0
        %v4434 = vadd.f32 0.0, %v4433
        %v4435 = vpop.f32.mrb[0].mxu0
        %4436 = vmatprep.mubr.f32.mxu0 0.0
        %4437 = vmatmul.mubr.f32.gmra.mrb[0].mxu0 %v3185
        %v4438 = vpop.f32.mrb[0].mxu0
        %v4439 = vadd.f32 0.0, %v4438
        %v4440 = vpop.f32.mrb[0].mxu0
        %4441 = vmatprep.mubr.f32.mxu0 0.0
        %4442 = vmatmul.mubr.f32.gmra.mrb[0].mxu0 %v3188
        %v4443 = vpop.f32.mrb[0].mxu0
        %v4444 = vadd.f32 0.0, %v4443
        %v4445 = vpop.f32.mrb[0].mxu0
        %4446 = vmatprep.mubr.f32.mxu0 0.0
        %4447 = vmatmul.mubr.f32.gmra.mrb[0].mxu0 %v3191
        %v4448 = vpop.f32.mrb[0].mxu0
        %v4449 = vadd.f32 0.0, %v4448
        %v4450 = vpop.f32.mrb[0].mxu0
        %4451 = vmatprep.mubr.f32.mxu0 0.0
        %4452 = vmatmul.mubr.f32.gmra.mrb[0].mxu0 %v3194
        %v4453 = vpop.f32.mrb[0].mxu0
        %v4454 = vadd.f32 0.0, %v4453
        %v4455 = vpop.f32.mrb[0].mxu0
        %4456 = vmatprep.mubr.f32.mxu0 0.0
        %4457 = vmatmul.mubr.f32.gmra.mrb[0].mxu0 %v3197
        %v4458 = vpop.f32.mrb[0].mxu0
        %v4459 = vadd.f32 0.0, %v4458
        %v4460 = vpop.f32.mrb[0].mxu0
        %4461 = vmatprep.mubr.f32.mxu0 0.0
        %4462 = vmatmul.mubr.f32.gmra.mrb[0].mxu0 %v3200
        %v4463 = vpop.f32.mrb[0].mxu0
        %v4464 = vadd.f32 0.0, %v4463
        %v4465 = vpop.f32.mrb[0].mxu0
        %4466 = vmatprep.mubr.f32.mxu0 0.0
        %4467 = vmatmul.mubr.f32.gmra.mrb[0].mxu0 %v3203
        %v4468 = vpop.f32.mrb[0].mxu0
        %v4469 = vadd.f32 0.0, %v4468
        %v4470 = vpop.f32.mrb[0].mxu0
        %4471 = vmatprep.mubr.f32.mxu0 0.0
        %4472 = vmatmul.mubr.f32.gmra.mrb[0].mxu0 %v3206
        %v4473 = vpop.f32.mrb[0].mxu0
        %v4474 = vadd.f32 0.0, %v4473
        %v4475 = vpop.f32.mrb[0].mxu0
        %4476 = vmatprep.mubr.f32.mxu0 0.0
        %4477 = vmatmul.mubr.f32.gmra.mrb[0].mxu0 %v3209
        %v4478 = vpop.f32.mrb[0].mxu0
        %v4479 = vadd.f32 0.0, %v4478
        %v4480 = vpop.f32.mrb[0].mxu0
        %4481 = vmatprep.mubr.f32.mxu0 0.0
        %4482 = vmatmul.mubr.f32.gmra.mrb[0].mxu0 %v3212
        %v4483 = vpop.f32.mrb[0].mxu0
        %v4484 = vadd.f32 0.0, %v4483
        %v4485 = vpop.f32.mrb[0].mxu0
        %4486 = vmatprep.mubr.f32.mxu0 0.0
        %4487 = vmatmul.mubr.f32.gmra.mrb[0].mxu0 %v3215
        %v4488 = vpop.f32.mrb[0].mxu0
        %v4489 = vadd.f32 0.0, %v4488
        %v4490 = vpop.f32.mrb[0].mxu0
        %4491 = vmatprep.mubr.f32.mxu0 0.0
        %4492 = vmatmul.mubr.f32.gmra.mrb[0].mxu0 %v3218
        %v4493 = vpop.f32.mrb[0].mxu0
        %v4494 = vadd.f32 0.0, %v4493
        %v4495 = vpop.f32.mrb[0].mxu0
        %4496 = vmatprep.mubr.f32.mxu0 0.0
        %4497 = vmatmul.mubr.f32.gmra.mrb[0].mxu0 %v3221
        %v4498 = vpop.f32.mrb[0].mxu0
        %v4499 = vadd.f32 0.0, %v4498
        %v4500 = vpop.f32.mrb[0].mxu0
        %4501 = vmatprep.mubr.f32.mxu0 0.0
        %4502 = vmatmul.mubr.f32.gmra.mrb[0].mxu0 %v3224
        %v4503 = vpop.f32.mrb[0].mxu0
        %v4504 = vadd.f32 0.0, %v4503
        %v4505 = vpop.f32.mrb[0].mxu0
        %4506 = vmatprep.mubr.f32.mxu0 0.0
        %4507 = vmatmul.mubr.f32.gmra.mrb[0].mxu0 %v3227
        %v4508 = vpop.f32.mrb[0].mxu0
        %v4509 = vadd.f32 0.0, %v4508
        %v4510 = vpop.f32.mrb[0].mxu0
        %4511 = vmatprep.mubr.f32.mxu0 0.0
        %4512 = vmatmul.mubr.f32.gmra.mrb[0].mxu0 %v3230
        %v4513 = vpop.f32.mrb[0].mxu0
        %v4514 = vadd.f32 0.0, %v4513
        %v4515 = vpop.f32.mrb[0].mxu0
        %4516 = vmatprep.mubr.f32.mxu0 0.0
        %4517 = vmatmul.mubr.f32.gmra.mrb[0].mxu0 %v3233
        %v4518 = vpop.f32.mrb[0].mxu0
        %v4519 = vadd.f32 0.0, %v4518
        %v4520 = vpop.f32.mrb[0].mxu0
        %4521 = vmatprep.mubr.f32.mxu0 0.0
        %4522 = vmatmul.mubr.f32.gmra.mrb[0].mxu0 %v3236
        %v4523 = vpop.f32.mrb[0].mxu0
        %v4524 = vadd.f32 0.0, %v4523
        %v4525 = vpop.f32.mrb[0].mxu0
        %4526 = vmatprep.mubr.f32.mxu0 0.0
        %4527 = vmatmul.mubr.f32.gmra.mrb[0].mxu0 %v3239
        %v4528 = vpop.f32.mrb[0].mxu0
        %v4529 = vadd.f32 0.0, %v4528
        %v4530 = vpop.f32.mrb[0].mxu0
        %4531 = vmatprep.mubr.f32.mxu0 0.0
        %4532 = vmatmul.mubr.f32.gmra.mrb[0].mxu0 %v3242
        %v4533 = vpop.f32.mrb[0].mxu0
        %v4534 = vadd.f32 0.0, %v4533
        %v4535 = vpop.f32.mrb[0].mxu0
        %4536 = vmatprep.mubr.f32.mxu0 0.0
        %4537 = vmatmul.mubr.f32.gmra.mrb[0].mxu0 %v3245
        %v4538 = vpop.f32.mrb[0].mxu0
        %v4539 = vadd.f32 0.0, %v4538
        %v4540 = vpop.f32.mrb[0].mxu0
        %4541 = vmatprep.mubr.f32.mxu0 0.0
        %4542 = vmatmul.mubr.f32.gmra.mrb[0].mxu0 %v3248
        %v4543 = vpop.f32.mrb[0].mxu0
        %v4544 = vadd.f32 0.0, %v4543
        %v4545 = vpop.f32.mrb[0].mxu0
        %4546 = vmatprep.mubr.f32.mxu0 0.0
        %4547 = vmatmul.mubr.f32.gmra.mrb[0].mxu0 %v3251
        %v4548 = vpop.f32.mrb[0].mxu0
        %v4549 = vadd.f32 0.0, %v4548
        %v4550 = vpop.f32.mrb[0].mxu0
        %4551 = vmatprep.mubr.f32.mxu0 0.0
        %4552 = vmatmul.mubr.f32.gmra.mrb[0].mxu0 %v3254
        %v4553 = vpop.f32.mrb[0].mxu0
        %v4554 = vadd.f32 0.0, %v4553
        %v4555 = vpop.f32.mrb[0].mxu0
        %4556 = vmatprep.mubr.f32.mxu0 0.0
        %4557 = vmatmul.mubr.f32.gmra.mrb[0].mxu0 %v3257
        %v4558 = vpop.f32.mrb[0].mxu0
        %v4559 = vadd.f32 0.0, %v4558
        %v4560 = vpop.f32.mrb[0].mxu0
        %4561 = vmatprep.mubr.f32.mxu0 0.0
        %4562 = vmatmul.mubr.f32.gmra.mrb[0].mxu0 %v3260
        %v4563 = vpop.f32.mrb[0].mxu0
        %v4564 = vadd.f32 0.0, %v4563
        %v4565 = vpop.f32.mrb[0].mxu0
        %4566 = vmatprep.mubr.f32.mxu0 0.0
        %4567 = vmatmul.mubr.f32.gmra.mrb[0].mxu0 %v3263
        %v4568 = vpop.f32.mrb[0].mxu0
        %v4569 = vadd.f32 0.0, %v4568
        %v4570 = vpop.f32.mrb[0].mxu0
        %4571 = vmatprep.mubr.f32.mxu0 0.0
        %4572 = vmatmul.mubr.f32.gmra.mrb[0].mxu0 %v3266
        %v4573 = vpop.f32.mrb[0].mxu0
        %v4574 = vadd.f32 0.0, %v4573
        %v4575 = vpop.f32.mrb[0].mxu0
        %4576 = vmatprep.mubr.f32.mxu0 0.0
        %4577 = vmatmul.mubr.f32.gmra.mrb[0].mxu0 %v3269
        %v4578 = vpop.f32.mrb[0].mxu0
        %v4579 = vadd.f32 0.0, %v4578
        %v4580 = vpop.f32.mrb[0].mxu0
        %4581 = vmatprep.mubr.f32.mxu0 0.0
        %4582 = vmatmul.mubr.f32.gmra.mrb[0].mxu0 %v3272
        %v4583 = vpop.f32.mrb[0].mxu0
        %v4584 = vadd.f32 0.0, %v4583
        %v4585 = vpop.f32.mrb[0].mxu0
        %4586 = vmatprep.mubr.f32.mxu0 0.0
        %4587 = vmatmul.mubr.f32.gmra.mrb[0].mxu0 %v3275
        %v4588 = vpop.f32.mrb[0].mxu0
        %v4589 = vadd.f32 0.0, %v4588
        %v4590 = vpop.f32.mrb[0].mxu0
        %4591 = vmatprep.mubr.f32.mxu0 0.0
        %4592 = vmatmul.mubr.f32.gmra.mrb[0].mxu0 %v3278
        %v4593 = vpop.f32.mrb[0].mxu0
        %v4594 = vadd.f32 0.0, %v4593
        %v4595 = vpop.f32.mrb[0].mxu0
        %4596 = vmatprep.mubr.f32.mxu0 0.0
        %4597 = vmatmul.mubr.f32.gmra.mrb[0].mxu0 %v3281
        %v4598 = vpop.f32.mrb[0].mxu0
        %v4599 = vadd.f32 0.0, %v4598
        %v4600 = vpop.f32.mrb[0].mxu0
        %4601 = vmatprep.mubr.f32.mxu0 0.0
        %4602 = vmatmul.mubr.f32.gmra.mrb[0].mxu0 %v3284
        %v4603 = vpop.f32.mrb[0].mxu0
        %v4604 = vadd.f32 0.0, %v4603
        %v4605 = vpop.f32.mrb[0].mxu0
        %4606 = vmatprep.mubr.f32.mxu0 0.0
        %4607 = vmatmul.mubr.f32.gmra.mrb[0].mxu0 %v3287
        %v4608 = vpop.f32.mrb[0].mxu0
        %v4609 = vadd.f32 0.0, %v4608
        %v4610 = vpop.f32.mrb[0].mxu0
        %4611 = vmatprep.mubr.f32.mxu0 0.0
        %4612 = vmatmul.mubr.f32.gmra.mrb[0].mxu0 %v3290
        %v4613 = vpop.f32.mrb[0].mxu0
        %v4614 = vadd.f32 0.0, %v4613
        %v4615 = vpop.f32.mrb[0].mxu0
        %4616 = vmatprep.mubr.f32.mxu0 0.0
        %4617 = vmatmul.mubr.f32.gmra.mrb[0].mxu0 %v3293
        %v4618 = vpop.f32.mrb[0].mxu0
        %v4619 = vadd.f32 0.0, %v4618
        %v4620 = vpop.f32.mrb[0].mxu0
        %4621 = vmatprep.mubr.f32.mxu0 0.0
        %4622 = vmatmul.mubr.f32.gmra.mrb[0].mxu0 %v3296
        %v4623 = vpop.f32.mrb[0].mxu0
        %v4624 = vadd.f32 0.0, %v4623
        %v4625 = vpop.f32.mrb[0].mxu0
        %4626 = vmatprep.mubr.f32.mxu0 0.0
        %4627 = vmatmul.mubr.f32.gmra.mrb[0].mxu0 %v3299
        %v4628 = vpop.f32.mrb[0].mxu0
        %v4629 = vadd.f32 0.0, %v4628
        %v4630 = vpop.f32.mrb[0].mxu0
        %4631 = vmatprep.mubr.f32.mxu0 0.0
        %4632 = vmatmul.mubr.f32.gmra.mrb[0].mxu0 %v3302
        %v4633 = vpop.f32.mrb[0].mxu0
        %v4634 = vadd.f32 0.0, %v4633
        %v4635 = vpop.f32.mrb[0].mxu0
        %4636 = vmatprep.mubr.f32.mxu0 0.0
        %4637 = vmatmul.mubr.f32.gmra.mrb[0].mxu0 %v3305
        %v4638 = vpop.f32.mrb[0].mxu0
        %v4639 = vadd.f32 0.0, %v4638
        %v4640 = vpop.f32.mrb[0].mxu0
        %4641 = vmatprep.mubr.f32.mxu0 0.0
        %4642 = vmatmul.mubr.f32.gmra.mrb[0].mxu0 %v3308
        %v4643 = vpop.f32.mrb[0].mxu0
        %v4644 = vadd.f32 0.0, %v4643
        %v4645 = vpop.f32.mrb[0].mxu0
        %4646 = vmatprep.mubr.f32.mxu0 0.0
        %4647 = vmatmul.mubr.f32.gmra.mrb[0].mxu0 %v3311
        %v4648 = vpop.f32.mrb[0].mxu0
        %v4649 = vadd.f32 0.0, %v4648
        %v4650 = vpop.f32.mrb[0].mxu0
        %4651 = vmatprep.mubr.f32.mxu0 0.0
        %4652 = vmatmul.mubr.f32.gmra.mrb[0].mxu0 %v3314
        %v4653 = vpop.f32.mrb[0].mxu0
        %v4654 = vadd.f32 0.0, %v4653
        %v4655 = vpop.f32.mrb[0].mxu0
        %4656 = vmatprep.mubr.f32.mxu0 0.0
        %4657 = vmatmul.mubr.f32.gmra.mrb[0].mxu0 %v3317
        %v4658 = vpop.f32.mrb[0].mxu0
        %v4659 = vadd.f32 0.0, %v4658
        %v4660 = vpop.f32.mrb[0].mxu0
        %4661 = vmatprep.mubr.f32.mxu0 0.0
        %4662 = vmatmul.mubr.f32.gmra.mrb[0].mxu0 %v3320
        %v4663 = vpop.f32.mrb[0].mxu0
        %v4664 = vadd.f32 0.0, %v4663
        %v4665 = vpop.f32.mrb[0].mxu0
        %4666 = vmatprep.mubr.f32.mxu0 0.0
        %4667 = vmatmul.mubr.f32.gmra.mrb[0].mxu0 %v3323
        %v4668 = vpop.f32.mrb[0].mxu0
        %v4669 = vadd.f32 0.0, %v4668
        %v4670 = vpop.f32.mrb[0].mxu0
        %4671 = vmatprep.mubr.f32.mxu0 0.0
        %4672 = vmatmul.mubr.f32.gmra.mrb[0].mxu0 %v3326
        %v4673 = vpop.f32.mrb[0].mxu0
        %v4674 = vadd.f32 0.0, %v4673
        %v4675 = vpop.f32.mrb[0].mxu0
        %4676 = vdwg.mxu0
        %v4681 = vcombine.high %v589, %v589
        %v4683 = vunpack.c.l.s4 1966171168
        %v4684 = vunpack.c.0.s8 %v4683
        %v4685 = vlaneseq
        %v4686 = vshrl.u32 %v4685, 7
        %v4687 = vsub.s32 %v4684, %v4686
        %v4688 = vrot.slane %v589, %v4687
        %v4690 = vunpack.c.l.s4 1966171168
        %v4691 = vunpack.c.0.s8 %v4690
        %v4692 = vlaneseq
        %v4693 = vshrl.u32 %v4692, 7
        %v4694 = vsub.s32 %v4691, %v4693
        %v4695 = vrot.slane %v4681, %v4694
        %v4696 = vcombine.high %v4688, %v4688
        %v4697 = vcombine.high %v4695, %v4695
        %v4699 = vunpack.c.l.s4 1966171168
        %v4700 = vunpack.c.0.s8 %v4699
        %v4701 = vlaneseq
        %v4702 = vshrl.u32 %v4701, 7
        %v4703 = vsub.s32 %v4700, %v4702
        %v4704 = vrot.slane %v4688, %v4703
        %v4706 = vunpack.c.l.s4 1966171168
        %v4707 = vunpack.c.0.s8 %v4706
        %v4708 = vlaneseq
        %v4709 = vshrl.u32 %v4708, 7
        %v4710 = vsub.s32 %v4707, %v4709
        %v4711 = vrot.slane %v4695, %v4710
        %v4713 = vunpack.c.l.s4 1966171168
        %v4714 = vunpack.c.0.s8 %v4713
        %v4715 = vlaneseq
        %v4716 = vshrl.u32 %v4715, 7
        %v4717 = vsub.s32 %v4714, %v4716
        %v4718 = vrot.slane %v4696, %v4717
        %v4720 = vunpack.c.l.s4 1966171168
        %v4721 = vunpack.c.0.s8 %v4720
        %v4722 = vlaneseq
        %v4723 = vshrl.u32 %v4722, 7
        %v4724 = vsub.s32 %v4721, %v4723
        %v4725 = vrot.slane %v4697, %v4724
        %v4726 = vcombine.high %v4704, %v4704
        %v4727 = vcombine.high %v4711, %v4711
        %v4728 = vcombine.high %v4718, %v4718
        %v4729 = vcombine.high %v4725, %v4725
        %v4730 = vcombine.high %v590, %v590
        %v4732 = vunpack.c.l.s4 1966171168
        %v4733 = vunpack.c.0.s8 %v4732
        %v4734 = vlaneseq
        %v4735 = vshrl.u32 %v4734, 7
        %v4736 = vsub.s32 %v4733, %v4735
        %v4737 = vrot.slane %v590, %v4736
        %v4739 = vunpack.c.l.s4 1966171168
        %v4740 = vunpack.c.0.s8 %v4739
        %v4741 = vlaneseq
        %v4742 = vshrl.u32 %v4741, 7
        %v4743 = vsub.s32 %v4740, %v4742
        %v4744 = vrot.slane %v4730, %v4743
        %v4745 = vcombine.high %v4737, %v4737
        %v4746 = vcombine.high %v4744, %v4744
        %v4748 = vunpack.c.l.s4 1966171168
        %v4749 = vunpack.c.0.s8 %v4748
        %v4750 = vlaneseq
        %v4751 = vshrl.u32 %v4750, 7
        %v4752 = vsub.s32 %v4749, %v4751
        %v4753 = vrot.slane %v4737, %v4752
        %v4755 = vunpack.c.l.s4 1966171168
        %v4756 = vunpack.c.0.s8 %v4755
        %v4757 = vlaneseq
        %v4758 = vshrl.u32 %v4757, 7
        %v4759 = vsub.s32 %v4756, %v4758
        %v4760 = vrot.slane %v4744, %v4759
        %v4762 = vunpack.c.l.s4 1966171168
        %v4763 = vunpack.c.0.s8 %v4762
        %v4764 = vlaneseq
        %v4765 = vshrl.u32 %v4764, 7
        %v4766 = vsub.s32 %v4763, %v4765
        %v4767 = vrot.slane %v4745, %v4766
        %v4769 = vunpack.c.l.s4 1966171168
        %v4770 = vunpack.c.0.s8 %v4769
        %v4771 = vlaneseq
        %v4772 = vshrl.u32 %v4771, 7
        %v4773 = vsub.s32 %v4770, %v4772
        %v4774 = vrot.slane %v4746, %v4773
        %v4775 = vcombine.high %v4753, %v4753
        %v4776 = vcombine.high %v4760, %v4760
        %v4777 = vcombine.high %v4767, %v4767
        %v4778 = vcombine.high %v4774, %v4774
        %v4779 = vcombine.high %v591, %v591
        %v4781 = vunpack.c.l.s4 1966171168
        %v4782 = vunpack.c.0.s8 %v4781
        %v4783 = vlaneseq
        %v4784 = vshrl.u32 %v4783, 7
        %v4785 = vsub.s32 %v4782, %v4784
        %v4786 = vrot.slane %v591, %v4785
        %v4788 = vunpack.c.l.s4 1966171168
        %v4789 = vunpack.c.0.s8 %v4788
        %v4790 = vlaneseq
        %v4791 = vshrl.u32 %v4790, 7
        %v4792 = vsub.s32 %v4789, %v4791
        %v4793 = vrot.slane %v4779, %v4792
        %v4794 = vcombine.high %v4786, %v4786
        %v4795 = vcombine.high %v4793, %v4793
        %v4797 = vunpack.c.l.s4 1966171168
        %v4798 = vunpack.c.0.s8 %v4797
        %v4799 = vlaneseq
        %v4800 = vshrl.u32 %v4799, 7
        %v4801 = vsub.s32 %v4798, %v4800
        %v4802 = vrot.slane %v4786, %v4801
        %v4804 = vunpack.c.l.s4 1966171168
        %v4805 = vunpack.c.0.s8 %v4804
        %v4806 = vlaneseq
        %v4807 = vshrl.u32 %v4806, 7
        %v4808 = vsub.s32 %v4805, %v4807
        %v4809 = vrot.slane %v4793, %v4808
        %v4811 = vunpack.c.l.s4 1966171168
        %v4812 = vunpack.c.0.s8 %v4811
        %v4813 = vlaneseq
        %v4814 = vshrl.u32 %v4813, 7
        %v4815 = vsub.s32 %v4812, %v4814
        %v4816 = vrot.slane %v4794, %v4815
        %v4818 = vunpack.c.l.s4 1966171168
        %v4819 = vunpack.c.0.s8 %v4818
        %v4820 = vlaneseq
        %v4821 = vshrl.u32 %v4820, 7
        %v4822 = vsub.s32 %v4819, %v4821
        %v4823 = vrot.slane %v4795, %v4822
        %v4824 = vcombine.high %v4802, %v4802
        %v4825 = vcombine.high %v4809, %v4809
        %v4826 = vcombine.high %v4816, %v4816
        %v4827 = vcombine.high %v4823, %v4823
        %v4828 = vcombine.high %v592, %v592
        %v4830 = vunpack.c.l.s4 1966171168
        %v4831 = vunpack.c.0.s8 %v4830
        %v4832 = vlaneseq
        %v4833 = vshrl.u32 %v4832, 7
        %v4834 = vsub.s32 %v4831, %v4833
        %v4835 = vrot.slane %v592, %v4834
        %v4837 = vunpack.c.l.s4 1966171168
        %v4838 = vunpack.c.0.s8 %v4837
        %v4839 = vlaneseq
        %v4840 = vshrl.u32 %v4839, 7
        %v4841 = vsub.s32 %v4838, %v4840
        %v4842 = vrot.slane %v4828, %v4841
        %v4843 = vcombine.high %v4835, %v4835
        %v4844 = vcombine.high %v4842, %v4842
        %v4846 = vunpack.c.l.s4 1966171168
        %v4847 = vunpack.c.0.s8 %v4846
        %v4848 = vlaneseq
        %v4849 = vshrl.u32 %v4848, 7
        %v4850 = vsub.s32 %v4847, %v4849
        %v4851 = vrot.slane %v4835, %v4850
        %v4853 = vunpack.c.l.s4 1966171168
        %v4854 = vunpack.c.0.s8 %v4853
        %v4855 = vlaneseq
        %v4856 = vshrl.u32 %v4855, 7
        %v4857 = vsub.s32 %v4854, %v4856
        %v4858 = vrot.slane %v4842, %v4857
        %v4860 = vunpack.c.l.s4 1966171168
        %v4861 = vunpack.c.0.s8 %v4860
        %v4862 = vlaneseq
        %v4863 = vshrl.u32 %v4862, 7
        %v4864 = vsub.s32 %v4861, %v4863
        %v4865 = vrot.slane %v4843, %v4864
        %v4867 = vunpack.c.l.s4 1966171168
        %v4868 = vunpack.c.0.s8 %v4867
        %v4869 = vlaneseq
        %v4870 = vshrl.u32 %v4869, 7
        %v4871 = vsub.s32 %v4868, %v4870
        %v4872 = vrot.slane %v4844, %v4871
        %v4873 = vcombine.high %v4851, %v4851
        %v4874 = vcombine.high %v4858, %v4858
        %v4875 = vcombine.high %v4865, %v4865
        %v4876 = vcombine.high %v4872, %v4872
        %v4877 = vlaneseq
        %v4878 = vshrl.u32 %v4877, 7
        %v4879 = vsub.s32 0, %v4878
        %v4880 = vrot.slane %v4704, %v4879
        %v4881 = vlaneseq
        %v4882 = vshrl.u32 %v4881, 7
        %v4883 = vsub.s32 0, %v4882
        %v4884 = vrot.slane %v4718, %v4883
        %v4885 = vlaneseq
        %v4886 = vshrl.u32 %v4885, 7
        %v4887 = vsub.s32 0, %v4886
        %v4888 = vrot.slane %v4726, %v4887
        %v4889 = vlaneseq
        %v4890 = vshrl.u32 %v4889, 7
        %v4891 = vsub.s32 0, %v4890
        %v4892 = vrot.slane %v4728, %v4891
        %v4893 = vlaneseq
        %v4894 = vshrl.u32 %v4893, 7
        %v4895 = vsub.s32 0, %v4894
        %v4896 = vrot.slane %v4711, %v4895
        %v4897 = vlaneseq
        %v4898 = vshrl.u32 %v4897, 7
        %v4899 = vsub.s32 0, %v4898
        %v4900 = vrot.slane %v4725, %v4899
        %v4901 = vlaneseq
        %v4902 = vshrl.u32 %v4901, 7
        %v4903 = vsub.s32 0, %v4902
        %v4904 = vrot.slane %v4727, %v4903
        %v4905 = vlaneseq
        %v4906 = vshrl.u32 %v4905, 7
        %v4907 = vsub.s32 0, %v4906
        %v4908 = vrot.slane %v4729, %v4907
        %v4909 = vlaneseq
        %v4910 = vshrl.u32 %v4909, 7
        %v4911 = vsub.s32 0, %v4910
        %v4912 = vrot.slane %v4753, %v4911
        %v4913 = vlaneseq
        %v4914 = vshrl.u32 %v4913, 7
        %v4915 = vsub.s32 0, %v4914
        %v4916 = vrot.slane %v4767, %v4915
        %v4917 = vlaneseq
        %v4918 = vshrl.u32 %v4917, 7
        %v4919 = vsub.s32 0, %v4918
        %v4920 = vrot.slane %v4775, %v4919
        %v4921 = vlaneseq
        %v4922 = vshrl.u32 %v4921, 7
        %v4923 = vsub.s32 0, %v4922
        %v4924 = vrot.slane %v4777, %v4923
        %v4925 = vlaneseq
        %v4926 = vshrl.u32 %v4925, 7
        %v4927 = vsub.s32 0, %v4926
        %v4928 = vrot.slane %v4760, %v4927
        %v4929 = vlaneseq
        %v4930 = vshrl.u32 %v4929, 7
        %v4931 = vsub.s32 0, %v4930
        %v4932 = vrot.slane %v4774, %v4931
        %v4933 = vlaneseq
        %v4934 = vshrl.u32 %v4933, 7
        %v4935 = vsub.s32 0, %v4934
        %v4936 = vrot.slane %v4776, %v4935
        %v4937 = vlaneseq
        %v4938 = vshrl.u32 %v4937, 7
        %v4939 = vsub.s32 0, %v4938
        %v4940 = vrot.slane %v4778, %v4939
        %v4941 = vlaneseq
        %v4942 = vshrl.u32 %v4941, 7
        %v4943 = vsub.s32 0, %v4942
        %v4944 = vrot.slane %v4802, %v4943
        %v4945 = vlaneseq
        %v4946 = vshrl.u32 %v4945, 7
        %v4947 = vsub.s32 0, %v4946
        %v4948 = vrot.slane %v4816, %v4947
        %v4949 = vlaneseq
        %v4950 = vshrl.u32 %v4949, 7
        %v4951 = vsub.s32 0, %v4950
        %v4952 = vrot.slane %v4824, %v4951
        %v4953 = vlaneseq
        %v4954 = vshrl.u32 %v4953, 7
        %v4955 = vsub.s32 0, %v4954
        %v4956 = vrot.slane %v4826, %v4955
        %v4957 = vlaneseq
        %v4958 = vshrl.u32 %v4957, 7
        %v4959 = vsub.s32 0, %v4958
        %v4960 = vrot.slane %v4809, %v4959
        %v4961 = vlaneseq
        %v4962 = vshrl.u32 %v4961, 7
        %v4963 = vsub.s32 0, %v4962
        %v4964 = vrot.slane %v4823, %v4963
        %v4965 = vlaneseq
        %v4966 = vshrl.u32 %v4965, 7
        %v4967 = vsub.s32 0, %v4966
        %v4968 = vrot.slane %v4825, %v4967
        %v4969 = vlaneseq
        %v4970 = vshrl.u32 %v4969, 7
        %v4971 = vsub.s32 0, %v4970
        %v4972 = vrot.slane %v4827, %v4971
        %v4973 = vlaneseq
        %v4974 = vshrl.u32 %v4973, 7
        %v4975 = vsub.s32 0, %v4974
        %v4976 = vrot.slane %v4851, %v4975
        %v4977 = vlaneseq
        %v4978 = vshrl.u32 %v4977, 7
        %v4979 = vsub.s32 0, %v4978
        %v4980 = vrot.slane %v4865, %v4979
        %v4981 = vlaneseq
        %v4982 = vshrl.u32 %v4981, 7
        %v4983 = vsub.s32 0, %v4982
        %v4984 = vrot.slane %v4873, %v4983
        %v4985 = vlaneseq
        %v4986 = vshrl.u32 %v4985, 7
        %v4987 = vsub.s32 0, %v4986
        %v4988 = vrot.slane %v4875, %v4987
        %v4989 = vlaneseq
        %v4990 = vshrl.u32 %v4989, 7
        %v4991 = vsub.s32 0, %v4990
        %v4992 = vrot.slane %v4858, %v4991
        %v4993 = vlaneseq
        %v4994 = vshrl.u32 %v4993, 7
        %v4995 = vsub.s32 0, %v4994
        %v4996 = vrot.slane %v4872, %v4995
        %v4997 = vlaneseq
        %v4998 = vshrl.u32 %v4997, 7
        %v4999 = vsub.s32 0, %v4998
        %v5000 = vrot.slane %v4874, %v4999
        %v5001 = vlaneseq
        %v5002 = vshrl.u32 %v5001, 7
        %v5003 = vsub.s32 0, %v5002
        %v5004 = vrot.slane %v4876, %v5003
        %v5037 = vadd.f32 %v3399, %v4880
        %v5038 = vadd.f32 %v3404, %v4880
        %v5039 = vadd.f32 %v3409, %v4880
        %v5040 = vadd.f32 %v3414, %v4880
        %v5041 = vadd.f32 %v3419, %v4880
        %v5042 = vadd.f32 %v3424, %v4880
        %v5043 = vadd.f32 %v3429, %v4880
        %v5044 = vadd.f32 %v3434, %v4880
        %v5045 = vadd.f32 %v3439, %v4884
        %v5046 = vadd.f32 %v3444, %v4884
        %v5047 = vadd.f32 %v3449, %v4884
        %v5048 = vadd.f32 %v3454, %v4884
        %v5049 = vadd.f32 %v3459, %v4884
        %v5050 = vadd.f32 %v3464, %v4884
        %v5051 = vadd.f32 %v3469, %v4884
        %v5052 = vadd.f32 %v3474, %v4884
        %v5053 = vadd.f32 %v3479, %v4888
        %v5054 = vadd.f32 %v3484, %v4888
        %v5055 = vadd.f32 %v3489, %v4888
        %v5056 = vadd.f32 %v3494, %v4888
        %v5057 = vadd.f32 %v3499, %v4888
        %v5058 = vadd.f32 %v3504, %v4888
        %v5059 = vadd.f32 %v3509, %v4888
        %v5060 = vadd.f32 %v3514, %v4888
        %v5061 = vadd.f32 %v3519, %v4892
        %v5062 = vadd.f32 %v3524, %v4892
        %v5063 = vadd.f32 %v3529, %v4892
        %v5064 = vadd.f32 %v3534, %v4892
        %v5065 = vadd.f32 %v3539, %v4892
        %v5066 = vadd.f32 %v3544, %v4892
        %v5067 = vadd.f32 %v3549, %v4892
        %v5068 = vadd.f32 %v3554, %v4892
        %v5069 = vadd.f32 %v3559, %v4896
        %v5070 = vadd.f32 %v3564, %v4896
        %v5071 = vadd.f32 %v3569, %v4896
        %v5072 = vadd.f32 %v3574, %v4896
        %v5073 = vadd.f32 %v3579, %v4896
        %v5074 = vadd.f32 %v3584, %v4896
        %v5075 = vadd.f32 %v3589, %v4896
        %v5076 = vadd.f32 %v3594, %v4896
        %v5077 = vadd.f32 %v3599, %v4900
        %v5078 = vadd.f32 %v3604, %v4900
        %v5079 = vadd.f32 %v3609, %v4900
        %v5080 = vadd.f32 %v3614, %v4900
        %v5081 = vadd.f32 %v3619, %v4900
        %v5082 = vadd.f32 %v3624, %v4900
        %v5083 = vadd.f32 %v3629, %v4900
        %v5084 = vadd.f32 %v3634, %v4900
        %v5085 = vadd.f32 %v3639, %v4904
        %v5086 = vadd.f32 %v3644, %v4904
        %v5087 = vadd.f32 %v3649, %v4904
        %v5088 = vadd.f32 %v3654, %v4904
        %v5089 = vadd.f32 %v3659, %v4904
        %v5090 = vadd.f32 %v3664, %v4904
        %v5091 = vadd.f32 %v3669, %v4904
        %v5092 = vadd.f32 %v3674, %v4904
        %v5093 = vadd.f32 %v3679, %v4908
        %v5094 = vadd.f32 %v3684, %v4908
        %v5095 = vadd.f32 %v3689, %v4908
        %v5096 = vadd.f32 %v3694, %v4908
        %v5097 = vadd.f32 %v3699, %v4908
        %v5098 = vadd.f32 %v3704, %v4908
        %v5099 = vadd.f32 %v3709, %v4908
        %v5100 = vadd.f32 %v3714, %v4908
        %v5101 = vadd.f32 %v3719, %v4912
        %v5102 = vadd.f32 %v3724, %v4912
        %v5103 = vadd.f32 %v3729, %v4912
        %v5104 = vadd.f32 %v3734, %v4912
        %v5105 = vadd.f32 %v3739, %v4912
        %v5106 = vadd.f32 %v3744, %v4912
        %v5107 = vadd.f32 %v3749, %v4912
        %v5108 = vadd.f32 %v3754, %v4912
        %v5109 = vadd.f32 %v3759, %v4916
        %v5110 = vadd.f32 %v3764, %v4916
        %v5111 = vadd.f32 %v3769, %v4916
        %v5112 = vadd.f32 %v3774, %v4916
        %v5113 = vadd.f32 %v3779, %v4916
        %v5114 = vadd.f32 %v3784, %v4916
        %v5115 = vadd.f32 %v3789, %v4916
        %v5116 = vadd.f32 %v3794, %v4916
        %v5117 = vadd.f32 %v3799, %v4920
        %v5118 = vadd.f32 %v3804, %v4920
        %v5119 = vadd.f32 %v3809, %v4920
        %v5120 = vadd.f32 %v3814, %v4920
        %v5121 = vadd.f32 %v3819, %v4920
        %v5122 = vadd.f32 %v3824, %v4920
        %v5123 = vadd.f32 %v3829, %v4920
        %v5124 = vadd.f32 %v3834, %v4920
        %v5125 = vadd.f32 %v3839, %v4924
        %v5126 = vadd.f32 %v3844, %v4924
        %v5127 = vadd.f32 %v3849, %v4924
        %v5128 = vadd.f32 %v3854, %v4924
        %v5129 = vadd.f32 %v3859, %v4924
        %v5130 = vadd.f32 %v3864, %v4924
        %v5131 = vadd.f32 %v3869, %v4924
        %v5132 = vadd.f32 %v3874, %v4924
        %v5133 = vadd.f32 %v3879, %v4928
        %v5134 = vadd.f32 %v3884, %v4928
        %v5135 = vadd.f32 %v3889, %v4928
        %v5136 = vadd.f32 %v3894, %v4928
        %v5137 = vadd.f32 %v3899, %v4928
        %v5138 = vadd.f32 %v3904, %v4928
        %v5139 = vadd.f32 %v3909, %v4928
        %v5140 = vadd.f32 %v3914, %v4928
        %v5141 = vadd.f32 %v3919, %v4932
        %v5142 = vadd.f32 %v3924, %v4932
        %v5143 = vadd.f32 %v3929, %v4932
        %v5144 = vadd.f32 %v3934, %v4932
        %v5145 = vadd.f32 %v3939, %v4932
        %v5146 = vadd.f32 %v3944, %v4932
        %v5147 = vadd.f32 %v3949, %v4932
        %v5148 = vadd.f32 %v3954, %v4932
        %v5149 = vadd.f32 %v3959, %v4936
        %v5150 = vadd.f32 %v3964, %v4936
        %v5151 = vadd.f32 %v3969, %v4936
        %v5152 = vadd.f32 %v3974, %v4936
        %v5153 = vadd.f32 %v3979, %v4936
        %v5154 = vadd.f32 %v3984, %v4936
        %v5155 = vadd.f32 %v3989, %v4936
        %v5156 = vadd.f32 %v3994, %v4936
        %v5157 = vadd.f32 %v3999, %v4940
        %v5158 = vadd.f32 %v4004, %v4940
        %v5159 = vadd.f32 %v4009, %v4940
        %v5160 = vadd.f32 %v4014, %v4940
        %v5161 = vadd.f32 %v4019, %v4940
        %v5162 = vadd.f32 %v4024, %v4940
        %v5163 = vadd.f32 %v4029, %v4940
        %v5164 = vadd.f32 %v4034, %v4940
        %v5165 = vadd.f32 %v4039, %v4944
        %v5166 = vadd.f32 %v4044, %v4944
        %v5167 = vadd.f32 %v4049, %v4944
        %v5168 = vadd.f32 %v4054, %v4944
        %v5169 = vadd.f32 %v4059, %v4944
        %v5170 = vadd.f32 %v4064, %v4944
        %v5171 = vadd.f32 %v4069, %v4944
        %v5172 = vadd.f32 %v4074, %v4944
        %v5173 = vadd.f32 %v4079, %v4948
        %v5174 = vadd.f32 %v4084, %v4948
        %v5175 = vadd.f32 %v4089, %v4948
        %v5176 = vadd.f32 %v4094, %v4948
        %v5177 = vadd.f32 %v4099, %v4948
        %v5178 = vadd.f32 %v4104, %v4948
        %v5179 = vadd.f32 %v4109, %v4948
        %v5180 = vadd.f32 %v4114, %v4948
        %v5181 = vadd.f32 %v4119, %v4952
        %v5182 = vadd.f32 %v4124, %v4952
        %v5183 = vadd.f32 %v4129, %v4952
        %v5184 = vadd.f32 %v4134, %v4952
        %v5185 = vadd.f32 %v4139, %v4952
        %v5186 = vadd.f32 %v4144, %v4952
        %v5187 = vadd.f32 %v4149, %v4952
        %v5188 = vadd.f32 %v4154, %v4952
        %v5189 = vadd.f32 %v4159, %v4956
        %v5190 = vadd.f32 %v4164, %v4956
        %v5191 = vadd.f32 %v4169, %v4956
        %v5192 = vadd.f32 %v4174, %v4956
        %v5193 = vadd.f32 %v4179, %v4956
        %v5194 = vadd.f32 %v4184, %v4956
        %v5195 = vadd.f32 %v4189, %v4956
        %v5196 = vadd.f32 %v4194, %v4956
        %v5197 = vadd.f32 %v4199, %v4960
        %v5198 = vadd.f32 %v4204, %v4960
        %v5199 = vadd.f32 %v4209, %v4960
        %v5200 = vadd.f32 %v4214, %v4960
        %v5201 = vadd.f32 %v4219, %v4960
        %v5202 = vadd.f32 %v4224, %v4960
        %v5203 = vadd.f32 %v4229, %v4960
        %v5204 = vadd.f32 %v4234, %v4960
        %v5205 = vadd.f32 %v4239, %v4964
        %v5206 = vadd.f32 %v4244, %v4964
        %v5207 = vadd.f32 %v4249, %v4964
        %v5208 = vadd.f32 %v4254, %v4964
        %v5209 = vadd.f32 %v4259, %v4964
        %v5210 = vadd.f32 %v4264, %v4964
        %v5211 = vadd.f32 %v4269, %v4964
        %v5212 = vadd.f32 %v4274, %v4964
        %v5213 = vadd.f32 %v4279, %v4968
        %v5214 = vadd.f32 %v4284, %v4968
        %v5215 = vadd.f32 %v4289, %v4968
        %v5216 = vadd.f32 %v4294, %v4968
        %v5217 = vadd.f32 %v4299, %v4968
        %v5218 = vadd.f32 %v4304, %v4968
        %v5219 = vadd.f32 %v4309, %v4968
        %v5220 = vadd.f32 %v4314, %v4968
        %v5221 = vadd.f32 %v4319, %v4972
        %v5222 = vadd.f32 %v4324, %v4972
        %v5223 = vadd.f32 %v4329, %v4972
        %v5224 = vadd.f32 %v4334, %v4972
        %v5225 = vadd.f32 %v4339, %v4972
        %v5226 = vadd.f32 %v4344, %v4972
        %v5227 = vadd.f32 %v4349, %v4972
        %v5228 = vadd.f32 %v4354, %v4972
        %v5229 = vadd.f32 %v4359, %v4976
        %v5230 = vadd.f32 %v4364, %v4976
        %v5231 = vadd.f32 %v4369, %v4976
        %v5232 = vadd.f32 %v4374, %v4976
        %v5233 = vadd.f32 %v4379, %v4976
        %v5234 = vadd.f32 %v4384, %v4976
        %v5235 = vadd.f32 %v4389, %v4976
        %v5236 = vadd.f32 %v4394, %v4976
        %v5237 = vadd.f32 %v4399, %v4980
        %v5238 = vadd.f32 %v4404, %v4980
        %v5239 = vadd.f32 %v4409, %v4980
        %v5240 = vadd.f32 %v4414, %v4980
        %v5241 = vadd.f32 %v4419, %v4980
        %v5242 = vadd.f32 %v4424, %v4980
        %v5243 = vadd.f32 %v4429, %v4980
        %v5244 = vadd.f32 %v4434, %v4980
        %v5245 = vadd.f32 %v4439, %v4984
        %v5246 = vadd.f32 %v4444, %v4984
        %v5247 = vadd.f32 %v4449, %v4984
        %v5248 = vadd.f32 %v4454, %v4984
        %v5249 = vadd.f32 %v4459, %v4984
        %v5250 = vadd.f32 %v4464, %v4984
        %v5251 = vadd.f32 %v4469, %v4984
        %v5252 = vadd.f32 %v4474, %v4984
        %v5253 = vadd.f32 %v4479, %v4988
        %v5254 = vadd.f32 %v4484, %v4988
        %v5255 = vadd.f32 %v4489, %v4988
        %v5256 = vadd.f32 %v4494, %v4988
        %v5257 = vadd.f32 %v4499, %v4988
        %v5258 = vadd.f32 %v4504, %v4988
        %v5259 = vadd.f32 %v4509, %v4988
        %v5260 = vadd.f32 %v4514, %v4988
        %v5261 = vadd.f32 %v4519, %v4992
        %v5262 = vadd.f32 %v4524, %v4992
        %v5263 = vadd.f32 %v4529, %v4992
        %v5264 = vadd.f32 %v4534, %v4992
        %v5265 = vadd.f32 %v4539, %v4992
        %v5266 = vadd.f32 %v4544, %v4992
        %v5267 = vadd.f32 %v4549, %v4992
        %v5268 = vadd.f32 %v4554, %v4992
        %v5269 = vadd.f32 %v4559, %v4996
        %v5270 = vadd.f32 %v4564, %v4996
        %v5271 = vadd.f32 %v4569, %v4996
        %v5272 = vadd.f32 %v4574, %v4996
        %v5273 = vadd.f32 %v4579, %v4996
        %v5274 = vadd.f32 %v4584, %v4996
        %v5275 = vadd.f32 %v4589, %v4996
        %v5276 = vadd.f32 %v4594, %v4996
        %v5277 = vadd.f32 %v4599, %v5000
        %v5278 = vadd.f32 %v4604, %v5000
        %v5279 = vadd.f32 %v4609, %v5000
        %v5280 = vadd.f32 %v4614, %v5000
        %v5281 = vadd.f32 %v4619, %v5000
        %v5282 = vadd.f32 %v4624, %v5000
        %v5283 = vadd.f32 %v4629, %v5000
        %v5284 = vadd.f32 %v4634, %v5000
        %v5285 = vadd.f32 %v4639, %v5004
        %v5286 = vadd.f32 %v4644, %v5004
        %v5287 = vadd.f32 %v4649, %v5004
        %v5288 = vadd.f32 %v4654, %v5004
        %v5289 = vadd.f32 %v4659, %v5004
        %v5290 = vadd.f32 %v4664, %v5004
        %v5291 = vadd.f32 %v4669, %v5004
        %v5292 = vadd.f32 %v4674, %v5004
        %v5293 = vadd.f32 %v5037, %v599
        %v5294 = vadd.f32 %v5038, %v600
        %v5295 = vadd.f32 %v5039, %v601
        %v5296 = vadd.f32 %v5040, %v602
        %v5297 = vadd.f32 %v5041, %v603
        %v5298 = vadd.f32 %v5042, %v604
        %v5299 = vadd.f32 %v5043, %v605
        %v5300 = vadd.f32 %v5044, %v606
        %v5301 = vadd.f32 %v5045, %v599
        %v5302 = vadd.f32 %v5046, %v600
        %v5303 = vadd.f32 %v5047, %v601
        %v5304 = vadd.f32 %v5048, %v602
        %v5305 = vadd.f32 %v5049, %v603
        %v5306 = vadd.f32 %v5050, %v604
        %v5307 = vadd.f32 %v5051, %v605
        %v5308 = vadd.f32 %v5052, %v606
        %v5309 = vadd.f32 %v5053, %v599
        %v5310 = vadd.f32 %v5054, %v600
        %v5311 = vadd.f32 %v5055, %v601
        %v5312 = vadd.f32 %v5056, %v602
        %v5313 = vadd.f32 %v5057, %v603
        %v5314 = vadd.f32 %v5058, %v604
        %v5315 = vadd.f32 %v5059, %v605
        %v5316 = vadd.f32 %v5060, %v606
        %v5317 = vadd.f32 %v5061, %v599
        %v5318 = vadd.f32 %v5062, %v600
        %v5319 = vadd.f32 %v5063, %v601
        %v5320 = vadd.f32 %v5064, %v602
        %v5321 = vadd.f32 %v5065, %v603
        %v5322 = vadd.f32 %v5066, %v604
        %v5323 = vadd.f32 %v5067, %v605
        %v5324 = vadd.f32 %v5068, %v606
        %v5325 = vadd.f32 %v5069, %v599
        %v5326 = vadd.f32 %v5070, %v600
        %v5327 = vadd.f32 %v5071, %v601
        %v5328 = vadd.f32 %v5072, %v602
        %v5329 = vadd.f32 %v5073, %v603
        %v5330 = vadd.f32 %v5074, %v604
        %v5331 = vadd.f32 %v5075, %v605
        %v5332 = vadd.f32 %v5076, %v606
        %v5333 = vadd.f32 %v5077, %v599
        %v5334 = vadd.f32 %v5078, %v600
        %v5335 = vadd.f32 %v5079, %v601
        %v5336 = vadd.f32 %v5080, %v602
        %v5337 = vadd.f32 %v5081, %v603
        %v5338 = vadd.f32 %v5082, %v604
        %v5339 = vadd.f32 %v5083, %v605
        %v5340 = vadd.f32 %v5084, %v606
        %v5341 = vadd.f32 %v5085, %v599
        %v5342 = vadd.f32 %v5086, %v600
        %v5343 = vadd.f32 %v5087, %v601
        %v5344 = vadd.f32 %v5088, %v602
        %v5345 = vadd.f32 %v5089, %v603
        %v5346 = vadd.f32 %v5090, %v604
        %v5347 = vadd.f32 %v5091, %v605
        %v5348 = vadd.f32 %v5092, %v606
        %v5349 = vadd.f32 %v5093, %v599
        %v5350 = vadd.f32 %v5094, %v600
        %v5351 = vadd.f32 %v5095, %v601
        %v5352 = vadd.f32 %v5096, %v602
        %v5353 = vadd.f32 %v5097, %v603
        %v5354 = vadd.f32 %v5098, %v604
        %v5355 = vadd.f32 %v5099, %v605
        %v5356 = vadd.f32 %v5100, %v606
        %v5357 = vadd.f32 %v5101, %v599
        %v5358 = vadd.f32 %v5102, %v600
        %v5359 = vadd.f32 %v5103, %v601
        %v5360 = vadd.f32 %v5104, %v602
        %v5361 = vadd.f32 %v5105, %v603
        %v5362 = vadd.f32 %v5106, %v604
        %v5363 = vadd.f32 %v5107, %v605
        %v5364 = vadd.f32 %v5108, %v606
        %v5365 = vadd.f32 %v5109, %v599
        %v5366 = vadd.f32 %v5110, %v600
        %v5367 = vadd.f32 %v5111, %v601
        %v5368 = vadd.f32 %v5112, %v602
        %v5369 = vadd.f32 %v5113, %v603
        %v5370 = vadd.f32 %v5114, %v604
        %v5371 = vadd.f32 %v5115, %v605
        %v5372 = vadd.f32 %v5116, %v606
        %v5373 = vadd.f32 %v5117, %v599
        %v5374 = vadd.f32 %v5118, %v600
        %v5375 = vadd.f32 %v5119, %v601
        %v5376 = vadd.f32 %v5120, %v602
        %v5377 = vadd.f32 %v5121, %v603
        %v5378 = vadd.f32 %v5122, %v604
        %v5379 = vadd.f32 %v5123, %v605
        %v5380 = vadd.f32 %v5124, %v606
        %v5381 = vadd.f32 %v5125, %v599
        %v5382 = vadd.f32 %v5126, %v600
        %v5383 = vadd.f32 %v5127, %v601
        %v5384 = vadd.f32 %v5128, %v602
        %v5385 = vadd.f32 %v5129, %v603
        %v5386 = vadd.f32 %v5130, %v604
        %v5387 = vadd.f32 %v5131, %v605
        %v5388 = vadd.f32 %v5132, %v606
        %v5389 = vadd.f32 %v5133, %v599
        %v5390 = vadd.f32 %v5134, %v600
        %v5391 = vadd.f32 %v5135, %v601
        %v5392 = vadd.f32 %v5136, %v602
        %v5393 = vadd.f32 %v5137, %v603
        %v5394 = vadd.f32 %v5138, %v604
        %v5395 = vadd.f32 %v5139, %v605
        %v5396 = vadd.f32 %v5140, %v606
        %v5397 = vadd.f32 %v5141, %v599
        %v5398 = vadd.f32 %v5142, %v600
        %v5399 = vadd.f32 %v5143, %v601
        %v5400 = vadd.f32 %v5144, %v602
        %v5401 = vadd.f32 %v5145, %v603
        %v5402 = vadd.f32 %v5146, %v604
        %v5403 = vadd.f32 %v5147, %v605
        %v5404 = vadd.f32 %v5148, %v606
        %v5405 = vadd.f32 %v5149, %v599
        %v5406 = vadd.f32 %v5150, %v600
        %v5407 = vadd.f32 %v5151, %v601
        %v5408 = vadd.f32 %v5152, %v602
        %v5409 = vadd.f32 %v5153, %v603
        %v5410 = vadd.f32 %v5154, %v604
        %v5411 = vadd.f32 %v5155, %v605
        %v5412 = vadd.f32 %v5156, %v606
        %v5413 = vadd.f32 %v5157, %v599
        %v5414 = vadd.f32 %v5158, %v600
        %v5415 = vadd.f32 %v5159, %v601
        %v5416 = vadd.f32 %v5160, %v602
        %v5417 = vadd.f32 %v5161, %v603
        %v5418 = vadd.f32 %v5162, %v604
        %v5419 = vadd.f32 %v5163, %v605
        %v5420 = vadd.f32 %v5164, %v606
        %v5421 = vadd.f32 %v5165, %v599
        %v5422 = vadd.f32 %v5166, %v600
        %v5423 = vadd.f32 %v5167, %v601
        %v5424 = vadd.f32 %v5168, %v602
        %v5425 = vadd.f32 %v5169, %v603
        %v5426 = vadd.f32 %v5170, %v604
        %v5427 = vadd.f32 %v5171, %v605
        %v5428 = vadd.f32 %v5172, %v606
        %v5429 = vadd.f32 %v5173, %v599
        %v5430 = vadd.f32 %v5174, %v600
        %v5431 = vadd.f32 %v5175, %v601
        %v5432 = vadd.f32 %v5176, %v602
        %v5433 = vadd.f32 %v5177, %v603
        %v5434 = vadd.f32 %v5178, %v604
        %v5435 = vadd.f32 %v5179, %v605
        %v5436 = vadd.f32 %v5180, %v606
        %v5437 = vadd.f32 %v5181, %v599
        %v5438 = vadd.f32 %v5182, %v600
        %v5439 = vadd.f32 %v5183, %v601
        %v5440 = vadd.f32 %v5184, %v602
        %v5441 = vadd.f32 %v5185, %v603
        %v5442 = vadd.f32 %v5186, %v604
        %v5443 = vadd.f32 %v5187, %v605
        %v5444 = vadd.f32 %v5188, %v606
        %v5445 = vadd.f32 %v5189, %v599
        %v5446 = vadd.f32 %v5190, %v600
        %v5447 = vadd.f32 %v5191, %v601
        %v5448 = vadd.f32 %v5192, %v602
        %v5449 = vadd.f32 %v5193, %v603
        %v5450 = vadd.f32 %v5194, %v604
        %v5451 = vadd.f32 %v5195, %v605
        %v5452 = vadd.f32 %v5196, %v606
        %v5453 = vadd.f32 %v5197, %v599
        %v5454 = vadd.f32 %v5198, %v600
        %v5455 = vadd.f32 %v5199, %v601
        %v5456 = vadd.f32 %v5200, %v602
        %v5457 = vadd.f32 %v5201, %v603
        %v5458 = vadd.f32 %v5202, %v604
        %v5459 = vadd.f32 %v5203, %v605
        %v5460 = vadd.f32 %v5204, %v606
        %v5461 = vadd.f32 %v5205, %v599
        %v5462 = vadd.f32 %v5206, %v600
        %v5463 = vadd.f32 %v5207, %v601
        %v5464 = vadd.f32 %v5208, %v602
        %v5465 = vadd.f32 %v5209, %v603
        %v5466 = vadd.f32 %v5210, %v604
        %v5467 = vadd.f32 %v5211, %v605
        %v5468 = vadd.f32 %v5212, %v606
        %v5469 = vadd.f32 %v5213, %v599
        %v5470 = vadd.f32 %v5214, %v600
        %v5471 = vadd.f32 %v5215, %v601
        %v5472 = vadd.f32 %v5216, %v602
        %v5473 = vadd.f32 %v5217, %v603
        %v5474 = vadd.f32 %v5218, %v604
        %v5475 = vadd.f32 %v5219, %v605
        %v5476 = vadd.f32 %v5220, %v606
        %v5477 = vadd.f32 %v5221, %v599
        %v5478 = vadd.f32 %v5222, %v600
        %v5479 = vadd.f32 %v5223, %v601
        %v5480 = vadd.f32 %v5224, %v602
        %v5481 = vadd.f32 %v5225, %v603
        %v5482 = vadd.f32 %v5226, %v604
        %v5483 = vadd.f32 %v5227, %v605
        %v5484 = vadd.f32 %v5228, %v606
        %v5485 = vadd.f32 %v5229, %v599
        %v5486 = vadd.f32 %v5230, %v600
        %v5487 = vadd.f32 %v5231, %v601
        %v5488 = vadd.f32 %v5232, %v602
        %v5489 = vadd.f32 %v5233, %v603
        %v5490 = vadd.f32 %v5234, %v604
        %v5491 = vadd.f32 %v5235, %v605
        %v5492 = vadd.f32 %v5236, %v606
        %v5493 = vadd.f32 %v5237, %v599
        %v5494 = vadd.f32 %v5238, %v600
        %v5495 = vadd.f32 %v5239, %v601
        %v5496 = vadd.f32 %v5240, %v602
        %v5497 = vadd.f32 %v5241, %v603
        %v5498 = vadd.f32 %v5242, %v604
        %v5499 = vadd.f32 %v5243, %v605
        %v5500 = vadd.f32 %v5244, %v606
        %v5501 = vadd.f32 %v5245, %v599
        %v5502 = vadd.f32 %v5246, %v600
        %v5503 = vadd.f32 %v5247, %v601
        %v5504 = vadd.f32 %v5248, %v602
        %v5505 = vadd.f32 %v5249, %v603
        %v5506 = vadd.f32 %v5250, %v604
        %v5507 = vadd.f32 %v5251, %v605
        %v5508 = vadd.f32 %v5252, %v606
        %v5509 = vadd.f32 %v5253, %v599
        %v5510 = vadd.f32 %v5254, %v600
        %v5511 = vadd.f32 %v5255, %v601
        %v5512 = vadd.f32 %v5256, %v602
        %v5513 = vadd.f32 %v5257, %v603
        %v5514 = vadd.f32 %v5258, %v604
        %v5515 = vadd.f32 %v5259, %v605
        %v5516 = vadd.f32 %v5260, %v606
        %v5517 = vadd.f32 %v5261, %v599
        %v5518 = vadd.f32 %v5262, %v600
        %v5519 = vadd.f32 %v5263, %v601
        %v5520 = vadd.f32 %v5264, %v602
        %v5521 = vadd.f32 %v5265, %v603
        %v5522 = vadd.f32 %v5266, %v604
        %v5523 = vadd.f32 %v5267, %v605
        %v5524 = vadd.f32 %v5268, %v606
        %v5525 = vadd.f32 %v5269, %v599
        %v5526 = vadd.f32 %v5270, %v600
        %v5527 = vadd.f32 %v5271, %v601
        %v5528 = vadd.f32 %v5272, %v602
        %v5529 = vadd.f32 %v5273, %v603
        %v5530 = vadd.f32 %v5274, %v604
        %v5531 = vadd.f32 %v5275, %v605
        %v5532 = vadd.f32 %v5276, %v606
        %v5533 = vadd.f32 %v5277, %v599
        %v5534 = vadd.f32 %v5278, %v600
        %v5535 = vadd.f32 %v5279, %v601
        %v5536 = vadd.f32 %v5280, %v602
        %v5537 = vadd.f32 %v5281, %v603
        %v5538 = vadd.f32 %v5282, %v604
        %v5539 = vadd.f32 %v5283, %v605
        %v5540 = vadd.f32 %v5284, %v606
        %v5541 = vadd.f32 %v5285, %v599
        %v5542 = vadd.f32 %v5286, %v600
        %v5543 = vadd.f32 %v5287, %v601
        %v5544 = vadd.f32 %v5288, %v602
        %v5545 = vadd.f32 %v5289, %v603
        %v5546 = vadd.f32 %v5290, %v604
        %v5547 = vadd.f32 %v5291, %v605
        %v5548 = vadd.f32 %v5292, %v606
        %5549 = vst [vmem:[%s372] sm:$0xff] %v5293
        %5550 = vst [vmem:[%s372 + $0x8] sm:$0xff] %v5294
        %5551 = vst [vmem:[%s372 + $0x10] sm:$0xff] %v5295
        %5552 = vst [vmem:[%s372 + $0x18] sm:$0xff] %v5296
        %5553 = vst [vmem:[%s372 + $0x20] sm:$0xff] %v5297
        %5554 = vst [vmem:[%s372 + $0x28] sm:$0xff] %v5298
        %5555 = vst [vmem:[%s372 + $0x30] sm:$0xff] %v5299
        %5556 = vst [vmem:[%s372 + $0x38] sm:$0xff] %v5300
        %5557 = vst [vmem:[%s372 + $0x40] sm:$0xff] %v5301
        %5558 = vst [vmem:[%s372 + $0x48] sm:$0xff] %v5302
        %5559 = vst [vmem:[%s372 + $0x50] sm:$0xff] %v5303
        %5560 = vst [vmem:[%s372 + $0x58] sm:$0xff] %v5304
        %5561 = vst [vmem:[%s372 + $0x60] sm:$0xff] %v5305
        %5562 = vst [vmem:[%s372 + $0x68] sm:$0xff] %v5306
        %5563 = vst [vmem:[%s372 + $0x70] sm:$0xff] %v5307
        %5564 = vst [vmem:[%s372 + $0x78] sm:$0xff] %v5308
        %5565 = vst [vmem:[%s372 + $0x80] sm:$0xff] %v5309
        %5566 = vst [vmem:[%s372 + $0x88] sm:$0xff] %v5310
        %5567 = vst [vmem:[%s372 + $0x90] sm:$0xff] %v5311
        %5568 = vst [vmem:[%s372 + $0x98] sm:$0xff] %v5312
        %5569 = vst [vmem:[%s372 + $0xa0] sm:$0xff] %v5313
        %5570 = vst [vmem:[%s372 + $0xa8] sm:$0xff] %v5314
        %5571 = vst [vmem:[%s372 + $0xb0] sm:$0xff] %v5315
        %5572 = vst [vmem:[%s372 + $0xb8] sm:$0xff] %v5316
        %5573 = vst [vmem:[%s372 + $0xc0] sm:$0xff] %v5317
        %5574 = vst [vmem:[%s372 + $0xc8] sm:$0xff] %v5318
        %5575 = vst [vmem:[%s372 + $0xd0] sm:$0xff] %v5319
        %5576 = vst [vmem:[%s372 + $0xd8] sm:$0xff] %v5320
        %5577 = vst [vmem:[%s372 + $0xe0] sm:$0xff] %v5321
        %5578 = vst [vmem:[%s372 + $0xe8] sm:$0xff] %v5322
        %5579 = vst [vmem:[%s372 + $0xf0] sm:$0xff] %v5323
        %5580 = vst [vmem:[%s372 + $0xf8] sm:$0xff] %v5324
        %5581 = vst [vmem:[%s372 + $0x100] sm:$0xff] %v5325
        %5582 = vst [vmem:[%s372 + $0x108] sm:$0xff] %v5326
        %5583 = vst [vmem:[%s372 + $0x110] sm:$0xff] %v5327
        %5584 = vst [vmem:[%s372 + $0x118] sm:$0xff] %v5328
        %5585 = vst [vmem:[%s372 + $0x120] sm:$0xff] %v5329
        %5586 = vst [vmem:[%s372 + $0x128] sm:$0xff] %v5330
        %5587 = vst [vmem:[%s372 + $0x130] sm:$0xff] %v5331
        %5588 = vst [vmem:[%s372 + $0x138] sm:$0xff] %v5332
        %5589 = vst [vmem:[%s372 + $0x140] sm:$0xff] %v5333
        %5590 = vst [vmem:[%s372 + $0x148] sm:$0xff] %v5334
        %5591 = vst [vmem:[%s372 + $0x150] sm:$0xff] %v5335
        %5592 = vst [vmem:[%s372 + $0x158] sm:$0xff] %v5336
        %5593 = vst [vmem:[%s372 + $0x160] sm:$0xff] %v5337
        %5594 = vst [vmem:[%s372 + $0x168] sm:$0xff] %v5338
        %5595 = vst [vmem:[%s372 + $0x170] sm:$0xff] %v5339
        %5596 = vst [vmem:[%s372 + $0x178] sm:$0xff] %v5340
        %5597 = vst [vmem:[%s372 + $0x180] sm:$0xff] %v5341
        %5598 = vst [vmem:[%s372 + $0x188] sm:$0xff] %v5342
        %5599 = vst [vmem:[%s372 + $0x190] sm:$0xff] %v5343
        %5600 = vst [vmem:[%s372 + $0x198] sm:$0xff] %v5344
        %5601 = vst [vmem:[%s372 + $0x1a0] sm:$0xff] %v5345
        %5602 = vst [vmem:[%s372 + $0x1a8] sm:$0xff] %v5346
        %5603 = vst [vmem:[%s372 + $0x1b0] sm:$0xff] %v5347
        %5604 = vst [vmem:[%s372 + $0x1b8] sm:$0xff] %v5348
        %5605 = vst [vmem:[%s372 + $0x1c0] sm:$0xff] %v5349
        %5606 = vst [vmem:[%s372 + $0x1c8] sm:$0xff] %v5350
        %5607 = vst [vmem:[%s372 + $0x1d0] sm:$0xff] %v5351
        %5608 = vst [vmem:[%s372 + $0x1d8] sm:$0xff] %v5352
        %5609 = vst [vmem:[%s372 + $0x1e0] sm:$0xff] %v5353
        %5610 = vst [vmem:[%s372 + $0x1e8] sm:$0xff] %v5354
        %5611 = vst [vmem:[%s372 + $0x1f0] sm:$0xff] %v5355
        %5612 = vst [vmem:[%s372 + $0x1f8] sm:$0xff] %v5356
        %5613 = vst [vmem:[%s372 + $0x200] sm:$0xff] %v5357
        %5614 = vst [vmem:[%s372 + $0x208] sm:$0xff] %v5358
        %5615 = vst [vmem:[%s372 + $0x210] sm:$0xff] %v5359
        %5616 = vst [vmem:[%s372 + $0x218] sm:$0xff] %v5360
        %5617 = vst [vmem:[%s372 + $0x220] sm:$0xff] %v5361
        %5618 = vst [vmem:[%s372 + $0x228] sm:$0xff] %v5362
        %5619 = vst [vmem:[%s372 + $0x230] sm:$0xff] %v5363
        %5620 = vst [vmem:[%s372 + $0x238] sm:$0xff] %v5364
        %5621 = vst [vmem:[%s372 + $0x240] sm:$0xff] %v5365
        %5622 = vst [vmem:[%s372 + $0x248] sm:$0xff] %v5366
        %5623 = vst [vmem:[%s372 + $0x250] sm:$0xff] %v5367
        %5624 = vst [vmem:[%s372 + $0x258] sm:$0xff] %v5368
        %5625 = vst [vmem:[%s372 + $0x260] sm:$0xff] %v5369
        %5626 = vst [vmem:[%s372 + $0x268] sm:$0xff] %v5370
        %5627 = vst [vmem:[%s372 + $0x270] sm:$0xff] %v5371
        %5628 = vst [vmem:[%s372 + $0x278] sm:$0xff] %v5372
        %5629 = vst [vmem:[%s372 + $0x280] sm:$0xff] %v5373
        %5630 = vst [vmem:[%s372 + $0x288] sm:$0xff] %v5374
        %5631 = vst [vmem:[%s372 + $0x290] sm:$0xff] %v5375
        %5632 = vst [vmem:[%s372 + $0x298] sm:$0xff] %v5376
        %5633 = vst [vmem:[%s372 + $0x2a0] sm:$0xff] %v5377
        %5634 = vst [vmem:[%s372 + $0x2a8] sm:$0xff] %v5378
        %5635 = vst [vmem:[%s372 + $0x2b0] sm:$0xff] %v5379
        %5636 = vst [vmem:[%s372 + $0x2b8] sm:$0xff] %v5380
        %5637 = vst [vmem:[%s372 + $0x2c0] sm:$0xff] %v5381
        %5638 = vst [vmem:[%s372 + $0x2c8] sm:$0xff] %v5382
        %5639 = vst [vmem:[%s372 + $0x2d0] sm:$0xff] %v5383
        %5640 = vst [vmem:[%s372 + $0x2d8] sm:$0xff] %v5384
        %5641 = vst [vmem:[%s372 + $0x2e0] sm:$0xff] %v5385
        %5642 = vst [vmem:[%s372 + $0x2e8] sm:$0xff] %v5386
        %5643 = vst [vmem:[%s372 + $0x2f0] sm:$0xff] %v5387
        %5644 = vst [vmem:[%s372 + $0x2f8] sm:$0xff] %v5388
        %5645 = vst [vmem:[%s372 + $0x300] sm:$0xff] %v5389
        %5646 = vst [vmem:[%s372 + $0x308] sm:$0xff] %v5390
        %5647 = vst [vmem:[%s372 + $0x310] sm:$0xff] %v5391
        %5648 = vst [vmem:[%s372 + $0x318] sm:$0xff] %v5392
        %5649 = vst [vmem:[%s372 + $0x320] sm:$0xff] %v5393
        %5650 = vst [vmem:[%s372 + $0x328] sm:$0xff] %v5394
        %5651 = vst [vmem:[%s372 + $0x330] sm:$0xff] %v5395
        %5652 = vst [vmem:[%s372 + $0x338] sm:$0xff] %v5396
        %5653 = vst [vmem:[%s372 + $0x340] sm:$0xff] %v5397
        %5654 = vst [vmem:[%s372 + $0x348] sm:$0xff] %v5398
        %5655 = vst [vmem:[%s372 + $0x350] sm:$0xff] %v5399
        %5656 = vst [vmem:[%s372 + $0x358] sm:$0xff] %v5400
        %5657 = vst [vmem:[%s372 + $0x360] sm:$0xff] %v5401
        %5658 = vst [vmem:[%s372 + $0x368] sm:$0xff] %v5402
        %5659 = vst [vmem:[%s372 + $0x370] sm:$0xff] %v5403
        %5660 = vst [vmem:[%s372 + $0x378] sm:$0xff] %v5404
        %5661 = vst [vmem:[%s372 + $0x380] sm:$0xff] %v5405
        %5662 = vst [vmem:[%s372 + $0x388] sm:$0xff] %v5406
        %5663 = vst [vmem:[%s372 + $0x390] sm:$0xff] %v5407
        %5664 = vst [vmem:[%s372 + $0x398] sm:$0xff] %v5408
        %5665 = vst [vmem:[%s372 + $0x3a0] sm:$0xff] %v5409
        %5666 = vst [vmem:[%s372 + $0x3a8] sm:$0xff] %v5410
        %5667 = vst [vmem:[%s372 + $0x3b0] sm:$0xff] %v5411
        %5668 = vst [vmem:[%s372 + $0x3b8] sm:$0xff] %v5412
        %5669 = vst [vmem:[%s372 + $0x3c0] sm:$0xff] %v5413
        %5670 = vst [vmem:[%s372 + $0x3c8] sm:$0xff] %v5414
        %5671 = vst [vmem:[%s372 + $0x3d0] sm:$0xff] %v5415
        %5672 = vst [vmem:[%s372 + $0x3d8] sm:$0xff] %v5416
        %5673 = vst [vmem:[%s372 + $0x3e0] sm:$0xff] %v5417
        %5674 = vst [vmem:[%s372 + $0x3e8] sm:$0xff] %v5418
        %5675 = vst [vmem:[%s372 + $0x3f0] sm:$0xff] %v5419
        %5676 = vst [vmem:[%s372 + $0x3f8] sm:$0xff] %v5420
        %5677 = vst [vmem:[%s372 + $0x400] sm:$0xff] %v5421
        %5678 = vst [vmem:[%s372 + $0x408] sm:$0xff] %v5422
        %5679 = vst [vmem:[%s372 + $0x410] sm:$0xff] %v5423
        %5680 = vst [vmem:[%s372 + $0x418] sm:$0xff] %v5424
        %5681 = vst [vmem:[%s372 + $0x420] sm:$0xff] %v5425
        %5682 = vst [vmem:[%s372 + $0x428] sm:$0xff] %v5426
        %5683 = vst [vmem:[%s372 + $0x430] sm:$0xff] %v5427
        %5684 = vst [vmem:[%s372 + $0x438] sm:$0xff] %v5428
        %5685 = vst [vmem:[%s372 + $0x440] sm:$0xff] %v5429
        %5686 = vst [vmem:[%s372 + $0x448] sm:$0xff] %v5430
        %5687 = vst [vmem:[%s372 + $0x450] sm:$0xff] %v5431
        %5688 = vst [vmem:[%s372 + $0x458] sm:$0xff] %v5432
        %5689 = vst [vmem:[%s372 + $0x460] sm:$0xff] %v5433
        %5690 = vst [vmem:[%s372 + $0x468] sm:$0xff] %v5434
        %5691 = vst [vmem:[%s372 + $0x470] sm:$0xff] %v5435
        %5692 = vst [vmem:[%s372 + $0x478] sm:$0xff] %v5436
        %5693 = vst [vmem:[%s372 + $0x480] sm:$0xff] %v5437
        %5694 = vst [vmem:[%s372 + $0x488] sm:$0xff] %v5438
        %5695 = vst [vmem:[%s372 + $0x490] sm:$0xff] %v5439
        %5696 = vst [vmem:[%s372 + $0x498] sm:$0xff] %v5440
        %5697 = vst [vmem:[%s372 + $0x4a0] sm:$0xff] %v5441
        %5698 = vst [vmem:[%s372 + $0x4a8] sm:$0xff] %v5442
        %5699 = vst [vmem:[%s372 + $0x4b0] sm:$0xff] %v5443
        %5700 = vst [vmem:[%s372 + $0x4b8] sm:$0xff] %v5444
        %5701 = vst [vmem:[%s372 + $0x4c0] sm:$0xff] %v5445
        %5702 = vst [vmem:[%s372 + $0x4c8] sm:$0xff] %v5446
        %5703 = vst [vmem:[%s372 + $0x4d0] sm:$0xff] %v5447
        %5704 = vst [vmem:[%s372 + $0x4d8] sm:$0xff] %v5448
        %5705 = vst [vmem:[%s372 + $0x4e0] sm:$0xff] %v5449
        %5706 = vst [vmem:[%s372 + $0x4e8] sm:$0xff] %v5450
        %5707 = vst [vmem:[%s372 + $0x4f0] sm:$0xff] %v5451
        %5708 = vst [vmem:[%s372 + $0x4f8] sm:$0xff] %v5452
        %5709 = vst [vmem:[%s372 + $0x500] sm:$0xff] %v5453
        %5710 = vst [vmem:[%s372 + $0x508] sm:$0xff] %v5454
        %5711 = vst [vmem:[%s372 + $0x510] sm:$0xff] %v5455
        %5712 = vst [vmem:[%s372 + $0x518] sm:$0xff] %v5456
        %5713 = vst [vmem:[%s372 + $0x520] sm:$0xff] %v5457
        %5714 = vst [vmem:[%s372 + $0x528] sm:$0xff] %v5458
        %5715 = vst [vmem:[%s372 + $0x530] sm:$0xff] %v5459
        %5716 = vst [vmem:[%s372 + $0x538] sm:$0xff] %v5460
        %5717 = vst [vmem:[%s372 + $0x540] sm:$0xff] %v5461
        %5718 = vst [vmem:[%s372 + $0x548] sm:$0xff] %v5462
        %5719 = vst [vmem:[%s372 + $0x550] sm:$0xff] %v5463
        %5720 = vst [vmem:[%s372 + $0x558] sm:$0xff] %v5464
        %5721 = vst [vmem:[%s372 + $0x560] sm:$0xff] %v5465
        %5722 = vst [vmem:[%s372 + $0x568] sm:$0xff] %v5466
        %5723 = vst [vmem:[%s372 + $0x570] sm:$0xff] %v5467
        %5724 = vst [vmem:[%s372 + $0x578] sm:$0xff] %v5468
        %5725 = vst [vmem:[%s372 + $0x580] sm:$0xff] %v5469
        %5726 = vst [vmem:[%s372 + $0x588] sm:$0xff] %v5470
        %5727 = vst [vmem:[%s372 + $0x590] sm:$0xff] %v5471
        %5728 = vst [vmem:[%s372 + $0x598] sm:$0xff] %v5472
        %5729 = vst [vmem:[%s372 + $0x5a0] sm:$0xff] %v5473
        %5730 = vst [vmem:[%s372 + $0x5a8] sm:$0xff] %v5474
        %5731 = vst [vmem:[%s372 + $0x5b0] sm:$0xff] %v5475
        %5732 = vst [vmem:[%s372 + $0x5b8] sm:$0xff] %v5476
        %5733 = vst [vmem:[%s372 + $0x5c0] sm:$0xff] %v5477
        %5734 = vst [vmem:[%s372 + $0x5c8] sm:$0xff] %v5478
        %5735 = vst [vmem:[%s372 + $0x5d0] sm:$0xff] %v5479
        %5736 = vst [vmem:[%s372 + $0x5d8] sm:$0xff] %v5480
        %5737 = vst [vmem:[%s372 + $0x5e0] sm:$0xff] %v5481
        %5738 = vst [vmem:[%s372 + $0x5e8] sm:$0xff] %v5482
        %5739 = vst [vmem:[%s372 + $0x5f0] sm:$0xff] %v5483
        %5740 = vst [vmem:[%s372 + $0x5f8] sm:$0xff] %v5484
        %5741 = vst [vmem:[%s372 + $0x600] sm:$0xff] %v5485
        %5742 = vst [vmem:[%s372 + $0x608] sm:$0xff] %v5486
        %5743 = vst [vmem:[%s372 + $0x610] sm:$0xff] %v5487
        %5744 = vst [vmem:[%s372 + $0x618] sm:$0xff] %v5488
        %5745 = vst [vmem:[%s372 + $0x620] sm:$0xff] %v5489
        %5746 = vst [vmem:[%s372 + $0x628] sm:$0xff] %v5490
        %5747 = vst [vmem:[%s372 + $0x630] sm:$0xff] %v5491
        %5748 = vst [vmem:[%s372 + $0x638] sm:$0xff] %v5492
        %5749 = vst [vmem:[%s372 + $0x640] sm:$0xff] %v5493
        %5750 = vst [vmem:[%s372 + $0x648] sm:$0xff] %v5494
        %5751 = vst [vmem:[%s372 + $0x650] sm:$0xff] %v5495
        %5752 = vst [vmem:[%s372 + $0x658] sm:$0xff] %v5496
        %5753 = vst [vmem:[%s372 + $0x660] sm:$0xff] %v5497
        %5754 = vst [vmem:[%s372 + $0x668] sm:$0xff] %v5498
        %5755 = vst [vmem:[%s372 + $0x670] sm:$0xff] %v5499
        %5756 = vst [vmem:[%s372 + $0x678] sm:$0xff] %v5500
        %5757 = vst [vmem:[%s372 + $0x680] sm:$0xff] %v5501
        %5758 = vst [vmem:[%s372 + $0x688] sm:$0xff] %v5502
        %5759 = vst [vmem:[%s372 + $0x690] sm:$0xff] %v5503
        %5760 = vst [vmem:[%s372 + $0x698] sm:$0xff] %v5504
        %5761 = vst [vmem:[%s372 + $0x6a0] sm:$0xff] %v5505
        %5762 = vst [vmem:[%s372 + $0x6a8] sm:$0xff] %v5506
        %5763 = vst [vmem:[%s372 + $0x6b0] sm:$0xff] %v5507
        %5764 = vst [vmem:[%s372 + $0x6b8] sm:$0xff] %v5508
        %5765 = vst [vmem:[%s372 + $0x6c0] sm:$0xff] %v5509
        %5766 = vst [vmem:[%s372 + $0x6c8] sm:$0xff] %v5510
        %5767 = vst [vmem:[%s372 + $0x6d0] sm:$0xff] %v5511
        %5768 = vst [vmem:[%s372 + $0x6d8] sm:$0xff] %v5512
        %5769 = vst [vmem:[%s372 + $0x6e0] sm:$0xff] %v5513
        %5770 = vst [vmem:[%s372 + $0x6e8] sm:$0xff] %v5514
        %5771 = vst [vmem:[%s372 + $0x6f0] sm:$0xff] %v5515
        %5772 = vst [vmem:[%s372 + $0x6f8] sm:$0xff] %v5516
        %5773 = vst [vmem:[%s372 + $0x700] sm:$0xff] %v5517
        %5774 = vst [vmem:[%s372 + $0x708] sm:$0xff] %v5518
        %5775 = vst [vmem:[%s372 + $0x710] sm:$0xff] %v5519
        %5776 = vst [vmem:[%s372 + $0x718] sm:$0xff] %v5520
        %5777 = vst [vmem:[%s372 + $0x720] sm:$0xff] %v5521
        %5778 = vst [vmem:[%s372 + $0x728] sm:$0xff] %v5522
        %5779 = vst [vmem:[%s372 + $0x730] sm:$0xff] %v5523
        %5780 = vst [vmem:[%s372 + $0x738] sm:$0xff] %v5524
        %5781 = vst [vmem:[%s372 + $0x740] sm:$0xff] %v5525
        %5782 = vst [vmem:[%s372 + $0x748] sm:$0xff] %v5526
        %5783 = vst [vmem:[%s372 + $0x750] sm:$0xff] %v5527
        %5784 = vst [vmem:[%s372 + $0x758] sm:$0xff] %v5528
        %5785 = vst [vmem:[%s372 + $0x760] sm:$0xff] %v5529
        %5786 = vst [vmem:[%s372 + $0x768] sm:$0xff] %v5530
        %5787 = vst [vmem:[%s372 + $0x770] sm:$0xff] %v5531
        %5788 = vst [vmem:[%s372 + $0x778] sm:$0xff] %v5532
        %5789 = vst [vmem:[%s372 + $0x780] sm:$0xff] %v5533
        %5790 = vst [vmem:[%s372 + $0x788] sm:$0xff] %v5534
        %5791 = vst [vmem:[%s372 + $0x790] sm:$0xff] %v5535
        %5792 = vst [vmem:[%s372 + $0x798] sm:$0xff] %v5536
        %5793 = vst [vmem:[%s372 + $0x7a0] sm:$0xff] %v5537
        %5794 = vst [vmem:[%s372 + $0x7a8] sm:$0xff] %v5538
        %5795 = vst [vmem:[%s372 + $0x7b0] sm:$0xff] %v5539
        %5796 = vst [vmem:[%s372 + $0x7b8] sm:$0xff] %v5540
        %5797 = vst [vmem:[%s372 + $0x7c0] sm:$0xff] %v5541
        %5798 = vst [vmem:[%s372 + $0x7c8] sm:$0xff] %v5542
        %5799 = vst [vmem:[%s372 + $0x7d0] sm:$0xff] %v5543
        %5800 = vst [vmem:[%s372 + $0x7d8] sm:$0xff] %v5544
        %5801 = vst [vmem:[%s372 + $0x7e0] sm:$0xff] %v5545
        %5802 = vst [vmem:[%s372 + $0x7e8] sm:$0xff] %v5546
        %5803 = vst [vmem:[%s372 + $0x7f0] sm:$0xff] %v5547
        %5804 = vst [vmem:[%s372 + $0x7f8] sm:$0xff] %v5548
        %s5805 = sand.u32 %s201, 1
        %s5806 = scalar_lea.sflag [#allocation5], %s5805
        %s5807 = sand.u32 %s201, 1
        %s5808 = smul.addr %s5807, 2048
        %s5809 = scalar_lea.vmem [#allocation11], %s5808
        // Predicated region
        $region65: #{tpu_custom_call.1} parent=43 // pred_check
          %p5810 = pneg %p211
        $region66: #{tpu_custom_call.1} parent=43 // pred_check_branch
          %5812 = sbr.rel (%p5810) target = $region68
        $region67: #{tpu_custom_call.1} parent=43 // pred_region
          %s5813 = smul.u32 32, %s31
          %s5814 = smul.u32 8, %s32
          %s5816 = ssub.s32 32768, 32768
          %5817 = vsyncadd %s5806, %s5816
          %s5818 = smul.addr %s5813, 8
          %s5819 = sadd.s32 %s5814, %s5818
          %s5820 = smul.addr %s30, 512
          %s5821 = sadd.s32 %s5819, %s5820
          %s5822 = smul.addr %s5821, 128
          %s5823 = scalar_lea.hbm %s6, %s5822
          %s5824 = sshll.u32 %s5809, 4
          %s5825 = int_to_ptr.vmem [resolvable:$true] %s5824
          %5830 = dma.vmem_to_hbm [thread:$0]  %s5825, 32768, %s5823, %s5806, 128, 128, 8
        $region68: #{tpu_custom_call.1} parent=43 // pred_fallthru
          _
      $region44: #{tpu_custom_call.1} parent=5 // pred_fallthru
        _
      %p5831 = scmp.le.s32.totalorder 2, %s20
      // Predicated region
      $region69: #{tpu_custom_call.1} parent=5 // pred_check
        %p5832 = pneg %p5831
      $region70: #{tpu_custom_call.1} parent=5 // pred_check_branch
        %5834 = sbr.rel (%p5832) target = $region72
      $region71: #{tpu_custom_call.1} parent=5 // pred_region
        %s5835 = ssub.s32 %s20, 2
        // Predicated region
        $region73: #{tpu_custom_call.1} parent=71 // pred_check
          %p5836 = pneg %p217
        $region74: #{tpu_custom_call.1} parent=71 // pred_check_branch
          %5838 = sbr.rel (%p5836) target = $region76
        $region75: #{tpu_custom_call.1} parent=71 // pred_region
          %s5839 = sand.u32 %s202, 1
          %s5840 = scalar_lea.sflag [#allocation5], %s5839
          %s5841 = sand.u32 %s202, 1
          %s5842 = smul.addr %s5841, 2048
          %s5843 = scalar_lea.vmem [#allocation11], %s5842
          %5844 = dma.done %s5840, 32768
        $region76: #{tpu_custom_call.1} parent=71 // pred_fallthru
          _
      $region72: #{tpu_custom_call.1} parent=5 // pred_fallthru
        _
    $region6: #{tpu_custom_call.1} parent=1 // loop_footer
      %s24 = sadd.s32 1, %s20
    $region7: #{tpu_custom_call.1} parent=1 // loop_footer_branch
      %19 = sbr.rel target = $region3
    $region8: #{tpu_custom_call.1} parent=1 // loop_exit
      _
    %5845 = vsyncpa [#allocation4], 1
    %s5846 = scalar_lea.sflag [#allocation4], 1
    %5847 = vsyncpa %s5846, 1
    %5848 = vsyncpa [#allocation7], 1
    %5849 = vsyncpa [#allocation10], 1
    %5850 = vsyncpa [#allocation5], 1
    %s5851 = scalar_lea.sflag [#allocation5], 1
    %5852 = vsyncpa %s5851, 1

</llo_original>
